<compile_context>
chip_gen: v7x
topology: tpu7x:2x2x1
jax: 0.10.0
libtpu: 0.0.40
codegen_flags: <defaults>
</compile_context>

<pallas_src>
import functools

import jax
import jax.numpy as jnp
from jax.experimental import pallas as pl
from jax.experimental.pallas import tpu as pltpu


def _lightgcn_layer_kernel(g_ref, e_ref, acc_in_ref, next_ref, acc_out_ref,
                           scratch, *, out_scale, emb_resident):
    """One propagation layer:  next = G @ E,  acc_out = (acc_in + next) * out_scale.

    Grid = (N // tm, N // tk); axis 1 (last) is the K-reduction over graph columns.
    E is either fully VMEM-resident (shape (N, D), sliced here with pl.ds) or a
    streamed (tk, D) block.
    """
    k = pl.program_id(1)

    @pl.when(k == 0)
    def _():
        scratch[...] = jnp.zeros_like(scratch)

    tk = g_ref.shape[1]
    if emb_resident and e_ref.shape[0] != tk:
        # Resident (N, D) embedding: slice the current K window in-kernel.
        start = pl.multiple_of(k * tk, tk)
        e_tile = e_ref[pl.ds(start, tk), :]
    else:
        # Streamed (tk, D) block (or resident E with a single K step).
        e_tile = e_ref[...]

    # bf16 x bf16 on the MXU with f32 accumulation (no in-kernel f32 upcast of the
    # (tm, tk) graph tile).
    scratch[...] += jnp.dot(g_ref[...], e_tile, preferred_element_type=jnp.float32)

    @pl.when(k == pl.num_programs(1) - 1)
    def _():
        next_ref[...] = scratch[...].astype(next_ref.dtype)   # bf16 carry
        total = acc_in_ref[...] + scratch[...]
        if out_scale != 1.0:          # fold the 1/(layers+1) mean into the last layer
            total = total * jnp.float32(out_scale)
        acc_out_ref[...] = total


def _vmem_cap_bytes():
    """Generation-aware VMEM request cap (~80% of physical VMEM)."""
    try:
        cap = int(getattr(pltpu.get_tpu_info(), "vmem_capacity_bytes", 0))
        if cap > 0:
            return int(cap * 0.8)     # ~51 MiB on v7x, ~102 MiB on v5e/v6e
    except Exception:
        pass
    return 48 * 1024 * 1024           # conservative fallback, safe even on v7x


@functools.partial(
    jax.jit,
    static_argnames=("out_scale", "tm", "tk", "emb_resident", "vmem_cap"),
    donate_argnums=(2,))
def lightgcn_propagate_layer(graph, emb, acc, *, out_scale, tm, tk,
                             emb_resident, vmem_cap):
    """Runs one LightGCN layer on TPU via Pallas. Returns (next_emb_bf16, new_acc_f32)."""
    N, D = emb.shape
    assert graph.shape == (N, N)
    assert N % tm == 0 and N % tk == 0, (N, tm, tk)

    grid = (N // tm, N // tk)

    if emb_resident:
        # Full E stays in VMEM for the whole grid (constant index_map -> one HBM load
        # per layer); single-buffered since the block never changes.
        emb_spec = pl.BlockSpec((N, D), lambda i, k: (0, 0),
                                pipeline_mode=pl.Buffered(1))
    else:
        emb_spec = pl.BlockSpec((tk, D), lambda i, k: (k, 0))

    g_bytes = jnp.dtype(graph.dtype).itemsize
    e_bytes = jnp.dtype(emb.dtype).itemsize
    emb_rows = N if emb_resident else tk
    emb_bufs = 1 if emb_resident else 2
    vmem_est = (
        2 * tm * tk * g_bytes               # double-buffered graph tiles (dominant)
        + emb_bufs * emb_rows * D * e_bytes  # embedding operand
        + 2 * tm * D * 4                     # acc_in tiles
        + 2 * tm * D * e_bytes               # next_emb output tiles (bf16)
        + 2 * tm * D * 4                     # acc_out output tiles
        + tm * D * 4                         # f32 accumulator scratch
    )
    vmem_limit = int(min(vmem_cap, max(int(1.3 * vmem_est), 32 * 1024 * 1024)))

    kernel = functools.partial(
        _lightgcn_layer_kernel,
        out_scale=float(out_scale), emb_resident=bool(emb_resident))

    return pl.pallas_call(
        kernel,
        out_shape=(
            jax.ShapeDtypeStruct((N, D), emb.dtype),     # next_emb (bf16)
            jax.ShapeDtypeStruct((N, D), jnp.float32),   # running sum / (scaled) mean
        ),
        grid_spec=pltpu.PrefetchScalarGridSpec(
            num_scalar_prefetch=0,
            grid=grid,
            in_specs=[
                pl.BlockSpec((tm, tk), lambda i, k: (i, k)),   # graph tile (bf16 stream)
                emb_spec,                                      # embeddings (bf16)
                pl.BlockSpec((tm, D), lambda i, k: (i, 0)),    # acc_in tile (f32)
            ],
            out_specs=[
                pl.BlockSpec((tm, D), lambda i, k: (i, 0)),    # next_emb tile
                pl.BlockSpec((tm, D), lambda i, k: (i, 0)),    # acc_out tile
            ],
            scratch_shapes=[pltpu.VMEM((tm, D), jnp.float32)],
        ),
        input_output_aliases={2: 1},  # acc buffer reused in place as acc_out
        compiler_params=pltpu.CompilerParams(
            dimension_semantics=("parallel", "arbitrary"),
            vmem_limit_bytes=vmem_limit,
        ),
    )(graph, emb, acc)


def _round_up(x, m):
    return ((x + m - 1) // m) * m


def _pick_tile(n, target, granule, prefer_even_count=False):
    """Largest t <= target with t % granule == 0 and n % t == 0.

    With prefer_even_count, prefer t such that n // t is even (balanced split of the
    parallel row axis across v7x's two TensorCores). Returns n when n <= target.
    """
    if n <= target:
        return n
    fallback = None
    t = (target // granule) * granule
    while t >= granule:
        if n % t == 0:
            if not prefer_even_count or (n // t) % 2 == 0:
                return t
            if fallback is None:
                fallback = t
        t -= granule
    return fallback if fallback is not None else n


def lightgcn_forward(graph, users_emb, items_emb, layers, *,
                     graph_dtype=jnp.bfloat16, tm=512, tk=4096):
    """Full LightGCN forward: returns (users, items) embeddings after layer-mean."""
    num_users = users_emb.shape[0]
    all_emb = jnp.concatenate([users_emb, items_emb], axis=0)
    N, D = all_emb.shape

    if layers == 0:
        return all_emb[:num_users], all_emb[num_users:]

    # Pad N to a tile-friendly multiple; zero rows/cols contribute nothing to the
    # first N rows of G @ E and are sliced off at the end.
    N_pad = _round_up(N, 256)
    pad = N_pad - N

    g = graph.astype(graph_dtype)          # dominant HBM stream -> bf16
    emb0 = all_emb
    if pad:
        g = jnp.pad(g, ((0, pad), (0, pad)))
        emb0 = jnp.pad(emb0, ((0, pad), (0, 0)))

    tm = _pick_tile(N_pad, tm, 8, prefer_even_count=True)
    tk = _pick_tile(N_pad, tk, 128)

    vmem_cap = _vmem_cap_bytes()
    emb_resident_bytes = N_pad * D * jnp.dtype(jnp.bfloat16).itemsize
    emb_resident = emb_resident_bytes <= min(32 * 1024 * 1024, vmem_cap // 3)

    acc = emb0.astype(jnp.float32)         # layer-0 term of the mean (kept f32)
    emb = emb0.astype(jnp.bfloat16)        # bf16 MXU operand stream

    for layer in range(layers):
        out_scale = 1.0 / (layers + 1) if layer == layers - 1 else 1.0
        emb, acc = lightgcn_propagate_layer(
            g, emb, acc, out_scale=out_scale, tm=tm, tk=tk,
            emb_resident=emb_resident, vmem_cap=vmem_cap)

    mean_emb = acc[:N].astype(all_emb.dtype)   # 1/(layers+1) already folded in-kernel
    return mean_emb[:num_users], mean_emb[num_users:]


def _reference_forward(graph_q, users_emb, items_emb, layers):
    """Pure-JAX reference mirroring the kernel's quantization (bf16 graph, bf16 E
    carry, f32 accumulation) so only accumulation order differs."""
    all_emb = jnp.concatenate([users_emb, items_emb], axis=0)
    acc = all_emb.astype(jnp.float32)
    cur = all_emb.astype(jnp.bfloat16)
    for _ in range(layers):
        nxt = jnp.dot(graph_q, cur.astype(jnp.float32),
                      precision=jax.lax.Precision.HIGHEST)
        acc = acc + nxt
        cur = nxt.astype(jnp.bfloat16)
    mean_emb = acc / (layers + 1)
    num_users = users_emb.shape[0]
    return mean_emb[:num_users], mean_emb[num_users:]


if __name__ == "__main__":
    # N = 2000 (not tile-divisible) exercises the padding path; tk=1024 (explicit)
    # gives a 2-step K reduction so the scratch accumulation and the in-kernel
    # pl.ds slice of the resident E are both exercised.  Grid = (4, 2) on N_pad=2048.
    num_users, num_items, emb_dim, layers = 900, 1100, 64, 3
    N = num_users + num_items  # 2000

    key = jax.random.PRNGKey(0)
    k_u, k_i, k_g = jax.random.split(key, 3)

    users_emb = jax.random.normal(k_u, (num_users, emb_dim), dtype=jnp.float32)
    items_emb = jax.random.normal(k_i, (num_items, emb_dim), dtype=jnp.float32)

    # Deterministic "normalized adjacency"-like dense graph: sparse-ish non-negative
    # matrix, symmetrically degree-normalized.
    raw = jax.random.uniform(k_g, (N, N), dtype=jnp.float32)
    adj = jnp.where(raw > 0.9, raw, 0.0)
    adj = 0.5 * (adj + adj.T)
    deg = jnp.maximum(adj.sum(axis=1), 1e-6)
    d_inv_sqrt = 1.0 / jnp.sqrt(deg)
    graph = adj * d_inv_sqrt[:, None] * d_inv_sqrt[None, :]

    users_out, items_out = lightgcn_forward(graph, users_emb, items_emb, layers,
                                            tk=1024)
    jax.block_until_ready((users_out, items_out))

    # Reference uses the same bf16-rounded graph / bf16 E carry the kernel uses,
    # with f32 matmuls, so only f32 accumulation order differs.
    graph_q = graph.astype(jnp.bfloat16).astype(jnp.float32)
    users_ref, items_ref = _reference_forward(graph_q, users_emb, items_emb, layers)

    assert users_out.shape == (num_users, emb_dim)
    assert items_out.shape == (num_items, emb_dim)
    err_u = float(jnp.max(jnp.abs(users_out - users_ref)))
    err_i = float(jnp.max(jnp.abs(items_out - items_ref)))
    assert err_u < 2e-3 and err_i < 2e-3, (err_u, err_i)

    print("KERNEL_OK")
</pallas_src>

<mosaic_0001>
module attributes {stable_mosaic.version = 11 : i64} {
  func.func @_lightgcn_layer_kernel(%arg0: i32, %arg1: i32, %arg2: memref<512x1024xbf16, #tpu.memory_space<vmem>>, %arg3: memref<2048x64xbf16, #tpu.memory_space<vmem>>, %arg4: memref<512x64xf32, #tpu.memory_space<vmem>>, %arg5: memref<512x64xbf16, #tpu.memory_space<vmem>>, %arg6: memref<512x64xf32, #tpu.memory_space<vmem>>, %arg7: memref<512x64xf32, #tpu.memory_space<vmem>>) attributes {dimension_semantics = [#tpu.dimension_semantics<parallel>, #tpu.dimension_semantics<arbitrary>], iteration_bounds = array<i64: 4, 2>, scalar_prefetch = 0 : i64, scratch_operands = 1 : i64, tpu.core_type = #tpu.core_type<tc>, window_params = [{transform_indices = @transform_0, window_bounds = array<i64: 512, 1024>}, {pipeline_mode = #tpu.pipeline_mode<synchronous>, transform_indices = @transform_1, window_bounds = array<i64: 2048, 64>}, {transform_indices = @transform_2, window_bounds = array<i64: 512, 64>}, {transform_indices = @transform_3, window_bounds = array<i64: 512, 64>}, {transform_indices = @transform_4, window_bounds = array<i64: 512, 64>}]} {
    %c0_i32 = arith.constant 0 : i32
    %0 = arith.cmpi eq, %arg1, %c0_i32 : i32
    %1 = arith.extui %0 : i1 to i32
    %c0_i32_0 = arith.constant 0 : i32
    %2 = arith.cmpi ne, %1, %c0_i32_0 : i32
    scf.if %2 {
      %cst_8 = arith.constant 0.000000e+00 : f32
      %15 = vector.broadcast %cst_8 : f32 to vector<512x64xf32>
      %c0_9 = arith.constant 0 : index
      %c0_10 = arith.constant 0 : index
      %16 = vector.load %arg7[%c0_9, %c0_10] : memref<512x64xf32, #tpu.memory_space<vmem>>, vector<512x64xf32>
      tpu.vector_store %arg7[%c0_9, %c0_10], %15 {strides = array<i32>} : memref<512x64xf32, #tpu.memory_space<vmem>>, vector<512x64xf32>,
    } else {
    }
    %c1024_i32 = arith.constant 1024 : i32
    %3 = arith.muli %arg1, %c1024_i32 : i32
    %4 = tpu.assume_multiple %3, 1024 : i32
    %5 = arith.index_cast %4 : i32 to index
    %c0 = arith.constant 0 : index
    %6 = vector.load %arg3[%5, %c0] : memref<2048x64xbf16, #tpu.memory_space<vmem>>, vector<1024x64xbf16>
    %c0_1 = arith.constant 0 : index
    %c0_2 = arith.constant 0 : index
    %7 = vector.load %arg7[%c0_1, %c0_2] : memref<512x64xf32, #tpu.memory_space<vmem>>, vector<512x64xf32>
    %c0_3 = arith.constant 0 : index
    %c0_4 = arith.constant 0 : index
    %8 = vector.load %arg2[%c0_3, %c0_4] : memref<512x1024xbf16, #tpu.memory_space<vmem>>, vector<512x1024xbf16>
    %cst = arith.constant dense<0.000000e+00> : vector<512x64xf32>
    %9 = tpu.matmul %8, %6, %cst {dimension_numbers = #tpu.dot_dimension_numbers<[1], [0], [0], [1], [0, 0, 1, 1], [], []>} : vector<512x1024xbf16>, vector<1024x64xbf16>, vector<512x64xf32> -> vector<512x64xf32>
    %10 = arith.addf %7, %9 : vector<512x64xf32>
    %c0_5 = arith.constant 0 : index
    %c0_6 = arith.constant 0 : index
    %11 = vector.load %arg7[%c0_5, %c0_6] : memref<512x64xf32, #tpu.memory_space<vmem>>, vector<512x64xf32>
    tpu.vector_store %arg7[%c0_5, %c0_6], %10 {strides = array<i32>} : memref<512x64xf32, #tpu.memory_space<vmem>>, vector<512x64xf32>,
    %c1_i32 = arith.constant 1 : i32
    %12 = arith.cmpi eq, %arg1, %c1_i32 : i32
    %13 = arith.extui %12 : i1 to i32
    %c0_i32_7 = arith.constant 0 : i32
    %14 = arith.cmpi ne, %13, %c0_i32_7 : i32
    scf.if %14 {
      %c0_8 = arith.constant 0 : index
      %c0_9 = arith.constant 0 : index
      %15 = vector.load %arg7[%c0_8, %c0_9] : memref<512x64xf32, #tpu.memory_space<vmem>>, vector<512x64xf32>
      %16 = arith.truncf %15 : vector<512x64xf32> to vector<512x64xbf16>
      %c0_10 = arith.constant 0 : index
      %c0_11 = arith.constant 0 : index
      %17 = vector.load %arg5[%c0_10, %c0_11] : memref<512x64xbf16, #tpu.memory_space<vmem>>, vector<512x64xbf16>
      tpu.vector_store %arg5[%c0_10, %c0_11], %16 {strides = array<i32>} : memref<512x64xbf16, #tpu.memory_space<vmem>>, vector<512x64xbf16>,
      %c0_12 = arith.constant 0 : index
      %c0_13 = arith.constant 0 : index
      %18 = vector.load %arg4[%c0_12, %c0_13] : memref<512x64xf32, #tpu.memory_space<vmem>>, vector<512x64xf32>
      %c0_14 = arith.constant 0 : index
      %c0_15 = arith.constant 0 : index
      %19 = vector.load %arg7[%c0_14, %c0_15] : memref<512x64xf32, #tpu.memory_space<vmem>>, vector<512x64xf32>
      %20 = arith.addf %18, %19 : vector<512x64xf32>
      %c0_16 = arith.constant 0 : index
      %c0_17 = arith.constant 0 : index
      %21 = vector.load %arg6[%c0_16, %c0_17] : memref<512x64xf32, #tpu.memory_space<vmem>>, vector<512x64xf32>
      tpu.vector_store %arg6[%c0_16, %c0_17], %20 {strides = array<i32>} : memref<512x64xf32, #tpu.memory_space<vmem>>, vector<512x64xf32>,
    } else {
    }
    return
  }
  func.func @transform_0(%arg0: i32, %arg1: i32) -> (i32, i32) {
    %c0_i32 = arith.constant 0 : i32
    return %arg0, %arg1 : i32, i32
  }
  func.func @transform_1(%arg0: i32, %arg1: i32) -> (i32, i32) {
    %c0_i32 = arith.constant 0 : i32
    %c0_i32_0 = arith.constant 0 : i32
    %c0_i32_1 = arith.constant 0 : i32
    return %c0_i32, %c0_i32_0 : i32, i32
  }
  func.func @transform_2(%arg0: i32, %arg1: i32) -> (i32, i32) {
    %c0_i32 = arith.constant 0 : i32
    %c0_i32_0 = arith.constant 0 : i32
    return %arg0, %c0_i32 : i32, i32
  }
  func.func @transform_3(%arg0: i32, %arg1: i32) -> (i32, i32) {
    %c0_i32 = arith.constant 0 : i32
    %c0_i32_0 = arith.constant 0 : i32
    return %arg0, %c0_i32 : i32, i32
  }
  func.func @transform_4(%arg0: i32, %arg1: i32) -> (i32, i32) {
    %c0_i32 = arith.constant 0 : i32
    %c0_i32_0 = arith.constant 0 : i32
    return %arg0, %c0_i32 : i32, i32
  }
}

</mosaic_0001>

<llo_original>
// kernel: lightgcn_propagate_layer.1
$region0: #{lightgcn_propagate_layer.1}
  #allocation0 [shape = 'u32[]', space=smem, size = 0x4, offset = 0x4, fixed_abs, tag = 'smem constant byte address 0x4 - core index']
  #allocation1 [shape = 'u32[144,128]{1,0:T(1,128)}', space=vmem, size = 0x12000, scoped, tag = 'internal scratch']
  #allocation2 [shape = 'f32[512,64]{1,0:T(8,128)}', space=vmem, size = 0x40000, scoped, tag = 'scratch operand']
  %s0 = inlined_call_operand.hbm [shape: bf16[2048,2048], index: 0, kind: input, shape index: {}]
  %s1 = inlined_call_operand.vmem [shape: bf16[2048,64], index: 1, kind: input, shape index: {}]
  %s2 = inlined_call_operand.vmem [shape: f32[2048,64], index: 2, kind: input, shape index: {}, may-alias: {2,4}]
  %s3 = inlined_call_operand.vmem [shape: bf16[2048,64], index: 3, kind: output, shape index: {0}]
  %s4 = inlined_call_operand.vmem [shape: f32[2048,64], index: 4, kind: output, shape index: {1}, may-alias: {2,4}]
  %5 = xla_tuple %s3, %s4
  %s6 = sld [smem:[#allocation0]]
  $region65: #{lightgcn_propagate_layer.1} parent=0
    _
  %s8 = ssub.s32 1, %s6
  %s9 = scalar_select 0, %s8, %s6
  $region1: #{lightgcn_propagate_layer.1} parent=0
    #allocation3 [shape = 'u8[2097152]{0}', space=vmem, size = 0x200000, scoped, tag = 'input window, operand 0']
    #allocation4 [shape = 's32[2]{0}', space=sflag, size = 0x8, scoped, tag = 'scoped memory for lightgcn_propagate_layer.1']
    %10 = vsyncpa [#allocation4], 0
    %s11 = scalar_lea.sflag [#allocation4], 1
    %12 = vsyncpa %s11, 0
    loop: start=0, step=1, limit=10
    $region2: #{lightgcn_propagate_layer.1} parent=1 // loop_pre_header
      _
    $region3: #{lightgcn_propagate_layer.1} parent=1 // loop_header
      %s14 = sphi 0, %s18
      %p15 = scmp.ge.s32.totalorder %s14, 10
      %s21 = sphi 0, %s33
      %s22 = sphi 0, %s29
      %s23 = sphi 0, %s21
      %s24 = sphi 0, %s22
      %s25 = sphi 0, %s23
      %s26 = sphi 0, %s24
      %s38 = sphi 0, %s40
      %s41 = sphi 0, %s38
      %s42 = sphi 0, %s41
      %s58 = sphi 0, %s42
      %s62 = sphi 0, %s62
      %s64 = sphi 0, %s62
      %s65 = sphi 0, %s64
      %s79 = sphi 0, %s65
      %s85 = sphi 0, %s87
      %s88 = sphi 0, %s85
      %s89 = sphi 0, %s88
      %s105 = sphi 0, %s89
      %s111 = sphi 0, %s113
      %s114 = sphi 0, %s111
      %s115 = sphi 0, %s114
      %s131 = sphi 0, %s115
      %s137 = sphi 0, %s139
      %s140 = sphi 0, %s137
      %s141 = sphi 0, %s140
      %s157 = sphi 0, %s141
    $region4: #{lightgcn_propagate_layer.1} parent=1 // loop_header_branch
      %17 = sbr.rel (%p15) target = $region8
    $region5: #{lightgcn_propagate_layer.1} parent=1 // loop_body
      %s19 = ssub.s32 %s14, 1
      %s20 = ssub.s32 %s14, 2
      %s27 = sadd.s32 1, %s22
      %p28 = scmp.ge.s32.totalorder %s27, 2
      %s29 = scalar_select %p28, 0, %s27
      %s30 = sadd.s32 1, %s21
      %s31 = scalar_select %p28, %s30, %s21
      %p32 = scmp.ge.s32.totalorder %s31, 4
      %s33 = scalar_select %p32, 0, %s31
      %s34 = ssub.s32 %s21, %s33
      %s35 = ssub.s32 %s22, %s29
      %s36 = sor.u32 %s34, %s35
      %p37 = scmp.eq.s32.totalorder %s36, 0
      %s39 = sadd.s32 %s38, 1
      %s40 = scalar_select %p37, %s38, %s39
      %p43 = pneg %p37
      %p44 = scmp.eq.s32.totalorder %s14, 7
      %p45 = por %p43, %p44
      %p46 = scmp.ne.s32.totalorder %s38, %s41
      %p47 = scmp.eq.s32.totalorder %s14, 0
      %p48 = por %p46, %p47
      %p49 = scmp.ne.s32.totalorder %s38, %s41
      %p50 = scmp.eq.s32.totalorder %s19, 7
      %p51 = por %p49, %p50
      %p52 = scmp.ne.s32.totalorder %s41, %s42
      %p53 = scmp.eq.s32.totalorder %s19, 0
      %p54 = por %p52, %p53
      %p55 = scmp.ne.s32.totalorder %s41, %s42
      %p56 = scmp.eq.s32.totalorder %s20, 7
      %p57 = por %p55, %p56
      %p59 = scmp.ne.s32.totalorder %s42, %s58
      %p60 = scmp.eq.s32.totalorder %s20, 0
      %p61 = por %p59, %p60
      %s63 = sadd.s32 %s62, 1
      %p66 = scmp.eq.s32.totalorder %s14, 7
      %p67 = scmp.ne.s32.totalorder %s62, %s64
      %p68 = scmp.eq.s32.totalorder %s14, 0
      %p69 = por %p67, %p68
      %p70 = scmp.ne.s32.totalorder %s62, %s64
      %p71 = scmp.eq.s32.totalorder %s19, 7
      %p72 = por %p70, %p71
      %p73 = scmp.ne.s32.totalorder %s64, %s65
      %p74 = scmp.eq.s32.totalorder %s19, 0
      %p75 = por %p73, %p74
      %p76 = scmp.ne.s32.totalorder %s64, %s65
      %p77 = scmp.eq.s32.totalorder %s20, 7
      %p78 = por %p76, %p77
      %p80 = scmp.ne.s32.totalorder %s65, %s79
      %p81 = scmp.eq.s32.totalorder %s20, 0
      %p82 = por %p80, %p81
      %s83 = ssub.s32 %s21, %s33
      %p84 = scmp.eq.s32.totalorder %s83, 0
      %s86 = sadd.s32 %s85, 1
      %s87 = scalar_select %p84, %s85, %s86
      %p90 = pneg %p84
      %p91 = scmp.eq.s32.totalorder %s14, 7
      %p92 = por %p90, %p91
      %p93 = scmp.ne.s32.totalorder %s85, %s88
      %p94 = scmp.eq.s32.totalorder %s14, 0
      %p95 = por %p93, %p94
      %p96 = scmp.ne.s32.totalorder %s85, %s88
      %p97 = scmp.eq.s32.totalorder %s19, 7
      %p98 = por %p96, %p97
      %p99 = scmp.ne.s32.totalorder %s88, %s89
      %p100 = scmp.eq.s32.totalorder %s19, 0
      %p101 = por %p99, %p100
      %p102 = scmp.ne.s32.totalorder %s88, %s89
      %p103 = scmp.eq.s32.totalorder %s20, 7
      %p104 = por %p102, %p103
      %p106 = scmp.ne.s32.totalorder %s89, %s105
      %p107 = scmp.eq.s32.totalorder %s20, 0
      %p108 = por %p106, %p107
      %s109 = ssub.s32 %s21, %s33
      %p110 = scmp.eq.s32.totalorder %s109, 0
      %s112 = sadd.s32 %s111, 1
      %s113 = scalar_select %p110, %s111, %s112
      %p116 = pneg %p110
      %p117 = scmp.eq.s32.totalorder %s14, 7
      %p118 = por %p116, %p117
      %p119 = scmp.ne.s32.totalorder %s111, %s114
      %p120 = scmp.eq.s32.totalorder %s14, 0
      %p121 = por %p119, %p120
      %p122 = scmp.ne.s32.totalorder %s111, %s114
      %p123 = scmp.eq.s32.totalorder %s19, 7
      %p124 = por %p122, %p123
      %p125 = scmp.ne.s32.totalorder %s114, %s115
      %p126 = scmp.eq.s32.totalorder %s19, 0
      %p127 = por %p125, %p126
      %p128 = scmp.ne.s32.totalorder %s114, %s115
      %p129 = scmp.eq.s32.totalorder %s20, 7
      %p130 = por %p128, %p129
      %p132 = scmp.ne.s32.totalorder %s115, %s131
      %p133 = scmp.eq.s32.totalorder %s20, 0
      %p134 = por %p132, %p133
      %s135 = ssub.s32 %s21, %s33
      %p136 = scmp.eq.s32.totalorder %s135, 0
      %s138 = sadd.s32 %s137, 1
      %s139 = scalar_select %p136, %s137, %s138
      %p142 = pneg %p136
      %p143 = scmp.eq.s32.totalorder %s14, 7
      %p144 = por %p142, %p143
      %p145 = scmp.ne.s32.totalorder %s137, %s140
      %p146 = scmp.eq.s32.totalorder %s14, 0
      %p147 = por %p145, %p146
      %p148 = scmp.ne.s32.totalorder %s137, %s140
      %p149 = scmp.eq.s32.totalorder %s19, 7
      %p150 = por %p148, %p149
      %p151 = scmp.ne.s32.totalorder %s140, %s141
      %p152 = scmp.eq.s32.totalorder %s19, 0
      %p153 = por %p151, %p152
      %p154 = scmp.ne.s32.totalorder %s140, %s141
      %p155 = scmp.eq.s32.totalorder %s20, 7
      %p156 = por %p154, %p155
      %p158 = scmp.ne.s32.totalorder %s141, %s157
      %p159 = scmp.eq.s32.totalorder %s20, 0
      %p160 = por %p158, %p159
      %p161 = scmp.le.s32.totalorder 1, %s14
      %p162 = scmp.lt.s32.totalorder %s14, 9
      %p163 = pnand %p161, %p162
      %p164 = pneg %p163
      // Predicated region
      $region9: #{lightgcn_propagate_layer.1} parent=5 // pred_check
        _
      $region10: #{lightgcn_propagate_layer.1} parent=5 // pred_check_branch
        %166 = sbr.rel (%p163) target = $region12
      $region11: #{lightgcn_propagate_layer.1} parent=5 // pred_region
        %s167 = ssub.s32 %s14, 1
        // Predicated region
        $region13: #{lightgcn_propagate_layer.1} parent=11 // pred_check
          %p168 = pneg %p75
        $region14: #{lightgcn_propagate_layer.1} parent=11 // pred_check_branch
          %170 = sbr.rel (%p168) target = $region16
        $region15: #{lightgcn_propagate_layer.1} parent=11 // pred_region
          _
        $region16: #{lightgcn_propagate_layer.1} parent=11 // pred_fallthru
          _
      $region12: #{lightgcn_propagate_layer.1} parent=5 // pred_fallthru
        _
      %p171 = scmp.lt.s32.totalorder %s14, 8
      // Predicated region
      $region17: #{lightgcn_propagate_layer.1} parent=5 // pred_check
        %p172 = pneg %p171
      $region18: #{lightgcn_propagate_layer.1} parent=5 // pred_check_branch
        %174 = sbr.rel (%p172) target = $region20
      $region19: #{lightgcn_propagate_layer.1} parent=5 // pred_region
        // Predicated region
        $region21: #{lightgcn_propagate_layer.1} parent=19 // pred_check
          %p175 = pneg %p48
        $region22: #{lightgcn_propagate_layer.1} parent=19 // pred_check_branch
          %177 = sbr.rel (%p175) target = $region24
        $region23: #{lightgcn_propagate_layer.1} parent=19 // pred_region
          %s178 = sand.u32 %s38, 1
          %s179 = scalar_lea.sflag [#allocation4], %s178
          %s180 = sand.u32 %s38, 1
          %s181 = smul.addr %s180, 2048
          %s182 = scalar_lea.vmem [#allocation3], %s181
          %s183 = smul.u32 64, %s21
          %s184 = smul.u32 8, %s22
          %s186 = ssub.s32 32768, 32768
          %187 = vsyncadd %s179, %s186
          %s188 = smul.addr %s183, 16
          %s189 = sadd.s32 %s184, %s188
          %s190 = smul.addr %s189, 64
          %s191 = scalar_lea.hbm %s0, %s190
          %s192 = sshll.u32 %s182, 4
          %s193 = int_to_ptr.vmem [resolvable:$true] %s192
          %198 = dma.hbm_to_vmem [thread:$0]  %s191, 32768, %s193, %s179, 1024, 512, 32
        $region24: #{lightgcn_propagate_layer.1} parent=19 // pred_fallthru
          _
        // Predicated region
        $region25: #{lightgcn_propagate_layer.1} parent=19 // pred_check
          %p199 = pneg %p95
        $region26: #{lightgcn_propagate_layer.1} parent=19 // pred_check_branch
          %201 = sbr.rel (%p199) target = $region28
        $region27: #{lightgcn_propagate_layer.1} parent=19 // pred_region
          %s202 = smul.u32 64, %s21
          %p203 = scmp.lt.s32.totalorder %s202, 255
          %s204 = scalar_select %p203, %s202, 255
          %s205 = smul.addr %s204, 8
          %s206 = scalar_lea.vmem %s2, %s205
          %s207 = smul.u32 64, %s21
        $region28: #{lightgcn_propagate_layer.1} parent=19 // pred_fallthru
          _
      $region20: #{lightgcn_propagate_layer.1} parent=5 // pred_fallthru
        _
      %p208 = scmp.le.s32.totalorder 1, %s14
      %p209 = scmp.lt.s32.totalorder %s14, 9
      %p210 = pnand %p208, %p209
      %p211 = pneg %p210
      // Predicated region
      $region29: #{lightgcn_propagate_layer.1} parent=5 // pred_check
        _
      $region30: #{lightgcn_propagate_layer.1} parent=5 // pred_check_branch
        %213 = sbr.rel (%p210) target = $region32
      $region31: #{lightgcn_propagate_layer.1} parent=5 // pred_region
        %s214 = ssub.s32 %s14, 1
        %s215 = sand.u32 %s41, 1
        %s216 = scalar_lea.sflag [#allocation4], %s215
        %s217 = sand.u32 %s41, 1
        %s218 = smul.addr %s217, 2048
        %s219 = scalar_lea.vmem [#allocation3], %s218
        // Predicated region
        $region33: #{lightgcn_propagate_layer.1} parent=31 // pred_check
          %p220 = pneg %p54
        $region34: #{lightgcn_propagate_layer.1} parent=31 // pred_check_branch
          %222 = sbr.rel (%p220) target = $region36
        $region35: #{lightgcn_propagate_layer.1} parent=31 // pred_region
          %223 = dma.done %s216, 32768
        $region36: #{lightgcn_propagate_layer.1} parent=31 // pred_fallthru
          _
        %s224 = sand.u32 %s41, 1
        %s225 = scalar_lea.sflag [#allocation4], %s224
        %s226 = sand.u32 %s41, 1
        %s227 = smul.addr %s226, 2048
        %s228 = scalar_lea.vmem [#allocation3], %s227
        %p229 = pneg %p54
        %p230 = pneg %p51
        %p231 = pneg %p75
        %p232 = pneg %p72
        %s233 = smul.u32 64, %s23
        %p234 = scmp.lt.s32.totalorder %s233, 255
        %s235 = scalar_select %p234, %s233, 255
        %s236 = smul.addr %s235, 8
        %s237 = scalar_lea.vmem %s2, %s236
        %p238 = pneg %p101
        %p239 = pneg %p98
        %p240 = pneg %p127
        %p241 = pneg %p124
        %s242 = smul.u32 64, %s23
        %p243 = scmp.lt.s32.totalorder %s242, 255
        %s244 = scalar_select %p243, %s242, 255
        %s245 = smul.addr %s244, 4
        %s246 = scalar_lea.vmem %s3, %s245
        %p247 = pneg %p153
        %p248 = pneg %p150
        %s249 = smul.u32 64, %s23
        %p250 = scmp.lt.s32.totalorder %s249, 255
        %s251 = scalar_select %p250, %s249, 255
        %s252 = smul.addr %s251, 8
        %s253 = scalar_lea.vmem %s4, %s252
        %s254 = smul.u32 64, %s23
        %s255 = smul.u32 8, %s24
        %s256 = smul.u32 64, %s23
        %p257 = scmp.lt.s32.totalorder %s256, 255
        %s258 = scalar_select %p257, %s256, 255
        %s259 = smul.addr %s258, 8
        %s260 = scalar_lea.vmem %s2, %s259
        %s261 = smul.u32 64, %s23
        %s262 = smul.u32 64, %s23
        %p263 = scmp.lt.s32.totalorder %s262, 255
        %s264 = scalar_select %p263, %s262, 255
        %s265 = smul.addr %s264, 4
        %s266 = scalar_lea.vmem %s3, %s265
        %s267 = smul.u32 64, %s23
        %s268 = smul.u32 64, %s23
        %p269 = scmp.lt.s32.totalorder %s268, 255
        %s270 = scalar_select %p269, %s268, 255
        %s271 = smul.addr %s270, 8
        %s272 = scalar_lea.vmem %s4, %s271
        %s273 = smul.u32 64, %s23
        %p275 = scmp.eq.s32.totalorder %s24, 0
        // Predicated region
        $region37: #{lightgcn_propagate_layer.1} parent=31 // pred_check
          %p276 = pneg %p275
        $region38: #{lightgcn_propagate_layer.1} parent=31 // pred_check_branch
          %278 = sbr.rel (%p276) target = $region40
        $region39: #{lightgcn_propagate_layer.1} parent=31 // pred_region
          %vm279 = vcmask 523264
          %280 = vst.msk [vmem:[#allocation2] sm:$0xff] %vm279, 0.0
          %281 = vst.msk [vmem:[#allocation2 + $0x8] sm:$0xff] %vm279, 0.0
          %282 = vst.msk [vmem:[#allocation2 + $0x10] sm:$0xff] %vm279, 0.0
          %283 = vst.msk [vmem:[#allocation2 + $0x18] sm:$0xff] %vm279, 0.0
          %284 = vst.msk [vmem:[#allocation2 + $0x20] sm:$0xff] %vm279, 0.0
          %285 = vst.msk [vmem:[#allocation2 + $0x28] sm:$0xff] %vm279, 0.0
          %286 = vst.msk [vmem:[#allocation2 + $0x30] sm:$0xff] %vm279, 0.0
          %287 = vst.msk [vmem:[#allocation2 + $0x38] sm:$0xff] %vm279, 0.0
          %288 = vst.msk [vmem:[#allocation2 + $0x40] sm:$0xff] %vm279, 0.0
          %289 = vst.msk [vmem:[#allocation2 + $0x48] sm:$0xff] %vm279, 0.0
          %290 = vst.msk [vmem:[#allocation2 + $0x50] sm:$0xff] %vm279, 0.0
          %291 = vst.msk [vmem:[#allocation2 + $0x58] sm:$0xff] %vm279, 0.0
          %292 = vst.msk [vmem:[#allocation2 + $0x60] sm:$0xff] %vm279, 0.0
          %293 = vst.msk [vmem:[#allocation2 + $0x68] sm:$0xff] %vm279, 0.0
          %294 = vst.msk [vmem:[#allocation2 + $0x70] sm:$0xff] %vm279, 0.0
          %295 = vst.msk [vmem:[#allocation2 + $0x78] sm:$0xff] %vm279, 0.0
          %296 = vst.msk [vmem:[#allocation2 + $0x80] sm:$0xff] %vm279, 0.0
          %297 = vst.msk [vmem:[#allocation2 + $0x88] sm:$0xff] %vm279, 0.0
          %298 = vst.msk [vmem:[#allocation2 + $0x90] sm:$0xff] %vm279, 0.0
          %299 = vst.msk [vmem:[#allocation2 + $0x98] sm:$0xff] %vm279, 0.0
          %300 = vst.msk [vmem:[#allocation2 + $0xa0] sm:$0xff] %vm279, 0.0
          %301 = vst.msk [vmem:[#allocation2 + $0xa8] sm:$0xff] %vm279, 0.0
          %302 = vst.msk [vmem:[#allocation2 + $0xb0] sm:$0xff] %vm279, 0.0
          %303 = vst.msk [vmem:[#allocation2 + $0xb8] sm:$0xff] %vm279, 0.0
          %304 = vst.msk [vmem:[#allocation2 + $0xc0] sm:$0xff] %vm279, 0.0
          %305 = vst.msk [vmem:[#allocation2 + $0xc8] sm:$0xff] %vm279, 0.0
          %306 = vst.msk [vmem:[#allocation2 + $0xd0] sm:$0xff] %vm279, 0.0
          %307 = vst.msk [vmem:[#allocation2 + $0xd8] sm:$0xff] %vm279, 0.0
          %308 = vst.msk [vmem:[#allocation2 + $0xe0] sm:$0xff] %vm279, 0.0
          %309 = vst.msk [vmem:[#allocation2 + $0xe8] sm:$0xff] %vm279, 0.0
          %310 = vst.msk [vmem:[#allocation2 + $0xf0] sm:$0xff] %vm279, 0.0
          %311 = vst.msk [vmem:[#allocation2 + $0xf8] sm:$0xff] %vm279, 0.0
          %312 = vst.msk [vmem:[#allocation2 + $0x100] sm:$0xff] %vm279, 0.0
          %313 = vst.msk [vmem:[#allocation2 + $0x108] sm:$0xff] %vm279, 0.0
          %314 = vst.msk [vmem:[#allocation2 + $0x110] sm:$0xff] %vm279, 0.0
          %315 = vst.msk [vmem:[#allocation2 + $0x118] sm:$0xff] %vm279, 0.0
          %316 = vst.msk [vmem:[#allocation2 + $0x120] sm:$0xff] %vm279, 0.0
          %317 = vst.msk [vmem:[#allocation2 + $0x128] sm:$0xff] %vm279, 0.0
          %318 = vst.msk [vmem:[#allocation2 + $0x130] sm:$0xff] %vm279, 0.0
          %319 = vst.msk [vmem:[#allocation2 + $0x138] sm:$0xff] %vm279, 0.0
          %320 = vst.msk [vmem:[#allocation2 + $0x140] sm:$0xff] %vm279, 0.0
          %321 = vst.msk [vmem:[#allocation2 + $0x148] sm:$0xff] %vm279, 0.0
          %322 = vst.msk [vmem:[#allocation2 + $0x150] sm:$0xff] %vm279, 0.0
          %323 = vst.msk [vmem:[#allocation2 + $0x158] sm:$0xff] %vm279, 0.0
          %324 = vst.msk [vmem:[#allocation2 + $0x160] sm:$0xff] %vm279, 0.0
          %325 = vst.msk [vmem:[#allocation2 + $0x168] sm:$0xff] %vm279, 0.0
          %326 = vst.msk [vmem:[#allocation2 + $0x170] sm:$0xff] %vm279, 0.0
          %327 = vst.msk [vmem:[#allocation2 + $0x178] sm:$0xff] %vm279, 0.0
          %328 = vst.msk [vmem:[#allocation2 + $0x180] sm:$0xff] %vm279, 0.0
          %329 = vst.msk [vmem:[#allocation2 + $0x188] sm:$0xff] %vm279, 0.0
          %330 = vst.msk [vmem:[#allocation2 + $0x190] sm:$0xff] %vm279, 0.0
          %331 = vst.msk [vmem:[#allocation2 + $0x198] sm:$0xff] %vm279, 0.0
          %332 = vst.msk [vmem:[#allocation2 + $0x1a0] sm:$0xff] %vm279, 0.0
          %333 = vst.msk [vmem:[#allocation2 + $0x1a8] sm:$0xff] %vm279, 0.0
          %334 = vst.msk [vmem:[#allocation2 + $0x1b0] sm:$0xff] %vm279, 0.0
          %335 = vst.msk [vmem:[#allocation2 + $0x1b8] sm:$0xff] %vm279, 0.0
          %336 = vst.msk [vmem:[#allocation2 + $0x1c0] sm:$0xff] %vm279, 0.0
          %337 = vst.msk [vmem:[#allocation2 + $0x1c8] sm:$0xff] %vm279, 0.0
          %338 = vst.msk [vmem:[#allocation2 + $0x1d0] sm:$0xff] %vm279, 0.0
          %339 = vst.msk [vmem:[#allocation2 + $0x1d8] sm:$0xff] %vm279, 0.0
          %340 = vst.msk [vmem:[#allocation2 + $0x1e0] sm:$0xff] %vm279, 0.0
          %341 = vst.msk [vmem:[#allocation2 + $0x1e8] sm:$0xff] %vm279, 0.0
          %342 = vst.msk [vmem:[#allocation2 + $0x1f0] sm:$0xff] %vm279, 0.0
          %343 = vst.msk [vmem:[#allocation2 + $0x1f8] sm:$0xff] %vm279, 0.0
        $region40: #{lightgcn_propagate_layer.1} parent=31 // pred_fallthru
          _
        %s344 = smul.u32 %s24, 1024
        %s345 = sshra.s32 %s344, 3
        %s346 = sand.u32 %s344, 7
        %s347 = smul.addr %s345, 4
        %s348 = scalar_lea.vmem %s1, %s347
        %v349 = vld [vmem:[%s348] sm:$0xf]
        %v350 = vld [vmem:[%s348 + $0x4] sm:$0xf]
        %v351 = vld [vmem:[%s348 + $0x8] sm:$0xf]
        %v352 = vld [vmem:[%s348 + $0xc] sm:$0xf]
        %v353 = vld [vmem:[%s348 + $0x10] sm:$0xf]
        %v354 = vld [vmem:[%s348 + $0x14] sm:$0xf]
        %v355 = vld [vmem:[%s348 + $0x18] sm:$0xf]
        %v356 = vld [vmem:[%s348 + $0x1c] sm:$0xf]
        %v357 = vld [vmem:[%s348 + $0x20] sm:$0xf]
        %v358 = vld [vmem:[%s348 + $0x24] sm:$0xf]
        %v359 = vld [vmem:[%s348 + $0x28] sm:$0xf]
        %v360 = vld [vmem:[%s348 + $0x2c] sm:$0xf]
        %v361 = vld [vmem:[%s348 + $0x30] sm:$0xf]
        %v362 = vld [vmem:[%s348 + $0x34] sm:$0xf]
        %v363 = vld [vmem:[%s348 + $0x38] sm:$0xf]
        %v364 = vld [vmem:[%s348 + $0x3c] sm:$0xf]
        %v365 = vld [vmem:[%s348 + $0x40] sm:$0xf]
        %v366 = vld [vmem:[%s348 + $0x44] sm:$0xf]
        %v367 = vld [vmem:[%s348 + $0x48] sm:$0xf]
        %v368 = vld [vmem:[%s348 + $0x4c] sm:$0xf]
        %v369 = vld [vmem:[%s348 + $0x50] sm:$0xf]
        %v370 = vld [vmem:[%s348 + $0x54] sm:$0xf]
        %v371 = vld [vmem:[%s348 + $0x58] sm:$0xf]
        %v372 = vld [vmem:[%s348 + $0x5c] sm:$0xf]
        %v373 = vld [vmem:[%s348 + $0x60] sm:$0xf]
        %v374 = vld [vmem:[%s348 + $0x64] sm:$0xf]
        %v375 = vld [vmem:[%s348 + $0x68] sm:$0xf]
        %v376 = vld [vmem:[%s348 + $0x6c] sm:$0xf]
        %v377 = vld [vmem:[%s348 + $0x70] sm:$0xf]
        %v378 = vld [vmem:[%s348 + $0x74] sm:$0xf]
        %v379 = vld [vmem:[%s348 + $0x78] sm:$0xf]
        %v380 = vld [vmem:[%s348 + $0x7c] sm:$0xf]
        %v381 = vld [vmem:[%s348 + $0x80] sm:$0xf]
        %v382 = vld [vmem:[%s348 + $0x84] sm:$0xf]
        %v383 = vld [vmem:[%s348 + $0x88] sm:$0xf]
        %v384 = vld [vmem:[%s348 + $0x8c] sm:$0xf]
        %v385 = vld [vmem:[%s348 + $0x90] sm:$0xf]
        %v386 = vld [vmem:[%s348 + $0x94] sm:$0xf]
        %v387 = vld [vmem:[%s348 + $0x98] sm:$0xf]
        %v388 = vld [vmem:[%s348 + $0x9c] sm:$0xf]
        %v389 = vld [vmem:[%s348 + $0xa0] sm:$0xf]
        %v390 = vld [vmem:[%s348 + $0xa4] sm:$0xf]
        %v391 = vld [vmem:[%s348 + $0xa8] sm:$0xf]
        %v392 = vld [vmem:[%s348 + $0xac] sm:$0xf]
        %v393 = vld [vmem:[%s348 + $0xb0] sm:$0xf]
        %v394 = vld [vmem:[%s348 + $0xb4] sm:$0xf]
        %v395 = vld [vmem:[%s348 + $0xb8] sm:$0xf]
        %v396 = vld [vmem:[%s348 + $0xbc] sm:$0xf]
        %v397 = vld [vmem:[%s348 + $0xc0] sm:$0xf]
        %v398 = vld [vmem:[%s348 + $0xc4] sm:$0xf]
        %v399 = vld [vmem:[%s348 + $0xc8] sm:$0xf]
        %v400 = vld [vmem:[%s348 + $0xcc] sm:$0xf]
        %v401 = vld [vmem:[%s348 + $0xd0] sm:$0xf]
        %v402 = vld [vmem:[%s348 + $0xd4] sm:$0xf]
        %v403 = vld [vmem:[%s348 + $0xd8] sm:$0xf]
        %v404 = vld [vmem:[%s348 + $0xdc] sm:$0xf]
        %v405 = vld [vmem:[%s348 + $0xe0] sm:$0xf]
        %v406 = vld [vmem:[%s348 + $0xe4] sm:$0xf]
        %v407 = vld [vmem:[%s348 + $0xe8] sm:$0xf]
        %v408 = vld [vmem:[%s348 + $0xec] sm:$0xf]
        %v409 = vld [vmem:[%s348 + $0xf0] sm:$0xf]
        %v410 = vld [vmem:[%s348 + $0xf4] sm:$0xf]
        %v411 = vld [vmem:[%s348 + $0xf8] sm:$0xf]
        %v412 = vld [vmem:[%s348 + $0xfc] sm:$0xf]
        %v413 = vld [vmem:[%s348 + $0x100] sm:$0xf]
        %v414 = vld [vmem:[%s348 + $0x104] sm:$0xf]
        %v415 = vld [vmem:[%s348 + $0x108] sm:$0xf]
        %v416 = vld [vmem:[%s348 + $0x10c] sm:$0xf]
        %v417 = vld [vmem:[%s348 + $0x110] sm:$0xf]
        %v418 = vld [vmem:[%s348 + $0x114] sm:$0xf]
        %v419 = vld [vmem:[%s348 + $0x118] sm:$0xf]
        %v420 = vld [vmem:[%s348 + $0x11c] sm:$0xf]
        %v421 = vld [vmem:[%s348 + $0x120] sm:$0xf]
        %v422 = vld [vmem:[%s348 + $0x124] sm:$0xf]
        %v423 = vld [vmem:[%s348 + $0x128] sm:$0xf]
        %v424 = vld [vmem:[%s348 + $0x12c] sm:$0xf]
        %v425 = vld [vmem:[%s348 + $0x130] sm:$0xf]
        %v426 = vld [vmem:[%s348 + $0x134] sm:$0xf]
        %v427 = vld [vmem:[%s348 + $0x138] sm:$0xf]
        %v428 = vld [vmem:[%s348 + $0x13c] sm:$0xf]
        %v429 = vld [vmem:[%s348 + $0x140] sm:$0xf]
        %v430 = vld [vmem:[%s348 + $0x144] sm:$0xf]
        %v431 = vld [vmem:[%s348 + $0x148] sm:$0xf]
        %v432 = vld [vmem:[%s348 + $0x14c] sm:$0xf]
        %v433 = vld [vmem:[%s348 + $0x150] sm:$0xf]
        %v434 = vld [vmem:[%s348 + $0x154] sm:$0xf]
        %v435 = vld [vmem:[%s348 + $0x158] sm:$0xf]
        %v436 = vld [vmem:[%s348 + $0x15c] sm:$0xf]
        %v437 = vld [vmem:[%s348 + $0x160] sm:$0xf]
        %v438 = vld [vmem:[%s348 + $0x164] sm:$0xf]
        %v439 = vld [vmem:[%s348 + $0x168] sm:$0xf]
        %v440 = vld [vmem:[%s348 + $0x16c] sm:$0xf]
        %v441 = vld [vmem:[%s348 + $0x170] sm:$0xf]
        %v442 = vld [vmem:[%s348 + $0x174] sm:$0xf]
        %v443 = vld [vmem:[%s348 + $0x178] sm:$0xf]
        %v444 = vld [vmem:[%s348 + $0x17c] sm:$0xf]
        %v445 = vld [vmem:[%s348 + $0x180] sm:$0xf]
        %v446 = vld [vmem:[%s348 + $0x184] sm:$0xf]
        %v447 = vld [vmem:[%s348 + $0x188] sm:$0xf]
        %v448 = vld [vmem:[%s348 + $0x18c] sm:$0xf]
        %v449 = vld [vmem:[%s348 + $0x190] sm:$0xf]
        %v450 = vld [vmem:[%s348 + $0x194] sm:$0xf]
        %v451 = vld [vmem:[%s348 + $0x198] sm:$0xf]
        %v452 = vld [vmem:[%s348 + $0x19c] sm:$0xf]
        %v453 = vld [vmem:[%s348 + $0x1a0] sm:$0xf]
        %v454 = vld [vmem:[%s348 + $0x1a4] sm:$0xf]
        %v455 = vld [vmem:[%s348 + $0x1a8] sm:$0xf]
        %v456 = vld [vmem:[%s348 + $0x1ac] sm:$0xf]
        %v457 = vld [vmem:[%s348 + $0x1b0] sm:$0xf]
        %v458 = vld [vmem:[%s348 + $0x1b4] sm:$0xf]
        %v459 = vld [vmem:[%s348 + $0x1b8] sm:$0xf]
        %v460 = vld [vmem:[%s348 + $0x1bc] sm:$0xf]
        %v461 = vld [vmem:[%s348 + $0x1c0] sm:$0xf]
        %v462 = vld [vmem:[%s348 + $0x1c4] sm:$0xf]
        %v463 = vld [vmem:[%s348 + $0x1c8] sm:$0xf]
        %v464 = vld [vmem:[%s348 + $0x1cc] sm:$0xf]
        %v465 = vld [vmem:[%s348 + $0x1d0] sm:$0xf]
        %v466 = vld [vmem:[%s348 + $0x1d4] sm:$0xf]
        %v467 = vld [vmem:[%s348 + $0x1d8] sm:$0xf]
        %v468 = vld [vmem:[%s348 + $0x1dc] sm:$0xf]
        %v469 = vld [vmem:[%s348 + $0x1e0] sm:$0xf]
        %v470 = vld [vmem:[%s348 + $0x1e4] sm:$0xf]
        %v471 = vld [vmem:[%s348 + $0x1e8] sm:$0xf]
        %v472 = vld [vmem:[%s348 + $0x1ec] sm:$0xf]
        %v473 = vld [vmem:[%s348 + $0x1f0] sm:$0xf]
        %v474 = vld [vmem:[%s348 + $0x1f4] sm:$0xf]
        %v475 = vld [vmem:[%s348 + $0x1f8] sm:$0xf]
        %v476 = vld [vmem:[%s348 + $0x1fc] sm:$0xf]
        %v477 = vld [vmem:[#allocation2] sm:$0xff]
        %v478 = vld [vmem:[#allocation2 + $0x8] sm:$0xff]
        %v479 = vld [vmem:[#allocation2 + $0x10] sm:$0xff]
        %v480 = vld [vmem:[#allocation2 + $0x18] sm:$0xff]
        %v481 = vld [vmem:[#allocation2 + $0x20] sm:$0xff]
        %v482 = vld [vmem:[#allocation2 + $0x28] sm:$0xff]
        %v483 = vld [vmem:[#allocation2 + $0x30] sm:$0xff]
        %v484 = vld [vmem:[#allocation2 + $0x38] sm:$0xff]
        %v485 = vld [vmem:[#allocation2 + $0x40] sm:$0xff]
        %v486 = vld [vmem:[#allocation2 + $0x48] sm:$0xff]
        %v487 = vld [vmem:[#allocation2 + $0x50] sm:$0xff]
        %v488 = vld [vmem:[#allocation2 + $0x58] sm:$0xff]
        %v489 = vld [vmem:[#allocation2 + $0x60] sm:$0xff]
        %v490 = vld [vmem:[#allocation2 + $0x68] sm:$0xff]
        %v491 = vld [vmem:[#allocation2 + $0x70] sm:$0xff]
        %v492 = vld [vmem:[#allocation2 + $0x78] sm:$0xff]
        %v493 = vld [vmem:[#allocation2 + $0x80] sm:$0xff]
        %v494 = vld [vmem:[#allocation2 + $0x88] sm:$0xff]
        %v495 = vld [vmem:[#allocation2 + $0x90] sm:$0xff]
        %v496 = vld [vmem:[#allocation2 + $0x98] sm:$0xff]
        %v497 = vld [vmem:[#allocation2 + $0xa0] sm:$0xff]
        %v498 = vld [vmem:[#allocation2 + $0xa8] sm:$0xff]
        %v499 = vld [vmem:[#allocation2 + $0xb0] sm:$0xff]
        %v500 = vld [vmem:[#allocation2 + $0xb8] sm:$0xff]
        %v501 = vld [vmem:[#allocation2 + $0xc0] sm:$0xff]
        %v502 = vld [vmem:[#allocation2 + $0xc8] sm:$0xff]
        %v503 = vld [vmem:[#allocation2 + $0xd0] sm:$0xff]
        %v504 = vld [vmem:[#allocation2 + $0xd8] sm:$0xff]
        %v505 = vld [vmem:[#allocation2 + $0xe0] sm:$0xff]
        %v506 = vld [vmem:[#allocation2 + $0xe8] sm:$0xff]
        %v507 = vld [vmem:[#allocation2 + $0xf0] sm:$0xff]
        %v508 = vld [vmem:[#allocation2 + $0xf8] sm:$0xff]
        %v509 = vld [vmem:[#allocation2 + $0x100] sm:$0xff]
        %v510 = vld [vmem:[#allocation2 + $0x108] sm:$0xff]
        %v511 = vld [vmem:[#allocation2 + $0x110] sm:$0xff]
        %v512 = vld [vmem:[#allocation2 + $0x118] sm:$0xff]
        %v513 = vld [vmem:[#allocation2 + $0x120] sm:$0xff]
        %v514 = vld [vmem:[#allocation2 + $0x128] sm:$0xff]
        %v515 = vld [vmem:[#allocation2 + $0x130] sm:$0xff]
        %v516 = vld [vmem:[#allocation2 + $0x138] sm:$0xff]
        %v517 = vld [vmem:[#allocation2 + $0x140] sm:$0xff]
        %v518 = vld [vmem:[#allocation2 + $0x148] sm:$0xff]
        %v519 = vld [vmem:[#allocation2 + $0x150] sm:$0xff]
        %v520 = vld [vmem:[#allocation2 + $0x158] sm:$0xff]
        %v521 = vld [vmem:[#allocation2 + $0x160] sm:$0xff]
        %v522 = vld [vmem:[#allocation2 + $0x168] sm:$0xff]
        %v523 = vld [vmem:[#allocation2 + $0x170] sm:$0xff]
        %v524 = vld [vmem:[#allocation2 + $0x178] sm:$0xff]
        %v525 = vld [vmem:[#allocation2 + $0x180] sm:$0xff]
        %v526 = vld [vmem:[#allocation2 + $0x188] sm:$0xff]
        %v527 = vld [vmem:[#allocation2 + $0x190] sm:$0xff]
        %v528 = vld [vmem:[#allocation2 + $0x198] sm:$0xff]
        %v529 = vld [vmem:[#allocation2 + $0x1a0] sm:$0xff]
        %v530 = vld [vmem:[#allocation2 + $0x1a8] sm:$0xff]
        %v531 = vld [vmem:[#allocation2 + $0x1b0] sm:$0xff]
        %v532 = vld [vmem:[#allocation2 + $0x1b8] sm:$0xff]
        %v533 = vld [vmem:[#allocation2 + $0x1c0] sm:$0xff]
        %v534 = vld [vmem:[#allocation2 + $0x1c8] sm:$0xff]
        %v535 = vld [vmem:[#allocation2 + $0x1d0] sm:$0xff]
        %v536 = vld [vmem:[#allocation2 + $0x1d8] sm:$0xff]
        %v537 = vld [vmem:[#allocation2 + $0x1e0] sm:$0xff]
        %v538 = vld [vmem:[#allocation2 + $0x1e8] sm:$0xff]
        %v539 = vld [vmem:[#allocation2 + $0x1f0] sm:$0xff]
        %v540 = vld [vmem:[#allocation2 + $0x1f8] sm:$0xff]
        %v541 = vld [vmem:[%s219] sm:$0xff]
        %v542 = vld [vmem:[%s219 + $0x8] sm:$0xff]
        %v543 = vld [vmem:[%s219 + $0x10] sm:$0xff]
        %v544 = vld [vmem:[%s219 + $0x18] sm:$0xff]
        %v545 = vld [vmem:[%s219 + $0x20] sm:$0xff]
        %v546 = vld [vmem:[%s219 + $0x28] sm:$0xff]
        %v547 = vld [vmem:[%s219 + $0x30] sm:$0xff]
        %v548 = vld [vmem:[%s219 + $0x38] sm:$0xff]
        %v549 = vld [vmem:[%s219 + $0x40] sm:$0xff]
        %v550 = vld [vmem:[%s219 + $0x48] sm:$0xff]
        %v551 = vld [vmem:[%s219 + $0x50] sm:$0xff]
        %v552 = vld [vmem:[%s219 + $0x58] sm:$0xff]
        %v553 = vld [vmem:[%s219 + $0x60] sm:$0xff]
        %v554 = vld [vmem:[%s219 + $0x68] sm:$0xff]
        %v555 = vld [vmem:[%s219 + $0x70] sm:$0xff]
        %v556 = vld [vmem:[%s219 + $0x78] sm:$0xff]
        %v557 = vld [vmem:[%s219 + $0x80] sm:$0xff]
        %v558 = vld [vmem:[%s219 + $0x88] sm:$0xff]
        %v559 = vld [vmem:[%s219 + $0x90] sm:$0xff]
        %v560 = vld [vmem:[%s219 + $0x98] sm:$0xff]
        %v561 = vld [vmem:[%s219 + $0xa0] sm:$0xff]
        %v562 = vld [vmem:[%s219 + $0xa8] sm:$0xff]
        %v563 = vld [vmem:[%s219 + $0xb0] sm:$0xff]
        %v564 = vld [vmem:[%s219 + $0xb8] sm:$0xff]
        %v565 = vld [vmem:[%s219 + $0xc0] sm:$0xff]
        %v566 = vld [vmem:[%s219 + $0xc8] sm:$0xff]
        %v567 = vld [vmem:[%s219 + $0xd0] sm:$0xff]
        %v568 = vld [vmem:[%s219 + $0xd8] sm:$0xff]
        %v569 = vld [vmem:[%s219 + $0xe0] sm:$0xff]
        %v570 = vld [vmem:[%s219 + $0xe8] sm:$0xff]
        %v571 = vld [vmem:[%s219 + $0xf0] sm:$0xff]
        %v572 = vld [vmem:[%s219 + $0xf8] sm:$0xff]
        %v573 = vld [vmem:[%s219 + $0x100] sm:$0xff]
        %v574 = vld [vmem:[%s219 + $0x108] sm:$0xff]
        %v575 = vld [vmem:[%s219 + $0x110] sm:$0xff]
        %v576 = vld [vmem:[%s219 + $0x118] sm:$0xff]
        %v577 = vld [vmem:[%s219 + $0x120] sm:$0xff]
        %v578 = vld [vmem:[%s219 + $0x128] sm:$0xff]
        %v579 = vld [vmem:[%s219 + $0x130] sm:$0xff]
        %v580 = vld [vmem:[%s219 + $0x138] sm:$0xff]
        %v581 = vld [vmem:[%s219 + $0x140] sm:$0xff]
        %v582 = vld [vmem:[%s219 + $0x148] sm:$0xff]
        %v583 = vld [vmem:[%s219 + $0x150] sm:$0xff]
        %v584 = vld [vmem:[%s219 + $0x158] sm:$0xff]
        %v585 = vld [vmem:[%s219 + $0x160] sm:$0xff]
        %v586 = vld [vmem:[%s219 + $0x168] sm:$0xff]
        %v587 = vld [vmem:[%s219 + $0x170] sm:$0xff]
        %v588 = vld [vmem:[%s219 + $0x178] sm:$0xff]
        %v589 = vld [vmem:[%s219 + $0x180] sm:$0xff]
        %v590 = vld [vmem:[%s219 + $0x188] sm:$0xff]
        %v591 = vld [vmem:[%s219 + $0x190] sm:$0xff]
        %v592 = vld [vmem:[%s219 + $0x198] sm:$0xff]
        %v593 = vld [vmem:[%s219 + $0x1a0] sm:$0xff]
        %v594 = vld [vmem:[%s219 + $0x1a8] sm:$0xff]
        %v595 = vld [vmem:[%s219 + $0x1b0] sm:$0xff]
        %v596 = vld [vmem:[%s219 + $0x1b8] sm:$0xff]
        %v597 = vld [vmem:[%s219 + $0x1c0] sm:$0xff]
        %v598 = vld [vmem:[%s219 + $0x1c8] sm:$0xff]
        %v599 = vld [vmem:[%s219 + $0x1d0] sm:$0xff]
        %v600 = vld [vmem:[%s219 + $0x1d8] sm:$0xff]
        %v601 = vld [vmem:[%s219 + $0x1e0] sm:$0xff]
        %v602 = vld [vmem:[%s219 + $0x1e8] sm:$0xff]
        %v603 = vld [vmem:[%s219 + $0x1f0] sm:$0xff]
        %v604 = vld [vmem:[%s219 + $0x1f8] sm:$0xff]
        %v605 = vld [vmem:[%s219 + $0x200] sm:$0xff]
        %v606 = vld [vmem:[%s219 + $0x208] sm:$0xff]
        %v607 = vld [vmem:[%s219 + $0x210] sm:$0xff]
        %v608 = vld [vmem:[%s219 + $0x218] sm:$0xff]
        %v609 = vld [vmem:[%s219 + $0x220] sm:$0xff]
        %v610 = vld [vmem:[%s219 + $0x228] sm:$0xff]
        %v611 = vld [vmem:[%s219 + $0x230] sm:$0xff]
        %v612 = vld [vmem:[%s219 + $0x238] sm:$0xff]
        %v613 = vld [vmem:[%s219 + $0x240] sm:$0xff]
        %v614 = vld [vmem:[%s219 + $0x248] sm:$0xff]
        %v615 = vld [vmem:[%s219 + $0x250] sm:$0xff]
        %v616 = vld [vmem:[%s219 + $0x258] sm:$0xff]
        %v617 = vld [vmem:[%s219 + $0x260] sm:$0xff]
        %v618 = vld [vmem:[%s219 + $0x268] sm:$0xff]
        %v619 = vld [vmem:[%s219 + $0x270] sm:$0xff]
        %v620 = vld [vmem:[%s219 + $0x278] sm:$0xff]
        %v621 = vld [vmem:[%s219 + $0x280] sm:$0xff]
        %v622 = vld [vmem:[%s219 + $0x288] sm:$0xff]
        %v623 = vld [vmem:[%s219 + $0x290] sm:$0xff]
        %v624 = vld [vmem:[%s219 + $0x298] sm:$0xff]
        %v625 = vld [vmem:[%s219 + $0x2a0] sm:$0xff]
        %v626 = vld [vmem:[%s219 + $0x2a8] sm:$0xff]
        %v627 = vld [vmem:[%s219 + $0x2b0] sm:$0xff]
        %v628 = vld [vmem:[%s219 + $0x2b8] sm:$0xff]
        %v629 = vld [vmem:[%s219 + $0x2c0] sm:$0xff]
        %v630 = vld [vmem:[%s219 + $0x2c8] sm:$0xff]
        %v631 = vld [vmem:[%s219 + $0x2d0] sm:$0xff]
        %v632 = vld [vmem:[%s219 + $0x2d8] sm:$0xff]
        %v633 = vld [vmem:[%s219 + $0x2e0] sm:$0xff]
        %v634 = vld [vmem:[%s219 + $0x2e8] sm:$0xff]
        %v635 = vld [vmem:[%s219 + $0x2f0] sm:$0xff]
        %v636 = vld [vmem:[%s219 + $0x2f8] sm:$0xff]
        %v637 = vld [vmem:[%s219 + $0x300] sm:$0xff]
        %v638 = vld [vmem:[%s219 + $0x308] sm:$0xff]
        %v639 = vld [vmem:[%s219 + $0x310] sm:$0xff]
        %v640 = vld [vmem:[%s219 + $0x318] sm:$0xff]
        %v641 = vld [vmem:[%s219 + $0x320] sm:$0xff]
        %v642 = vld [vmem:[%s219 + $0x328] sm:$0xff]
        %v643 = vld [vmem:[%s219 + $0x330] sm:$0xff]
        %v644 = vld [vmem:[%s219 + $0x338] sm:$0xff]
        %v645 = vld [vmem:[%s219 + $0x340] sm:$0xff]
        %v646 = vld [vmem:[%s219 + $0x348] sm:$0xff]
        %v647 = vld [vmem:[%s219 + $0x350] sm:$0xff]
        %v648 = vld [vmem:[%s219 + $0x358] sm:$0xff]
        %v649 = vld [vmem:[%s219 + $0x360] sm:$0xff]
        %v650 = vld [vmem:[%s219 + $0x368] sm:$0xff]
        %v651 = vld [vmem:[%s219 + $0x370] sm:$0xff]
        %v652 = vld [vmem:[%s219 + $0x378] sm:$0xff]
        %v653 = vld [vmem:[%s219 + $0x380] sm:$0xff]
        %v654 = vld [vmem:[%s219 + $0x388] sm:$0xff]
        %v655 = vld [vmem:[%s219 + $0x390] sm:$0xff]
        %v656 = vld [vmem:[%s219 + $0x398] sm:$0xff]
        %v657 = vld [vmem:[%s219 + $0x3a0] sm:$0xff]
        %v658 = vld [vmem:[%s219 + $0x3a8] sm:$0xff]
        %v659 = vld [vmem:[%s219 + $0x3b0] sm:$0xff]
        %v660 = vld [vmem:[%s219 + $0x3b8] sm:$0xff]
        %v661 = vld [vmem:[%s219 + $0x3c0] sm:$0xff]
        %v662 = vld [vmem:[%s219 + $0x3c8] sm:$0xff]
        %v663 = vld [vmem:[%s219 + $0x3d0] sm:$0xff]
        %v664 = vld [vmem:[%s219 + $0x3d8] sm:$0xff]
        %v665 = vld [vmem:[%s219 + $0x3e0] sm:$0xff]
        %v666 = vld [vmem:[%s219 + $0x3e8] sm:$0xff]
        %v667 = vld [vmem:[%s219 + $0x3f0] sm:$0xff]
        %v668 = vld [vmem:[%s219 + $0x3f8] sm:$0xff]
        %v669 = vld [vmem:[%s219 + $0x400] sm:$0xff]
        %v670 = vld [vmem:[%s219 + $0x408] sm:$0xff]
        %v671 = vld [vmem:[%s219 + $0x410] sm:$0xff]
        %v672 = vld [vmem:[%s219 + $0x418] sm:$0xff]
        %v673 = vld [vmem:[%s219 + $0x420] sm:$0xff]
        %v674 = vld [vmem:[%s219 + $0x428] sm:$0xff]
        %v675 = vld [vmem:[%s219 + $0x430] sm:$0xff]
        %v676 = vld [vmem:[%s219 + $0x438] sm:$0xff]
        %v677 = vld [vmem:[%s219 + $0x440] sm:$0xff]
        %v678 = vld [vmem:[%s219 + $0x448] sm:$0xff]
        %v679 = vld [vmem:[%s219 + $0x450] sm:$0xff]
        %v680 = vld [vmem:[%s219 + $0x458] sm:$0xff]
        %v681 = vld [vmem:[%s219 + $0x460] sm:$0xff]
        %v682 = vld [vmem:[%s219 + $0x468] sm:$0xff]
        %v683 = vld [vmem:[%s219 + $0x470] sm:$0xff]
        %v684 = vld [vmem:[%s219 + $0x478] sm:$0xff]
        %v685 = vld [vmem:[%s219 + $0x480] sm:$0xff]
        %v686 = vld [vmem:[%s219 + $0x488] sm:$0xff]
        %v687 = vld [vmem:[%s219 + $0x490] sm:$0xff]
        %v688 = vld [vmem:[%s219 + $0x498] sm:$0xff]
        %v689 = vld [vmem:[%s219 + $0x4a0] sm:$0xff]
        %v690 = vld [vmem:[%s219 + $0x4a8] sm:$0xff]
        %v691 = vld [vmem:[%s219 + $0x4b0] sm:$0xff]
        %v692 = vld [vmem:[%s219 + $0x4b8] sm:$0xff]
        %v693 = vld [vmem:[%s219 + $0x4c0] sm:$0xff]
        %v694 = vld [vmem:[%s219 + $0x4c8] sm:$0xff]
        %v695 = vld [vmem:[%s219 + $0x4d0] sm:$0xff]
        %v696 = vld [vmem:[%s219 + $0x4d8] sm:$0xff]
        %v697 = vld [vmem:[%s219 + $0x4e0] sm:$0xff]
        %v698 = vld [vmem:[%s219 + $0x4e8] sm:$0xff]
        %v699 = vld [vmem:[%s219 + $0x4f0] sm:$0xff]
        %v700 = vld [vmem:[%s219 + $0x4f8] sm:$0xff]
        %v701 = vld [vmem:[%s219 + $0x500] sm:$0xff]
        %v702 = vld [vmem:[%s219 + $0x508] sm:$0xff]
        %v703 = vld [vmem:[%s219 + $0x510] sm:$0xff]
        %v704 = vld [vmem:[%s219 + $0x518] sm:$0xff]
        %v705 = vld [vmem:[%s219 + $0x520] sm:$0xff]
        %v706 = vld [vmem:[%s219 + $0x528] sm:$0xff]
        %v707 = vld [vmem:[%s219 + $0x530] sm:$0xff]
        %v708 = vld [vmem:[%s219 + $0x538] sm:$0xff]
        %v709 = vld [vmem:[%s219 + $0x540] sm:$0xff]
        %v710 = vld [vmem:[%s219 + $0x548] sm:$0xff]
        %v711 = vld [vmem:[%s219 + $0x550] sm:$0xff]
        %v712 = vld [vmem:[%s219 + $0x558] sm:$0xff]
        %v713 = vld [vmem:[%s219 + $0x560] sm:$0xff]
        %v714 = vld [vmem:[%s219 + $0x568] sm:$0xff]
        %v715 = vld [vmem:[%s219 + $0x570] sm:$0xff]
        %v716 = vld [vmem:[%s219 + $0x578] sm:$0xff]
        %v717 = vld [vmem:[%s219 + $0x580] sm:$0xff]
        %v718 = vld [vmem:[%s219 + $0x588] sm:$0xff]
        %v719 = vld [vmem:[%s219 + $0x590] sm:$0xff]
        %v720 = vld [vmem:[%s219 + $0x598] sm:$0xff]
        %v721 = vld [vmem:[%s219 + $0x5a0] sm:$0xff]
        %v722 = vld [vmem:[%s219 + $0x5a8] sm:$0xff]
        %v723 = vld [vmem:[%s219 + $0x5b0] sm:$0xff]
        %v724 = vld [vmem:[%s219 + $0x5b8] sm:$0xff]
        %v725 = vld [vmem:[%s219 + $0x5c0] sm:$0xff]
        %v726 = vld [vmem:[%s219 + $0x5c8] sm:$0xff]
        %v727 = vld [vmem:[%s219 + $0x5d0] sm:$0xff]
        %v728 = vld [vmem:[%s219 + $0x5d8] sm:$0xff]
        %v729 = vld [vmem:[%s219 + $0x5e0] sm:$0xff]
        %v730 = vld [vmem:[%s219 + $0x5e8] sm:$0xff]
        %v731 = vld [vmem:[%s219 + $0x5f0] sm:$0xff]
        %v732 = vld [vmem:[%s219 + $0x5f8] sm:$0xff]
        %v733 = vld [vmem:[%s219 + $0x600] sm:$0xff]
        %v734 = vld [vmem:[%s219 + $0x608] sm:$0xff]
        %v735 = vld [vmem:[%s219 + $0x610] sm:$0xff]
        %v736 = vld [vmem:[%s219 + $0x618] sm:$0xff]
        %v737 = vld [vmem:[%s219 + $0x620] sm:$0xff]
        %v738 = vld [vmem:[%s219 + $0x628] sm:$0xff]
        %v739 = vld [vmem:[%s219 + $0x630] sm:$0xff]
        %v740 = vld [vmem:[%s219 + $0x638] sm:$0xff]
        %v741 = vld [vmem:[%s219 + $0x640] sm:$0xff]
        %v742 = vld [vmem:[%s219 + $0x648] sm:$0xff]
        %v743 = vld [vmem:[%s219 + $0x650] sm:$0xff]
        %v744 = vld [vmem:[%s219 + $0x658] sm:$0xff]
        %v745 = vld [vmem:[%s219 + $0x660] sm:$0xff]
        %v746 = vld [vmem:[%s219 + $0x668] sm:$0xff]
        %v747 = vld [vmem:[%s219 + $0x670] sm:$0xff]
        %v748 = vld [vmem:[%s219 + $0x678] sm:$0xff]
        %v749 = vld [vmem:[%s219 + $0x680] sm:$0xff]
        %v750 = vld [vmem:[%s219 + $0x688] sm:$0xff]
        %v751 = vld [vmem:[%s219 + $0x690] sm:$0xff]
        %v752 = vld [vmem:[%s219 + $0x698] sm:$0xff]
        %v753 = vld [vmem:[%s219 + $0x6a0] sm:$0xff]
        %v754 = vld [vmem:[%s219 + $0x6a8] sm:$0xff]
        %v755 = vld [vmem:[%s219 + $0x6b0] sm:$0xff]
        %v756 = vld [vmem:[%s219 + $0x6b8] sm:$0xff]
        %v757 = vld [vmem:[%s219 + $0x6c0] sm:$0xff]
        %v758 = vld [vmem:[%s219 + $0x6c8] sm:$0xff]
        %v759 = vld [vmem:[%s219 + $0x6d0] sm:$0xff]
        %v760 = vld [vmem:[%s219 + $0x6d8] sm:$0xff]
        %v761 = vld [vmem:[%s219 + $0x6e0] sm:$0xff]
        %v762 = vld [vmem:[%s219 + $0x6e8] sm:$0xff]
        %v763 = vld [vmem:[%s219 + $0x6f0] sm:$0xff]
        %v764 = vld [vmem:[%s219 + $0x6f8] sm:$0xff]
        %v765 = vld [vmem:[%s219 + $0x700] sm:$0xff]
        %v766 = vld [vmem:[%s219 + $0x708] sm:$0xff]
        %v767 = vld [vmem:[%s219 + $0x710] sm:$0xff]
        %v768 = vld [vmem:[%s219 + $0x718] sm:$0xff]
        %v769 = vld [vmem:[%s219 + $0x720] sm:$0xff]
        %v770 = vld [vmem:[%s219 + $0x728] sm:$0xff]
        %v771 = vld [vmem:[%s219 + $0x730] sm:$0xff]
        %v772 = vld [vmem:[%s219 + $0x738] sm:$0xff]
        %v773 = vld [vmem:[%s219 + $0x740] sm:$0xff]
        %v774 = vld [vmem:[%s219 + $0x748] sm:$0xff]
        %v775 = vld [vmem:[%s219 + $0x750] sm:$0xff]
        %v776 = vld [vmem:[%s219 + $0x758] sm:$0xff]
        %v777 = vld [vmem:[%s219 + $0x760] sm:$0xff]
        %v778 = vld [vmem:[%s219 + $0x768] sm:$0xff]
        %v779 = vld [vmem:[%s219 + $0x770] sm:$0xff]
        %v780 = vld [vmem:[%s219 + $0x778] sm:$0xff]
        %v781 = vld [vmem:[%s219 + $0x780] sm:$0xff]
        %v782 = vld [vmem:[%s219 + $0x788] sm:$0xff]
        %v783 = vld [vmem:[%s219 + $0x790] sm:$0xff]
        %v784 = vld [vmem:[%s219 + $0x798] sm:$0xff]
        %v785 = vld [vmem:[%s219 + $0x7a0] sm:$0xff]
        %v786 = vld [vmem:[%s219 + $0x7a8] sm:$0xff]
        %v787 = vld [vmem:[%s219 + $0x7b0] sm:$0xff]
        %v788 = vld [vmem:[%s219 + $0x7b8] sm:$0xff]
        %v789 = vld [vmem:[%s219 + $0x7c0] sm:$0xff]
        %v790 = vld [vmem:[%s219 + $0x7c8] sm:$0xff]
        %v791 = vld [vmem:[%s219 + $0x7d0] sm:$0xff]
        %v792 = vld [vmem:[%s219 + $0x7d8] sm:$0xff]
        %v793 = vld [vmem:[%s219 + $0x7e0] sm:$0xff]
        %v794 = vld [vmem:[%s219 + $0x7e8] sm:$0xff]
        %v795 = vld [vmem:[%s219 + $0x7f0] sm:$0xff]
        %v796 = vld [vmem:[%s219 + $0x7f8] sm:$0xff]
        %v1053 = vunpack.c.l.b16 %v541
        %v1054 = vunpack.c.h.b16 %v541
        %v1055 = vunpack.c.l.b16 %v542
        %v1056 = vunpack.c.h.b16 %v542
        %v1057 = vunpack.c.l.b16 %v543
        %v1058 = vunpack.c.h.b16 %v543
        %v1059 = vunpack.c.l.b16 %v544
        %v1060 = vunpack.c.h.b16 %v544
        %v1061 = vunpack.c.l.b16 %v545
        %v1062 = vunpack.c.h.b16 %v545
        %v1063 = vunpack.c.l.b16 %v546
        %v1064 = vunpack.c.h.b16 %v546
        %v1065 = vunpack.c.l.b16 %v547
        %v1066 = vunpack.c.h.b16 %v547
        %v1067 = vunpack.c.l.b16 %v548
        %v1068 = vunpack.c.h.b16 %v548
        %v1069 = vunpack.c.l.b16 %v549
        %v1070 = vunpack.c.h.b16 %v549
        %v1071 = vunpack.c.l.b16 %v550
        %v1072 = vunpack.c.h.b16 %v550
        %v1073 = vunpack.c.l.b16 %v551
        %v1074 = vunpack.c.h.b16 %v551
        %v1075 = vunpack.c.l.b16 %v552
        %v1076 = vunpack.c.h.b16 %v552
        %v1077 = vunpack.c.l.b16 %v553
        %v1078 = vunpack.c.h.b16 %v553
        %v1079 = vunpack.c.l.b16 %v554
        %v1080 = vunpack.c.h.b16 %v554
        %v1081 = vunpack.c.l.b16 %v555
        %v1082 = vunpack.c.h.b16 %v555
        %v1083 = vunpack.c.l.b16 %v556
        %v1084 = vunpack.c.h.b16 %v556
        %v1085 = vunpack.c.l.b16 %v557
        %v1086 = vunpack.c.h.b16 %v557
        %v1087 = vunpack.c.l.b16 %v558
        %v1088 = vunpack.c.h.b16 %v558
        %v1089 = vunpack.c.l.b16 %v559
        %v1090 = vunpack.c.h.b16 %v559
        %v1091 = vunpack.c.l.b16 %v560
        %v1092 = vunpack.c.h.b16 %v560
        %v1093 = vunpack.c.l.b16 %v561
        %v1094 = vunpack.c.h.b16 %v561
        %v1095 = vunpack.c.l.b16 %v562
        %v1096 = vunpack.c.h.b16 %v562
        %v1097 = vunpack.c.l.b16 %v563
        %v1098 = vunpack.c.h.b16 %v563
        %v1099 = vunpack.c.l.b16 %v564
        %v1100 = vunpack.c.h.b16 %v564
        %v1101 = vunpack.c.l.b16 %v565
        %v1102 = vunpack.c.h.b16 %v565
        %v1103 = vunpack.c.l.b16 %v566
        %v1104 = vunpack.c.h.b16 %v566
        %v1105 = vunpack.c.l.b16 %v567
        %v1106 = vunpack.c.h.b16 %v567
        %v1107 = vunpack.c.l.b16 %v568
        %v1108 = vunpack.c.h.b16 %v568
        %v1109 = vunpack.c.l.b16 %v569
        %v1110 = vunpack.c.h.b16 %v569
        %v1111 = vunpack.c.l.b16 %v570
        %v1112 = vunpack.c.h.b16 %v570
        %v1113 = vunpack.c.l.b16 %v571
        %v1114 = vunpack.c.h.b16 %v571
        %v1115 = vunpack.c.l.b16 %v572
        %v1116 = vunpack.c.h.b16 %v572
        %v1117 = vunpack.c.l.b16 %v573
        %v1118 = vunpack.c.h.b16 %v573
        %v1119 = vunpack.c.l.b16 %v574
        %v1120 = vunpack.c.h.b16 %v574
        %v1121 = vunpack.c.l.b16 %v575
        %v1122 = vunpack.c.h.b16 %v575
        %v1123 = vunpack.c.l.b16 %v576
        %v1124 = vunpack.c.h.b16 %v576
        %v1125 = vunpack.c.l.b16 %v577
        %v1126 = vunpack.c.h.b16 %v577
        %v1127 = vunpack.c.l.b16 %v578
        %v1128 = vunpack.c.h.b16 %v578
        %v1129 = vunpack.c.l.b16 %v579
        %v1130 = vunpack.c.h.b16 %v579
        %v1131 = vunpack.c.l.b16 %v580
        %v1132 = vunpack.c.h.b16 %v580
        %v1133 = vunpack.c.l.b16 %v581
        %v1134 = vunpack.c.h.b16 %v581
        %v1135 = vunpack.c.l.b16 %v582
        %v1136 = vunpack.c.h.b16 %v582
        %v1137 = vunpack.c.l.b16 %v583
        %v1138 = vunpack.c.h.b16 %v583
        %v1139 = vunpack.c.l.b16 %v584
        %v1140 = vunpack.c.h.b16 %v584
        %v1141 = vunpack.c.l.b16 %v585
        %v1142 = vunpack.c.h.b16 %v585
        %v1143 = vunpack.c.l.b16 %v586
        %v1144 = vunpack.c.h.b16 %v586
        %v1145 = vunpack.c.l.b16 %v587
        %v1146 = vunpack.c.h.b16 %v587
        %v1147 = vunpack.c.l.b16 %v588
        %v1148 = vunpack.c.h.b16 %v588
        %v1149 = vunpack.c.l.b16 %v589
        %v1150 = vunpack.c.h.b16 %v589
        %v1151 = vunpack.c.l.b16 %v590
        %v1152 = vunpack.c.h.b16 %v590
        %v1153 = vunpack.c.l.b16 %v591
        %v1154 = vunpack.c.h.b16 %v591
        %v1155 = vunpack.c.l.b16 %v592
        %v1156 = vunpack.c.h.b16 %v592
        %v1157 = vunpack.c.l.b16 %v593
        %v1158 = vunpack.c.h.b16 %v593
        %v1159 = vunpack.c.l.b16 %v594
        %v1160 = vunpack.c.h.b16 %v594
        %v1161 = vunpack.c.l.b16 %v595
        %v1162 = vunpack.c.h.b16 %v595
        %v1163 = vunpack.c.l.b16 %v596
        %v1164 = vunpack.c.h.b16 %v596
        %v1165 = vunpack.c.l.b16 %v597
        %v1166 = vunpack.c.h.b16 %v597
        %v1167 = vunpack.c.l.b16 %v598
        %v1168 = vunpack.c.h.b16 %v598
        %v1169 = vunpack.c.l.b16 %v599
        %v1170 = vunpack.c.h.b16 %v599
        %v1171 = vunpack.c.l.b16 %v600
        %v1172 = vunpack.c.h.b16 %v600
        %v1173 = vunpack.c.l.b16 %v601
        %v1174 = vunpack.c.h.b16 %v601
        %v1175 = vunpack.c.l.b16 %v602
        %v1176 = vunpack.c.h.b16 %v602
        %v1177 = vunpack.c.l.b16 %v603
        %v1178 = vunpack.c.h.b16 %v603
        %v1179 = vunpack.c.l.b16 %v604
        %v1180 = vunpack.c.h.b16 %v604
        %v1181 = vunpack.c.l.b16 %v605
        %v1182 = vunpack.c.h.b16 %v605
        %v1183 = vunpack.c.l.b16 %v606
        %v1184 = vunpack.c.h.b16 %v606
        %v1185 = vunpack.c.l.b16 %v607
        %v1186 = vunpack.c.h.b16 %v607
        %v1187 = vunpack.c.l.b16 %v608
        %v1188 = vunpack.c.h.b16 %v608
        %v1189 = vunpack.c.l.b16 %v609
        %v1190 = vunpack.c.h.b16 %v609
        %v1191 = vunpack.c.l.b16 %v610
        %v1192 = vunpack.c.h.b16 %v610
        %v1193 = vunpack.c.l.b16 %v611
        %v1194 = vunpack.c.h.b16 %v611
        %v1195 = vunpack.c.l.b16 %v612
        %v1196 = vunpack.c.h.b16 %v612
        %v1197 = vunpack.c.l.b16 %v613
        %v1198 = vunpack.c.h.b16 %v613
        %v1199 = vunpack.c.l.b16 %v614
        %v1200 = vunpack.c.h.b16 %v614
        %v1201 = vunpack.c.l.b16 %v615
        %v1202 = vunpack.c.h.b16 %v615
        %v1203 = vunpack.c.l.b16 %v616
        %v1204 = vunpack.c.h.b16 %v616
        %v1205 = vunpack.c.l.b16 %v617
        %v1206 = vunpack.c.h.b16 %v617
        %v1207 = vunpack.c.l.b16 %v618
        %v1208 = vunpack.c.h.b16 %v618
        %v1209 = vunpack.c.l.b16 %v619
        %v1210 = vunpack.c.h.b16 %v619
        %v1211 = vunpack.c.l.b16 %v620
        %v1212 = vunpack.c.h.b16 %v620
        %v1213 = vunpack.c.l.b16 %v621
        %v1214 = vunpack.c.h.b16 %v621
        %v1215 = vunpack.c.l.b16 %v622
        %v1216 = vunpack.c.h.b16 %v622
        %v1217 = vunpack.c.l.b16 %v623
        %v1218 = vunpack.c.h.b16 %v623
        %v1219 = vunpack.c.l.b16 %v624
        %v1220 = vunpack.c.h.b16 %v624
        %v1221 = vunpack.c.l.b16 %v625
        %v1222 = vunpack.c.h.b16 %v625
        %v1223 = vunpack.c.l.b16 %v626
        %v1224 = vunpack.c.h.b16 %v626
        %v1225 = vunpack.c.l.b16 %v627
        %v1226 = vunpack.c.h.b16 %v627
        %v1227 = vunpack.c.l.b16 %v628
        %v1228 = vunpack.c.h.b16 %v628
        %v1229 = vunpack.c.l.b16 %v629
        %v1230 = vunpack.c.h.b16 %v629
        %v1231 = vunpack.c.l.b16 %v630
        %v1232 = vunpack.c.h.b16 %v630
        %v1233 = vunpack.c.l.b16 %v631
        %v1234 = vunpack.c.h.b16 %v631
        %v1235 = vunpack.c.l.b16 %v632
        %v1236 = vunpack.c.h.b16 %v632
        %v1237 = vunpack.c.l.b16 %v633
        %v1238 = vunpack.c.h.b16 %v633
        %v1239 = vunpack.c.l.b16 %v634
        %v1240 = vunpack.c.h.b16 %v634
        %v1241 = vunpack.c.l.b16 %v635
        %v1242 = vunpack.c.h.b16 %v635
        %v1243 = vunpack.c.l.b16 %v636
        %v1244 = vunpack.c.h.b16 %v636
        %v1245 = vunpack.c.l.b16 %v637
        %v1246 = vunpack.c.h.b16 %v637
        %v1247 = vunpack.c.l.b16 %v638
        %v1248 = vunpack.c.h.b16 %v638
        %v1249 = vunpack.c.l.b16 %v639
        %v1250 = vunpack.c.h.b16 %v639
        %v1251 = vunpack.c.l.b16 %v640
        %v1252 = vunpack.c.h.b16 %v640
        %v1253 = vunpack.c.l.b16 %v641
        %v1254 = vunpack.c.h.b16 %v641
        %v1255 = vunpack.c.l.b16 %v642
        %v1256 = vunpack.c.h.b16 %v642
        %v1257 = vunpack.c.l.b16 %v643
        %v1258 = vunpack.c.h.b16 %v643
        %v1259 = vunpack.c.l.b16 %v644
        %v1260 = vunpack.c.h.b16 %v644
        %v1261 = vunpack.c.l.b16 %v645
        %v1262 = vunpack.c.h.b16 %v645
        %v1263 = vunpack.c.l.b16 %v646
        %v1264 = vunpack.c.h.b16 %v646
        %v1265 = vunpack.c.l.b16 %v647
        %v1266 = vunpack.c.h.b16 %v647
        %v1267 = vunpack.c.l.b16 %v648
        %v1268 = vunpack.c.h.b16 %v648
        %v1269 = vunpack.c.l.b16 %v649
        %v1270 = vunpack.c.h.b16 %v649
        %v1271 = vunpack.c.l.b16 %v650
        %v1272 = vunpack.c.h.b16 %v650
        %v1273 = vunpack.c.l.b16 %v651
        %v1274 = vunpack.c.h.b16 %v651
        %v1275 = vunpack.c.l.b16 %v652
        %v1276 = vunpack.c.h.b16 %v652
        %v1277 = vunpack.c.l.b16 %v653
        %v1278 = vunpack.c.h.b16 %v653
        %v1279 = vunpack.c.l.b16 %v654
        %v1280 = vunpack.c.h.b16 %v654
        %v1281 = vunpack.c.l.b16 %v655
        %v1282 = vunpack.c.h.b16 %v655
        %v1283 = vunpack.c.l.b16 %v656
        %v1284 = vunpack.c.h.b16 %v656
        %v1285 = vunpack.c.l.b16 %v657
        %v1286 = vunpack.c.h.b16 %v657
        %v1287 = vunpack.c.l.b16 %v658
        %v1288 = vunpack.c.h.b16 %v658
        %v1289 = vunpack.c.l.b16 %v659
        %v1290 = vunpack.c.h.b16 %v659
        %v1291 = vunpack.c.l.b16 %v660
        %v1292 = vunpack.c.h.b16 %v660
        %v1293 = vunpack.c.l.b16 %v661
        %v1294 = vunpack.c.h.b16 %v661
        %v1295 = vunpack.c.l.b16 %v662
        %v1296 = vunpack.c.h.b16 %v662
        %v1297 = vunpack.c.l.b16 %v663
        %v1298 = vunpack.c.h.b16 %v663
        %v1299 = vunpack.c.l.b16 %v664
        %v1300 = vunpack.c.h.b16 %v664
        %v1301 = vunpack.c.l.b16 %v665
        %v1302 = vunpack.c.h.b16 %v665
        %v1303 = vunpack.c.l.b16 %v666
        %v1304 = vunpack.c.h.b16 %v666
        %v1305 = vunpack.c.l.b16 %v667
        %v1306 = vunpack.c.h.b16 %v667
        %v1307 = vunpack.c.l.b16 %v668
        %v1308 = vunpack.c.h.b16 %v668
        %v1309 = vunpack.c.l.b16 %v669
        %v1310 = vunpack.c.h.b16 %v669
        %v1311 = vunpack.c.l.b16 %v670
        %v1312 = vunpack.c.h.b16 %v670
        %v1313 = vunpack.c.l.b16 %v671
        %v1314 = vunpack.c.h.b16 %v671
        %v1315 = vunpack.c.l.b16 %v672
        %v1316 = vunpack.c.h.b16 %v672
        %v1317 = vunpack.c.l.b16 %v673
        %v1318 = vunpack.c.h.b16 %v673
        %v1319 = vunpack.c.l.b16 %v674
        %v1320 = vunpack.c.h.b16 %v674
        %v1321 = vunpack.c.l.b16 %v675
        %v1322 = vunpack.c.h.b16 %v675
        %v1323 = vunpack.c.l.b16 %v676
        %v1324 = vunpack.c.h.b16 %v676
        %v1325 = vunpack.c.l.b16 %v677
        %v1326 = vunpack.c.h.b16 %v677
        %v1327 = vunpack.c.l.b16 %v678
        %v1328 = vunpack.c.h.b16 %v678
        %v1329 = vunpack.c.l.b16 %v679
        %v1330 = vunpack.c.h.b16 %v679
        %v1331 = vunpack.c.l.b16 %v680
        %v1332 = vunpack.c.h.b16 %v680
        %v1333 = vunpack.c.l.b16 %v681
        %v1334 = vunpack.c.h.b16 %v681
        %v1335 = vunpack.c.l.b16 %v682
        %v1336 = vunpack.c.h.b16 %v682
        %v1337 = vunpack.c.l.b16 %v683
        %v1338 = vunpack.c.h.b16 %v683
        %v1339 = vunpack.c.l.b16 %v684
        %v1340 = vunpack.c.h.b16 %v684
        %v1341 = vunpack.c.l.b16 %v685
        %v1342 = vunpack.c.h.b16 %v685
        %v1343 = vunpack.c.l.b16 %v686
        %v1344 = vunpack.c.h.b16 %v686
        %v1345 = vunpack.c.l.b16 %v687
        %v1346 = vunpack.c.h.b16 %v687
        %v1347 = vunpack.c.l.b16 %v688
        %v1348 = vunpack.c.h.b16 %v688
        %v1349 = vunpack.c.l.b16 %v689
        %v1350 = vunpack.c.h.b16 %v689
        %v1351 = vunpack.c.l.b16 %v690
        %v1352 = vunpack.c.h.b16 %v690
        %v1353 = vunpack.c.l.b16 %v691
        %v1354 = vunpack.c.h.b16 %v691
        %v1355 = vunpack.c.l.b16 %v692
        %v1356 = vunpack.c.h.b16 %v692
        %v1357 = vunpack.c.l.b16 %v693
        %v1358 = vunpack.c.h.b16 %v693
        %v1359 = vunpack.c.l.b16 %v694
        %v1360 = vunpack.c.h.b16 %v694
        %v1361 = vunpack.c.l.b16 %v695
        %v1362 = vunpack.c.h.b16 %v695
        %v1363 = vunpack.c.l.b16 %v696
        %v1364 = vunpack.c.h.b16 %v696
        %v1365 = vunpack.c.l.b16 %v697
        %v1366 = vunpack.c.h.b16 %v697
        %v1367 = vunpack.c.l.b16 %v698
        %v1368 = vunpack.c.h.b16 %v698
        %v1369 = vunpack.c.l.b16 %v699
        %v1370 = vunpack.c.h.b16 %v699
        %v1371 = vunpack.c.l.b16 %v700
        %v1372 = vunpack.c.h.b16 %v700
        %v1373 = vunpack.c.l.b16 %v701
        %v1374 = vunpack.c.h.b16 %v701
        %v1375 = vunpack.c.l.b16 %v702
        %v1376 = vunpack.c.h.b16 %v702
        %v1377 = vunpack.c.l.b16 %v703
        %v1378 = vunpack.c.h.b16 %v703
        %v1379 = vunpack.c.l.b16 %v704
        %v1380 = vunpack.c.h.b16 %v704
        %v1381 = vunpack.c.l.b16 %v705
        %v1382 = vunpack.c.h.b16 %v705
        %v1383 = vunpack.c.l.b16 %v706
        %v1384 = vunpack.c.h.b16 %v706
        %v1385 = vunpack.c.l.b16 %v707
        %v1386 = vunpack.c.h.b16 %v707
        %v1387 = vunpack.c.l.b16 %v708
        %v1388 = vunpack.c.h.b16 %v708
        %v1389 = vunpack.c.l.b16 %v709
        %v1390 = vunpack.c.h.b16 %v709
        %v1391 = vunpack.c.l.b16 %v710
        %v1392 = vunpack.c.h.b16 %v710
        %v1393 = vunpack.c.l.b16 %v711
        %v1394 = vunpack.c.h.b16 %v711
        %v1395 = vunpack.c.l.b16 %v712
        %v1396 = vunpack.c.h.b16 %v712
        %v1397 = vunpack.c.l.b16 %v713
        %v1398 = vunpack.c.h.b16 %v713
        %v1399 = vunpack.c.l.b16 %v714
        %v1400 = vunpack.c.h.b16 %v714
        %v1401 = vunpack.c.l.b16 %v715
        %v1402 = vunpack.c.h.b16 %v715
        %v1403 = vunpack.c.l.b16 %v716
        %v1404 = vunpack.c.h.b16 %v716
        %v1405 = vunpack.c.l.b16 %v717
        %v1406 = vunpack.c.h.b16 %v717
        %v1407 = vunpack.c.l.b16 %v718
        %v1408 = vunpack.c.h.b16 %v718
        %v1409 = vunpack.c.l.b16 %v719
        %v1410 = vunpack.c.h.b16 %v719
        %v1411 = vunpack.c.l.b16 %v720
        %v1412 = vunpack.c.h.b16 %v720
        %v1413 = vunpack.c.l.b16 %v721
        %v1414 = vunpack.c.h.b16 %v721
        %v1415 = vunpack.c.l.b16 %v722
        %v1416 = vunpack.c.h.b16 %v722
        %v1417 = vunpack.c.l.b16 %v723
        %v1418 = vunpack.c.h.b16 %v723
        %v1419 = vunpack.c.l.b16 %v724
        %v1420 = vunpack.c.h.b16 %v724
        %v1421 = vunpack.c.l.b16 %v725
        %v1422 = vunpack.c.h.b16 %v725
        %v1423 = vunpack.c.l.b16 %v726
        %v1424 = vunpack.c.h.b16 %v726
        %v1425 = vunpack.c.l.b16 %v727
        %v1426 = vunpack.c.h.b16 %v727
        %v1427 = vunpack.c.l.b16 %v728
        %v1428 = vunpack.c.h.b16 %v728
        %v1429 = vunpack.c.l.b16 %v729
        %v1430 = vunpack.c.h.b16 %v729
        %v1431 = vunpack.c.l.b16 %v730
        %v1432 = vunpack.c.h.b16 %v730
        %v1433 = vunpack.c.l.b16 %v731
        %v1434 = vunpack.c.h.b16 %v731
        %v1435 = vunpack.c.l.b16 %v732
        %v1436 = vunpack.c.h.b16 %v732
        %v1437 = vunpack.c.l.b16 %v733
        %v1438 = vunpack.c.h.b16 %v733
        %v1439 = vunpack.c.l.b16 %v734
        %v1440 = vunpack.c.h.b16 %v734
        %v1441 = vunpack.c.l.b16 %v735
        %v1442 = vunpack.c.h.b16 %v735
        %v1443 = vunpack.c.l.b16 %v736
        %v1444 = vunpack.c.h.b16 %v736
        %v1445 = vunpack.c.l.b16 %v737
        %v1446 = vunpack.c.h.b16 %v737
        %v1447 = vunpack.c.l.b16 %v738
        %v1448 = vunpack.c.h.b16 %v738
        %v1449 = vunpack.c.l.b16 %v739
        %v1450 = vunpack.c.h.b16 %v739
        %v1451 = vunpack.c.l.b16 %v740
        %v1452 = vunpack.c.h.b16 %v740
        %v1453 = vunpack.c.l.b16 %v741
        %v1454 = vunpack.c.h.b16 %v741
        %v1455 = vunpack.c.l.b16 %v742
        %v1456 = vunpack.c.h.b16 %v742
        %v1457 = vunpack.c.l.b16 %v743
        %v1458 = vunpack.c.h.b16 %v743
        %v1459 = vunpack.c.l.b16 %v744
        %v1460 = vunpack.c.h.b16 %v744
        %v1461 = vunpack.c.l.b16 %v745
        %v1462 = vunpack.c.h.b16 %v745
        %v1463 = vunpack.c.l.b16 %v746
        %v1464 = vunpack.c.h.b16 %v746
        %v1465 = vunpack.c.l.b16 %v747
        %v1466 = vunpack.c.h.b16 %v747
        %v1467 = vunpack.c.l.b16 %v748
        %v1468 = vunpack.c.h.b16 %v748
        %v1469 = vunpack.c.l.b16 %v749
        %v1470 = vunpack.c.h.b16 %v749
        %v1471 = vunpack.c.l.b16 %v750
        %v1472 = vunpack.c.h.b16 %v750
        %v1473 = vunpack.c.l.b16 %v751
        %v1474 = vunpack.c.h.b16 %v751
        %v1475 = vunpack.c.l.b16 %v752
        %v1476 = vunpack.c.h.b16 %v752
        %v1477 = vunpack.c.l.b16 %v753
        %v1478 = vunpack.c.h.b16 %v753
        %v1479 = vunpack.c.l.b16 %v754
        %v1480 = vunpack.c.h.b16 %v754
        %v1481 = vunpack.c.l.b16 %v755
        %v1482 = vunpack.c.h.b16 %v755
        %v1483 = vunpack.c.l.b16 %v756
        %v1484 = vunpack.c.h.b16 %v756
        %v1485 = vunpack.c.l.b16 %v757
        %v1486 = vunpack.c.h.b16 %v757
        %v1487 = vunpack.c.l.b16 %v758
        %v1488 = vunpack.c.h.b16 %v758
        %v1489 = vunpack.c.l.b16 %v759
        %v1490 = vunpack.c.h.b16 %v759
        %v1491 = vunpack.c.l.b16 %v760
        %v1492 = vunpack.c.h.b16 %v760
        %v1493 = vunpack.c.l.b16 %v761
        %v1494 = vunpack.c.h.b16 %v761
        %v1495 = vunpack.c.l.b16 %v762
        %v1496 = vunpack.c.h.b16 %v762
        %v1497 = vunpack.c.l.b16 %v763
        %v1498 = vunpack.c.h.b16 %v763
        %v1499 = vunpack.c.l.b16 %v764
        %v1500 = vunpack.c.h.b16 %v764
        %v1501 = vunpack.c.l.b16 %v765
        %v1502 = vunpack.c.h.b16 %v765
        %v1503 = vunpack.c.l.b16 %v766
        %v1504 = vunpack.c.h.b16 %v766
        %v1505 = vunpack.c.l.b16 %v767
        %v1506 = vunpack.c.h.b16 %v767
        %v1507 = vunpack.c.l.b16 %v768
        %v1508 = vunpack.c.h.b16 %v768
        %v1509 = vunpack.c.l.b16 %v769
        %v1510 = vunpack.c.h.b16 %v769
        %v1511 = vunpack.c.l.b16 %v770
        %v1512 = vunpack.c.h.b16 %v770
        %v1513 = vunpack.c.l.b16 %v771
        %v1514 = vunpack.c.h.b16 %v771
        %v1515 = vunpack.c.l.b16 %v772
        %v1516 = vunpack.c.h.b16 %v772
        %v1517 = vunpack.c.l.b16 %v773
        %v1518 = vunpack.c.h.b16 %v773
        %v1519 = vunpack.c.l.b16 %v774
        %v1520 = vunpack.c.h.b16 %v774
        %v1521 = vunpack.c.l.b16 %v775
        %v1522 = vunpack.c.h.b16 %v775
        %v1523 = vunpack.c.l.b16 %v776
        %v1524 = vunpack.c.h.b16 %v776
        %v1525 = vunpack.c.l.b16 %v777
        %v1526 = vunpack.c.h.b16 %v777
        %v1527 = vunpack.c.l.b16 %v778
        %v1528 = vunpack.c.h.b16 %v778
        %v1529 = vunpack.c.l.b16 %v779
        %v1530 = vunpack.c.h.b16 %v779
        %v1531 = vunpack.c.l.b16 %v780
        %v1532 = vunpack.c.h.b16 %v780
        %v1533 = vunpack.c.l.b16 %v781
        %v1534 = vunpack.c.h.b16 %v781
        %v1535 = vunpack.c.l.b16 %v782
        %v1536 = vunpack.c.h.b16 %v782
        %v1537 = vunpack.c.l.b16 %v783
        %v1538 = vunpack.c.h.b16 %v783
        %v1539 = vunpack.c.l.b16 %v784
        %v1540 = vunpack.c.h.b16 %v784
        %v1541 = vunpack.c.l.b16 %v785
        %v1542 = vunpack.c.h.b16 %v785
        %v1543 = vunpack.c.l.b16 %v786
        %v1544 = vunpack.c.h.b16 %v786
        %v1545 = vunpack.c.l.b16 %v787
        %v1546 = vunpack.c.h.b16 %v787
        %v1547 = vunpack.c.l.b16 %v788
        %v1548 = vunpack.c.h.b16 %v788
        %v1549 = vunpack.c.l.b16 %v789
        %v1550 = vunpack.c.h.b16 %v789
        %v1551 = vunpack.c.l.b16 %v790
        %v1552 = vunpack.c.h.b16 %v790
        %v1553 = vunpack.c.l.b16 %v791
        %v1554 = vunpack.c.h.b16 %v791
        %v1555 = vunpack.c.l.b16 %v792
        %v1556 = vunpack.c.h.b16 %v792
        %v1557 = vunpack.c.l.b16 %v793
        %v1558 = vunpack.c.h.b16 %v793
        %v1559 = vunpack.c.l.b16 %v794
        %v1560 = vunpack.c.h.b16 %v794
        %v1561 = vunpack.c.l.b16 %v795
        %v1562 = vunpack.c.h.b16 %v795
        %v1563 = vunpack.c.l.b16 %v796
        %v1564 = vunpack.c.h.b16 %v796
        %v1565 = vpack.c.b16 %v1061, %v1053
        %v1566 = vpack.c.b16 %v1062, %v1054
        %v1567 = vpack.c.b16 %v1063, %v1055
        %v1568 = vpack.c.b16 %v1064, %v1056
        %v1569 = vpack.c.b16 %v1065, %v1057
        %v1570 = vpack.c.b16 %v1066, %v1058
        %v1571 = vpack.c.b16 %v1067, %v1059
        %v1572 = vpack.c.b16 %v1068, %v1060
        %v1573 = vpack.c.b16 %v1077, %v1069
        %v1574 = vpack.c.b16 %v1078, %v1070
        %v1575 = vpack.c.b16 %v1079, %v1071
        %v1576 = vpack.c.b16 %v1080, %v1072
        %v1577 = vpack.c.b16 %v1081, %v1073
        %v1578 = vpack.c.b16 %v1082, %v1074
        %v1579 = vpack.c.b16 %v1083, %v1075
        %v1580 = vpack.c.b16 %v1084, %v1076
        %v1581 = vpack.c.b16 %v1093, %v1085
        %v1582 = vpack.c.b16 %v1094, %v1086
        %v1583 = vpack.c.b16 %v1095, %v1087
        %v1584 = vpack.c.b16 %v1096, %v1088
        %v1585 = vpack.c.b16 %v1097, %v1089
        %v1586 = vpack.c.b16 %v1098, %v1090
        %v1587 = vpack.c.b16 %v1099, %v1091
        %v1588 = vpack.c.b16 %v1100, %v1092
        %v1589 = vpack.c.b16 %v1109, %v1101
        %v1590 = vpack.c.b16 %v1110, %v1102
        %v1591 = vpack.c.b16 %v1111, %v1103
        %v1592 = vpack.c.b16 %v1112, %v1104
        %v1593 = vpack.c.b16 %v1113, %v1105
        %v1594 = vpack.c.b16 %v1114, %v1106
        %v1595 = vpack.c.b16 %v1115, %v1107
        %v1596 = vpack.c.b16 %v1116, %v1108
        %v1597 = vpack.c.b16 %v1125, %v1117
        %v1598 = vpack.c.b16 %v1126, %v1118
        %v1599 = vpack.c.b16 %v1127, %v1119
        %v1600 = vpack.c.b16 %v1128, %v1120
        %v1601 = vpack.c.b16 %v1129, %v1121
        %v1602 = vpack.c.b16 %v1130, %v1122
        %v1603 = vpack.c.b16 %v1131, %v1123
        %v1604 = vpack.c.b16 %v1132, %v1124
        %v1605 = vpack.c.b16 %v1141, %v1133
        %v1606 = vpack.c.b16 %v1142, %v1134
        %v1607 = vpack.c.b16 %v1143, %v1135
        %v1608 = vpack.c.b16 %v1144, %v1136
        %v1609 = vpack.c.b16 %v1145, %v1137
        %v1610 = vpack.c.b16 %v1146, %v1138
        %v1611 = vpack.c.b16 %v1147, %v1139
        %v1612 = vpack.c.b16 %v1148, %v1140
        %v1613 = vpack.c.b16 %v1157, %v1149
        %v1614 = vpack.c.b16 %v1158, %v1150
        %v1615 = vpack.c.b16 %v1159, %v1151
        %v1616 = vpack.c.b16 %v1160, %v1152
        %v1617 = vpack.c.b16 %v1161, %v1153
        %v1618 = vpack.c.b16 %v1162, %v1154
        %v1619 = vpack.c.b16 %v1163, %v1155
        %v1620 = vpack.c.b16 %v1164, %v1156
        %v1621 = vpack.c.b16 %v1173, %v1165
        %v1622 = vpack.c.b16 %v1174, %v1166
        %v1623 = vpack.c.b16 %v1175, %v1167
        %v1624 = vpack.c.b16 %v1176, %v1168
        %v1625 = vpack.c.b16 %v1177, %v1169
        %v1626 = vpack.c.b16 %v1178, %v1170
        %v1627 = vpack.c.b16 %v1179, %v1171
        %v1628 = vpack.c.b16 %v1180, %v1172
        %v1629 = vpack.c.b16 %v1189, %v1181
        %v1630 = vpack.c.b16 %v1190, %v1182
        %v1631 = vpack.c.b16 %v1191, %v1183
        %v1632 = vpack.c.b16 %v1192, %v1184
        %v1633 = vpack.c.b16 %v1193, %v1185
        %v1634 = vpack.c.b16 %v1194, %v1186
        %v1635 = vpack.c.b16 %v1195, %v1187
        %v1636 = vpack.c.b16 %v1196, %v1188
        %v1637 = vpack.c.b16 %v1205, %v1197
        %v1638 = vpack.c.b16 %v1206, %v1198
        %v1639 = vpack.c.b16 %v1207, %v1199
        %v1640 = vpack.c.b16 %v1208, %v1200
        %v1641 = vpack.c.b16 %v1209, %v1201
        %v1642 = vpack.c.b16 %v1210, %v1202
        %v1643 = vpack.c.b16 %v1211, %v1203
        %v1644 = vpack.c.b16 %v1212, %v1204
        %v1645 = vpack.c.b16 %v1221, %v1213
        %v1646 = vpack.c.b16 %v1222, %v1214
        %v1647 = vpack.c.b16 %v1223, %v1215
        %v1648 = vpack.c.b16 %v1224, %v1216
        %v1649 = vpack.c.b16 %v1225, %v1217
        %v1650 = vpack.c.b16 %v1226, %v1218
        %v1651 = vpack.c.b16 %v1227, %v1219
        %v1652 = vpack.c.b16 %v1228, %v1220
        %v1653 = vpack.c.b16 %v1237, %v1229
        %v1654 = vpack.c.b16 %v1238, %v1230
        %v1655 = vpack.c.b16 %v1239, %v1231
        %v1656 = vpack.c.b16 %v1240, %v1232
        %v1657 = vpack.c.b16 %v1241, %v1233
        %v1658 = vpack.c.b16 %v1242, %v1234
        %v1659 = vpack.c.b16 %v1243, %v1235
        %v1660 = vpack.c.b16 %v1244, %v1236
        %v1661 = vpack.c.b16 %v1253, %v1245
        %v1662 = vpack.c.b16 %v1254, %v1246
        %v1663 = vpack.c.b16 %v1255, %v1247
        %v1664 = vpack.c.b16 %v1256, %v1248
        %v1665 = vpack.c.b16 %v1257, %v1249
        %v1666 = vpack.c.b16 %v1258, %v1250
        %v1667 = vpack.c.b16 %v1259, %v1251
        %v1668 = vpack.c.b16 %v1260, %v1252
        %v1669 = vpack.c.b16 %v1269, %v1261
        %v1670 = vpack.c.b16 %v1270, %v1262
        %v1671 = vpack.c.b16 %v1271, %v1263
        %v1672 = vpack.c.b16 %v1272, %v1264
        %v1673 = vpack.c.b16 %v1273, %v1265
        %v1674 = vpack.c.b16 %v1274, %v1266
        %v1675 = vpack.c.b16 %v1275, %v1267
        %v1676 = vpack.c.b16 %v1276, %v1268
        %v1677 = vpack.c.b16 %v1285, %v1277
        %v1678 = vpack.c.b16 %v1286, %v1278
        %v1679 = vpack.c.b16 %v1287, %v1279
        %v1680 = vpack.c.b16 %v1288, %v1280
        %v1681 = vpack.c.b16 %v1289, %v1281
        %v1682 = vpack.c.b16 %v1290, %v1282
        %v1683 = vpack.c.b16 %v1291, %v1283
        %v1684 = vpack.c.b16 %v1292, %v1284
        %v1685 = vpack.c.b16 %v1301, %v1293
        %v1686 = vpack.c.b16 %v1302, %v1294
        %v1687 = vpack.c.b16 %v1303, %v1295
        %v1688 = vpack.c.b16 %v1304, %v1296
        %v1689 = vpack.c.b16 %v1305, %v1297
        %v1690 = vpack.c.b16 %v1306, %v1298
        %v1691 = vpack.c.b16 %v1307, %v1299
        %v1692 = vpack.c.b16 %v1308, %v1300
        %v1693 = vpack.c.b16 %v1317, %v1309
        %v1694 = vpack.c.b16 %v1318, %v1310
        %v1695 = vpack.c.b16 %v1319, %v1311
        %v1696 = vpack.c.b16 %v1320, %v1312
        %v1697 = vpack.c.b16 %v1321, %v1313
        %v1698 = vpack.c.b16 %v1322, %v1314
        %v1699 = vpack.c.b16 %v1323, %v1315
        %v1700 = vpack.c.b16 %v1324, %v1316
        %v1701 = vpack.c.b16 %v1333, %v1325
        %v1702 = vpack.c.b16 %v1334, %v1326
        %v1703 = vpack.c.b16 %v1335, %v1327
        %v1704 = vpack.c.b16 %v1336, %v1328
        %v1705 = vpack.c.b16 %v1337, %v1329
        %v1706 = vpack.c.b16 %v1338, %v1330
        %v1707 = vpack.c.b16 %v1339, %v1331
        %v1708 = vpack.c.b16 %v1340, %v1332
        %v1709 = vpack.c.b16 %v1349, %v1341
        %v1710 = vpack.c.b16 %v1350, %v1342
        %v1711 = vpack.c.b16 %v1351, %v1343
        %v1712 = vpack.c.b16 %v1352, %v1344
        %v1713 = vpack.c.b16 %v1353, %v1345
        %v1714 = vpack.c.b16 %v1354, %v1346
        %v1715 = vpack.c.b16 %v1355, %v1347
        %v1716 = vpack.c.b16 %v1356, %v1348
        %v1717 = vpack.c.b16 %v1365, %v1357
        %v1718 = vpack.c.b16 %v1366, %v1358
        %v1719 = vpack.c.b16 %v1367, %v1359
        %v1720 = vpack.c.b16 %v1368, %v1360
        %v1721 = vpack.c.b16 %v1369, %v1361
        %v1722 = vpack.c.b16 %v1370, %v1362
        %v1723 = vpack.c.b16 %v1371, %v1363
        %v1724 = vpack.c.b16 %v1372, %v1364
        %v1725 = vpack.c.b16 %v1381, %v1373
        %v1726 = vpack.c.b16 %v1382, %v1374
        %v1727 = vpack.c.b16 %v1383, %v1375
        %v1728 = vpack.c.b16 %v1384, %v1376
        %v1729 = vpack.c.b16 %v1385, %v1377
        %v1730 = vpack.c.b16 %v1386, %v1378
        %v1731 = vpack.c.b16 %v1387, %v1379
        %v1732 = vpack.c.b16 %v1388, %v1380
        %v1733 = vpack.c.b16 %v1397, %v1389
        %v1734 = vpack.c.b16 %v1398, %v1390
        %v1735 = vpack.c.b16 %v1399, %v1391
        %v1736 = vpack.c.b16 %v1400, %v1392
        %v1737 = vpack.c.b16 %v1401, %v1393
        %v1738 = vpack.c.b16 %v1402, %v1394
        %v1739 = vpack.c.b16 %v1403, %v1395
        %v1740 = vpack.c.b16 %v1404, %v1396
        %v1741 = vpack.c.b16 %v1413, %v1405
        %v1742 = vpack.c.b16 %v1414, %v1406
        %v1743 = vpack.c.b16 %v1415, %v1407
        %v1744 = vpack.c.b16 %v1416, %v1408
        %v1745 = vpack.c.b16 %v1417, %v1409
        %v1746 = vpack.c.b16 %v1418, %v1410
        %v1747 = vpack.c.b16 %v1419, %v1411
        %v1748 = vpack.c.b16 %v1420, %v1412
        %v1749 = vpack.c.b16 %v1429, %v1421
        %v1750 = vpack.c.b16 %v1430, %v1422
        %v1751 = vpack.c.b16 %v1431, %v1423
        %v1752 = vpack.c.b16 %v1432, %v1424
        %v1753 = vpack.c.b16 %v1433, %v1425
        %v1754 = vpack.c.b16 %v1434, %v1426
        %v1755 = vpack.c.b16 %v1435, %v1427
        %v1756 = vpack.c.b16 %v1436, %v1428
        %v1757 = vpack.c.b16 %v1445, %v1437
        %v1758 = vpack.c.b16 %v1446, %v1438
        %v1759 = vpack.c.b16 %v1447, %v1439
        %v1760 = vpack.c.b16 %v1448, %v1440
        %v1761 = vpack.c.b16 %v1449, %v1441
        %v1762 = vpack.c.b16 %v1450, %v1442
        %v1763 = vpack.c.b16 %v1451, %v1443
        %v1764 = vpack.c.b16 %v1452, %v1444
        %v1765 = vpack.c.b16 %v1461, %v1453
        %v1766 = vpack.c.b16 %v1462, %v1454
        %v1767 = vpack.c.b16 %v1463, %v1455
        %v1768 = vpack.c.b16 %v1464, %v1456
        %v1769 = vpack.c.b16 %v1465, %v1457
        %v1770 = vpack.c.b16 %v1466, %v1458
        %v1771 = vpack.c.b16 %v1467, %v1459
        %v1772 = vpack.c.b16 %v1468, %v1460
        %v1773 = vpack.c.b16 %v1477, %v1469
        %v1774 = vpack.c.b16 %v1478, %v1470
        %v1775 = vpack.c.b16 %v1479, %v1471
        %v1776 = vpack.c.b16 %v1480, %v1472
        %v1777 = vpack.c.b16 %v1481, %v1473
        %v1778 = vpack.c.b16 %v1482, %v1474
        %v1779 = vpack.c.b16 %v1483, %v1475
        %v1780 = vpack.c.b16 %v1484, %v1476
        %v1781 = vpack.c.b16 %v1493, %v1485
        %v1782 = vpack.c.b16 %v1494, %v1486
        %v1783 = vpack.c.b16 %v1495, %v1487
        %v1784 = vpack.c.b16 %v1496, %v1488
        %v1785 = vpack.c.b16 %v1497, %v1489
        %v1786 = vpack.c.b16 %v1498, %v1490
        %v1787 = vpack.c.b16 %v1499, %v1491
        %v1788 = vpack.c.b16 %v1500, %v1492
        %v1789 = vpack.c.b16 %v1509, %v1501
        %v1790 = vpack.c.b16 %v1510, %v1502
        %v1791 = vpack.c.b16 %v1511, %v1503
        %v1792 = vpack.c.b16 %v1512, %v1504
        %v1793 = vpack.c.b16 %v1513, %v1505
        %v1794 = vpack.c.b16 %v1514, %v1506
        %v1795 = vpack.c.b16 %v1515, %v1507
        %v1796 = vpack.c.b16 %v1516, %v1508
        %v1797 = vpack.c.b16 %v1525, %v1517
        %v1798 = vpack.c.b16 %v1526, %v1518
        %v1799 = vpack.c.b16 %v1527, %v1519
        %v1800 = vpack.c.b16 %v1528, %v1520
        %v1801 = vpack.c.b16 %v1529, %v1521
        %v1802 = vpack.c.b16 %v1530, %v1522
        %v1803 = vpack.c.b16 %v1531, %v1523
        %v1804 = vpack.c.b16 %v1532, %v1524
        %v1805 = vpack.c.b16 %v1541, %v1533
        %v1806 = vpack.c.b16 %v1542, %v1534
        %v1807 = vpack.c.b16 %v1543, %v1535
        %v1808 = vpack.c.b16 %v1544, %v1536
        %v1809 = vpack.c.b16 %v1545, %v1537
        %v1810 = vpack.c.b16 %v1546, %v1538
        %v1811 = vpack.c.b16 %v1547, %v1539
        %v1812 = vpack.c.b16 %v1548, %v1540
        %v1813 = vpack.c.b16 %v1557, %v1549
        %v1814 = vpack.c.b16 %v1558, %v1550
        %v1815 = vpack.c.b16 %v1559, %v1551
        %v1816 = vpack.c.b16 %v1560, %v1552
        %v1817 = vpack.c.b16 %v1561, %v1553
        %v1818 = vpack.c.b16 %v1562, %v1554
        %v1819 = vpack.c.b16 %v1563, %v1555
        %v1820 = vpack.c.b16 %v1564, %v1556
        %v2205 = vunpack.c.l.b16 %v349
        %v2206 = vunpack.c.l.b16 %v350
        %v2207 = vunpack.c.l.b16 %v351
        %v2208 = vunpack.c.l.b16 %v352
        %v2209 = vunpack.c.l.b16 %v353
        %v2210 = vunpack.c.l.b16 %v354
        %v2211 = vunpack.c.l.b16 %v355
        %v2212 = vunpack.c.l.b16 %v356
        %v2213 = vunpack.c.l.b16 %v357
        %v2214 = vunpack.c.l.b16 %v358
        %v2215 = vunpack.c.l.b16 %v359
        %v2216 = vunpack.c.l.b16 %v360
        %v2217 = vunpack.c.l.b16 %v361
        %v2218 = vunpack.c.l.b16 %v362
        %v2219 = vunpack.c.l.b16 %v363
        %v2220 = vunpack.c.l.b16 %v364
        %v2221 = vunpack.c.l.b16 %v365
        %v2222 = vunpack.c.l.b16 %v366
        %v2223 = vunpack.c.l.b16 %v367
        %v2224 = vunpack.c.l.b16 %v368
        %v2225 = vunpack.c.l.b16 %v369
        %v2226 = vunpack.c.l.b16 %v370
        %v2227 = vunpack.c.l.b16 %v371
        %v2228 = vunpack.c.l.b16 %v372
        %v2229 = vunpack.c.l.b16 %v373
        %v2230 = vunpack.c.l.b16 %v374
        %v2231 = vunpack.c.l.b16 %v375
        %v2232 = vunpack.c.l.b16 %v376
        %v2233 = vunpack.c.l.b16 %v377
        %v2234 = vunpack.c.l.b16 %v378
        %v2235 = vunpack.c.l.b16 %v379
        %v2236 = vunpack.c.l.b16 %v380
        %v2237 = vunpack.c.l.b16 %v381
        %v2238 = vunpack.c.l.b16 %v382
        %v2239 = vunpack.c.l.b16 %v383
        %v2240 = vunpack.c.l.b16 %v384
        %v2241 = vunpack.c.l.b16 %v385
        %v2242 = vunpack.c.l.b16 %v386
        %v2243 = vunpack.c.l.b16 %v387
        %v2244 = vunpack.c.l.b16 %v388
        %v2245 = vunpack.c.l.b16 %v389
        %v2246 = vunpack.c.l.b16 %v390
        %v2247 = vunpack.c.l.b16 %v391
        %v2248 = vunpack.c.l.b16 %v392
        %v2249 = vunpack.c.l.b16 %v393
        %v2250 = vunpack.c.l.b16 %v394
        %v2251 = vunpack.c.l.b16 %v395
        %v2252 = vunpack.c.l.b16 %v396
        %v2253 = vunpack.c.l.b16 %v397
        %v2254 = vunpack.c.l.b16 %v398
        %v2255 = vunpack.c.l.b16 %v399
        %v2256 = vunpack.c.l.b16 %v400
        %v2257 = vunpack.c.l.b16 %v401
        %v2258 = vunpack.c.l.b16 %v402
        %v2259 = vunpack.c.l.b16 %v403
        %v2260 = vunpack.c.l.b16 %v404
        %v2261 = vunpack.c.l.b16 %v405
        %v2262 = vunpack.c.l.b16 %v406
        %v2263 = vunpack.c.l.b16 %v407
        %v2264 = vunpack.c.l.b16 %v408
        %v2265 = vunpack.c.l.b16 %v409
        %v2266 = vunpack.c.l.b16 %v410
        %v2267 = vunpack.c.l.b16 %v411
        %v2268 = vunpack.c.l.b16 %v412
        %v2269 = vunpack.c.l.b16 %v413
        %v2270 = vunpack.c.l.b16 %v414
        %v2271 = vunpack.c.l.b16 %v415
        %v2272 = vunpack.c.l.b16 %v416
        %v2273 = vunpack.c.l.b16 %v417
        %v2274 = vunpack.c.l.b16 %v418
        %v2275 = vunpack.c.l.b16 %v419
        %v2276 = vunpack.c.l.b16 %v420
        %v2277 = vunpack.c.l.b16 %v421
        %v2278 = vunpack.c.l.b16 %v422
        %v2279 = vunpack.c.l.b16 %v423
        %v2280 = vunpack.c.l.b16 %v424
        %v2281 = vunpack.c.l.b16 %v425
        %v2282 = vunpack.c.l.b16 %v426
        %v2283 = vunpack.c.l.b16 %v427
        %v2284 = vunpack.c.l.b16 %v428
        %v2285 = vunpack.c.l.b16 %v429
        %v2286 = vunpack.c.l.b16 %v430
        %v2287 = vunpack.c.l.b16 %v431
        %v2288 = vunpack.c.l.b16 %v432
        %v2289 = vunpack.c.l.b16 %v433
        %v2290 = vunpack.c.l.b16 %v434
        %v2291 = vunpack.c.l.b16 %v435
        %v2292 = vunpack.c.l.b16 %v436
        %v2293 = vunpack.c.l.b16 %v437
        %v2294 = vunpack.c.l.b16 %v438
        %v2295 = vunpack.c.l.b16 %v439
        %v2296 = vunpack.c.l.b16 %v440
        %v2297 = vunpack.c.l.b16 %v441
        %v2298 = vunpack.c.l.b16 %v442
        %v2299 = vunpack.c.l.b16 %v443
        %v2300 = vunpack.c.l.b16 %v444
        %v2301 = vunpack.c.l.b16 %v445
        %v2302 = vunpack.c.l.b16 %v446
        %v2303 = vunpack.c.l.b16 %v447
        %v2304 = vunpack.c.l.b16 %v448
        %v2305 = vunpack.c.l.b16 %v449
        %v2306 = vunpack.c.l.b16 %v450
        %v2307 = vunpack.c.l.b16 %v451
        %v2308 = vunpack.c.l.b16 %v452
        %v2309 = vunpack.c.l.b16 %v453
        %v2310 = vunpack.c.l.b16 %v454
        %v2311 = vunpack.c.l.b16 %v455
        %v2312 = vunpack.c.l.b16 %v456
        %v2313 = vunpack.c.l.b16 %v457
        %v2314 = vunpack.c.l.b16 %v458
        %v2315 = vunpack.c.l.b16 %v459
        %v2316 = vunpack.c.l.b16 %v460
        %v2317 = vunpack.c.l.b16 %v461
        %v2318 = vunpack.c.l.b16 %v462
        %v2319 = vunpack.c.l.b16 %v463
        %v2320 = vunpack.c.l.b16 %v464
        %v2321 = vunpack.c.l.b16 %v465
        %v2322 = vunpack.c.l.b16 %v466
        %v2323 = vunpack.c.l.b16 %v467
        %v2324 = vunpack.c.l.b16 %v468
        %v2325 = vunpack.c.l.b16 %v469
        %v2326 = vunpack.c.l.b16 %v470
        %v2327 = vunpack.c.l.b16 %v471
        %v2328 = vunpack.c.l.b16 %v472
        %v2329 = vunpack.c.l.b16 %v473
        %v2330 = vunpack.c.l.b16 %v474
        %v2331 = vunpack.c.l.b16 %v475
        %v2332 = vunpack.c.l.b16 %v476
        %v2333 = vpack.c.b16 %v2206, %v2205
        %v2334 = vpack.c.b16 %v2208, %v2207
        %v2335 = vpack.c.b16 %v2210, %v2209
        %v2336 = vpack.c.b16 %v2212, %v2211
        %v2337 = vpack.c.b16 %v2214, %v2213
        %v2338 = vpack.c.b16 %v2216, %v2215
        %v2339 = vpack.c.b16 %v2218, %v2217
        %v2340 = vpack.c.b16 %v2220, %v2219
        %v2341 = vpack.c.b16 %v2222, %v2221
        %v2342 = vpack.c.b16 %v2224, %v2223
        %v2343 = vpack.c.b16 %v2226, %v2225
        %v2344 = vpack.c.b16 %v2228, %v2227
        %v2345 = vpack.c.b16 %v2230, %v2229
        %v2346 = vpack.c.b16 %v2232, %v2231
        %v2347 = vpack.c.b16 %v2234, %v2233
        %v2348 = vpack.c.b16 %v2236, %v2235
        %v2349 = vpack.c.b16 %v2238, %v2237
        %v2350 = vpack.c.b16 %v2240, %v2239
        %v2351 = vpack.c.b16 %v2242, %v2241
        %v2352 = vpack.c.b16 %v2244, %v2243
        %v2353 = vpack.c.b16 %v2246, %v2245
        %v2354 = vpack.c.b16 %v2248, %v2247
        %v2355 = vpack.c.b16 %v2250, %v2249
        %v2356 = vpack.c.b16 %v2252, %v2251
        %v2357 = vpack.c.b16 %v2254, %v2253
        %v2358 = vpack.c.b16 %v2256, %v2255
        %v2359 = vpack.c.b16 %v2258, %v2257
        %v2360 = vpack.c.b16 %v2260, %v2259
        %v2361 = vpack.c.b16 %v2262, %v2261
        %v2362 = vpack.c.b16 %v2264, %v2263
        %v2363 = vpack.c.b16 %v2266, %v2265
        %v2364 = vpack.c.b16 %v2268, %v2267
        %v2365 = vpack.c.b16 %v2270, %v2269
        %v2366 = vpack.c.b16 %v2272, %v2271
        %v2367 = vpack.c.b16 %v2274, %v2273
        %v2368 = vpack.c.b16 %v2276, %v2275
        %v2369 = vpack.c.b16 %v2278, %v2277
        %v2370 = vpack.c.b16 %v2280, %v2279
        %v2371 = vpack.c.b16 %v2282, %v2281
        %v2372 = vpack.c.b16 %v2284, %v2283
        %v2373 = vpack.c.b16 %v2286, %v2285
        %v2374 = vpack.c.b16 %v2288, %v2287
        %v2375 = vpack.c.b16 %v2290, %v2289
        %v2376 = vpack.c.b16 %v2292, %v2291
        %v2377 = vpack.c.b16 %v2294, %v2293
        %v2378 = vpack.c.b16 %v2296, %v2295
        %v2379 = vpack.c.b16 %v2298, %v2297
        %v2380 = vpack.c.b16 %v2300, %v2299
        %v2381 = vpack.c.b16 %v2302, %v2301
        %v2382 = vpack.c.b16 %v2304, %v2303
        %v2383 = vpack.c.b16 %v2306, %v2305
        %v2384 = vpack.c.b16 %v2308, %v2307
        %v2385 = vpack.c.b16 %v2310, %v2309
        %v2386 = vpack.c.b16 %v2312, %v2311
        %v2387 = vpack.c.b16 %v2314, %v2313
        %v2388 = vpack.c.b16 %v2316, %v2315
        %v2389 = vpack.c.b16 %v2318, %v2317
        %v2390 = vpack.c.b16 %v2320, %v2319
        %v2391 = vpack.c.b16 %v2322, %v2321
        %v2392 = vpack.c.b16 %v2324, %v2323
        %v2393 = vpack.c.b16 %v2326, %v2325
        %v2394 = vpack.c.b16 %v2328, %v2327
        %v2395 = vpack.c.b16 %v2330, %v2329
        %v2396 = vpack.c.b16 %v2332, %v2331
        %2461 = vmatprep.subr.bf16.mxu0 0
        %2462 = vmatpush1.bf16.msra.mxu0 %v2333
        %2463 = vmatprep.subr.bf16.mxu0 0
        %2464 = vmatpush1.bf16.msra.mxu0 %v2334
        %2465 = vmatprep.subr.bf16.mxu0 0
        %2466 = vmatpush1.bf16.msra.mxu0 %v2335
        %2467 = vmatprep.subr.bf16.mxu0 0
        %2468 = vmatpush1.bf16.msra.mxu0 %v2336
        %2469 = vmatprep.subr.bf16.mxu0 0
        %2470 = vmatpush1.bf16.msra.mxu0 %v2337
        %2471 = vmatprep.subr.bf16.mxu0 0
        %2472 = vmatpush1.bf16.msra.mxu0 %v2338
        %2473 = vmatprep.subr.bf16.mxu0 0
        %2474 = vmatpush1.bf16.msra.mxu0 %v2339
        %2475 = vmatprep.subr.bf16.mxu0 0
        %2476 = vmatpush1.bf16.msra.mxu0 %v2340
        %2477 = vmatprep.subr.bf16.mxu0 0
        %2478 = vmatpush1.bf16.msra.mxu0 %v2341
        %2479 = vmatprep.subr.bf16.mxu0 0
        %2480 = vmatpush1.bf16.msra.mxu0 %v2342
        %2481 = vmatprep.subr.bf16.mxu0 0
        %2482 = vmatpush1.bf16.msra.mxu0 %v2343
        %2483 = vmatprep.subr.bf16.mxu0 0
        %2484 = vmatpush1.bf16.msra.mxu0 %v2344
        %2485 = vmatprep.subr.bf16.mxu0 0
        %2486 = vmatpush1.bf16.msra.mxu0 %v2345
        %2487 = vmatprep.subr.bf16.mxu0 0
        %2488 = vmatpush1.bf16.msra.mxu0 %v2346
        %2489 = vmatprep.subr.bf16.mxu0 0
        %2490 = vmatpush1.bf16.msra.mxu0 %v2347
        %2491 = vmatprep.subr.bf16.mxu0 0
        %2492 = vmatpush1.bf16.msra.mxu0 %v2348
        %2493 = vmatprep.mubr.bf16.mxu0 %v1566
        %2494 = vmatmul.mubr.bf16.gmra.mrb[0].mxu0 %v1565
        %v2495 = vpop.f32.mrb[0].mxu0
        %v2496 = vadd.f32 0.0, %v2495
        %v2497 = vpop.f32.mrb[0].mxu0
        %v2498 = vpop.f32.mrb[0].mxu0
        %v2499 = vadd.f32 0.0, %v2498
        %v2500 = vpop.f32.mrb[0].mxu0
        %2501 = vmatprep.mubr.bf16.mxu0 %v1574
        %2502 = vmatmul.mubr.bf16.gmra.mrb[0].mxu0 %v1573
        %v2503 = vpop.f32.mrb[0].mxu0
        %v2504 = vadd.f32 0.0, %v2503
        %v2505 = vpop.f32.mrb[0].mxu0
        %v2506 = vpop.f32.mrb[0].mxu0
        %v2507 = vadd.f32 0.0, %v2506
        %v2508 = vpop.f32.mrb[0].mxu0
        %2509 = vmatprep.mubr.bf16.mxu0 %v1582
        %2510 = vmatmul.mubr.bf16.gmra.mrb[0].mxu0 %v1581
        %v2511 = vpop.f32.mrb[0].mxu0
        %v2512 = vadd.f32 0.0, %v2511
        %v2513 = vpop.f32.mrb[0].mxu0
        %v2514 = vpop.f32.mrb[0].mxu0
        %v2515 = vadd.f32 0.0, %v2514
        %v2516 = vpop.f32.mrb[0].mxu0
        %2517 = vmatprep.mubr.bf16.mxu0 %v1590
        %2518 = vmatmul.mubr.bf16.gmra.mrb[0].mxu0 %v1589
        %v2519 = vpop.f32.mrb[0].mxu0
        %v2520 = vadd.f32 0.0, %v2519
        %v2521 = vpop.f32.mrb[0].mxu0
        %v2522 = vpop.f32.mrb[0].mxu0
        %v2523 = vadd.f32 0.0, %v2522
        %v2524 = vpop.f32.mrb[0].mxu0
        %2525 = vmatprep.mubr.bf16.mxu0 %v1598
        %2526 = vmatmul.mubr.bf16.gmra.mrb[0].mxu0 %v1597
        %v2527 = vpop.f32.mrb[0].mxu0
        %v2528 = vadd.f32 0.0, %v2527
        %v2529 = vpop.f32.mrb[0].mxu0
        %v2530 = vpop.f32.mrb[0].mxu0
        %v2531 = vadd.f32 0.0, %v2530
        %v2532 = vpop.f32.mrb[0].mxu0
        %2533 = vmatprep.mubr.bf16.mxu0 %v1606
        %2534 = vmatmul.mubr.bf16.gmra.mrb[0].mxu0 %v1605
        %v2535 = vpop.f32.mrb[0].mxu0
        %v2536 = vadd.f32 0.0, %v2535
        %v2537 = vpop.f32.mrb[0].mxu0
        %v2538 = vpop.f32.mrb[0].mxu0
        %v2539 = vadd.f32 0.0, %v2538
        %v2540 = vpop.f32.mrb[0].mxu0
        %2541 = vmatprep.mubr.bf16.mxu0 %v1614
        %2542 = vmatmul.mubr.bf16.gmra.mrb[0].mxu0 %v1613
        %v2543 = vpop.f32.mrb[0].mxu0
        %v2544 = vadd.f32 0.0, %v2543
        %v2545 = vpop.f32.mrb[0].mxu0
        %v2546 = vpop.f32.mrb[0].mxu0
        %v2547 = vadd.f32 0.0, %v2546
        %v2548 = vpop.f32.mrb[0].mxu0
        %2549 = vmatprep.mubr.bf16.mxu0 %v1622
        %2550 = vmatmul.mubr.bf16.gmra.mrb[0].mxu0 %v1621
        %v2551 = vpop.f32.mrb[0].mxu0
        %v2552 = vadd.f32 0.0, %v2551
        %v2553 = vpop.f32.mrb[0].mxu0
        %v2554 = vpop.f32.mrb[0].mxu0
        %v2555 = vadd.f32 0.0, %v2554
        %v2556 = vpop.f32.mrb[0].mxu0
        %2557 = vmatprep.mubr.bf16.mxu0 %v1630
        %2558 = vmatmul.mubr.bf16.gmra.mrb[0].mxu0 %v1629
        %v2559 = vpop.f32.mrb[0].mxu0
        %v2560 = vadd.f32 0.0, %v2559
        %v2561 = vpop.f32.mrb[0].mxu0
        %v2562 = vpop.f32.mrb[0].mxu0
        %v2563 = vadd.f32 0.0, %v2562
        %v2564 = vpop.f32.mrb[0].mxu0
        %2565 = vmatprep.mubr.bf16.mxu0 %v1638
        %2566 = vmatmul.mubr.bf16.gmra.mrb[0].mxu0 %v1637
        %v2567 = vpop.f32.mrb[0].mxu0
        %v2568 = vadd.f32 0.0, %v2567
        %v2569 = vpop.f32.mrb[0].mxu0
        %v2570 = vpop.f32.mrb[0].mxu0
        %v2571 = vadd.f32 0.0, %v2570
        %v2572 = vpop.f32.mrb[0].mxu0
        %2573 = vmatprep.mubr.bf16.mxu0 %v1646
        %2574 = vmatmul.mubr.bf16.gmra.mrb[0].mxu0 %v1645
        %v2575 = vpop.f32.mrb[0].mxu0
        %v2576 = vadd.f32 0.0, %v2575
        %v2577 = vpop.f32.mrb[0].mxu0
        %v2578 = vpop.f32.mrb[0].mxu0
        %v2579 = vadd.f32 0.0, %v2578
        %v2580 = vpop.f32.mrb[0].mxu0
        %2581 = vmatprep.mubr.bf16.mxu0 %v1654
        %2582 = vmatmul.mubr.bf16.gmra.mrb[0].mxu0 %v1653
        %v2583 = vpop.f32.mrb[0].mxu0
        %v2584 = vadd.f32 0.0, %v2583
        %v2585 = vpop.f32.mrb[0].mxu0
        %v2586 = vpop.f32.mrb[0].mxu0
        %v2587 = vadd.f32 0.0, %v2586
        %v2588 = vpop.f32.mrb[0].mxu0
        %2589 = vmatprep.mubr.bf16.mxu0 %v1662
        %2590 = vmatmul.mubr.bf16.gmra.mrb[0].mxu0 %v1661
        %v2591 = vpop.f32.mrb[0].mxu0
        %v2592 = vadd.f32 0.0, %v2591
        %v2593 = vpop.f32.mrb[0].mxu0
        %v2594 = vpop.f32.mrb[0].mxu0
        %v2595 = vadd.f32 0.0, %v2594
        %v2596 = vpop.f32.mrb[0].mxu0
        %2597 = vmatprep.mubr.bf16.mxu0 %v1670
        %2598 = vmatmul.mubr.bf16.gmra.mrb[0].mxu0 %v1669
        %v2599 = vpop.f32.mrb[0].mxu0
        %v2600 = vadd.f32 0.0, %v2599
        %v2601 = vpop.f32.mrb[0].mxu0
        %v2602 = vpop.f32.mrb[0].mxu0
        %v2603 = vadd.f32 0.0, %v2602
        %v2604 = vpop.f32.mrb[0].mxu0
        %2605 = vmatprep.mubr.bf16.mxu0 %v1678
        %2606 = vmatmul.mubr.bf16.gmra.mrb[0].mxu0 %v1677
        %v2607 = vpop.f32.mrb[0].mxu0
        %v2608 = vadd.f32 0.0, %v2607
        %v2609 = vpop.f32.mrb[0].mxu0
        %v2610 = vpop.f32.mrb[0].mxu0
        %v2611 = vadd.f32 0.0, %v2610
        %v2612 = vpop.f32.mrb[0].mxu0
        %2613 = vmatprep.mubr.bf16.mxu0 %v1686
        %2614 = vmatmul.mubr.bf16.gmra.mrb[0].mxu0 %v1685
        %v2615 = vpop.f32.mrb[0].mxu0
        %v2616 = vadd.f32 0.0, %v2615
        %v2617 = vpop.f32.mrb[0].mxu0
        %v2618 = vpop.f32.mrb[0].mxu0
        %v2619 = vadd.f32 0.0, %v2618
        %v2620 = vpop.f32.mrb[0].mxu0
        %2621 = vmatprep.mubr.bf16.mxu0 %v1694
        %2622 = vmatmul.mubr.bf16.gmra.mrb[0].mxu0 %v1693
        %v2623 = vpop.f32.mrb[0].mxu0
        %v2624 = vadd.f32 0.0, %v2623
        %v2625 = vpop.f32.mrb[0].mxu0
        %v2626 = vpop.f32.mrb[0].mxu0
        %v2627 = vadd.f32 0.0, %v2626
        %v2628 = vpop.f32.mrb[0].mxu0
        %2629 = vmatprep.mubr.bf16.mxu0 %v1702
        %2630 = vmatmul.mubr.bf16.gmra.mrb[0].mxu0 %v1701
        %v2631 = vpop.f32.mrb[0].mxu0
        %v2632 = vadd.f32 0.0, %v2631
        %v2633 = vpop.f32.mrb[0].mxu0
        %v2634 = vpop.f32.mrb[0].mxu0
        %v2635 = vadd.f32 0.0, %v2634
        %v2636 = vpop.f32.mrb[0].mxu0
        %2637 = vmatprep.mubr.bf16.mxu0 %v1710
        %2638 = vmatmul.mubr.bf16.gmra.mrb[0].mxu0 %v1709
        %v2639 = vpop.f32.mrb[0].mxu0
        %v2640 = vadd.f32 0.0, %v2639
        %v2641 = vpop.f32.mrb[0].mxu0
        %v2642 = vpop.f32.mrb[0].mxu0
        %v2643 = vadd.f32 0.0, %v2642
        %v2644 = vpop.f32.mrb[0].mxu0
        %2645 = vmatprep.mubr.bf16.mxu0 %v1718
        %2646 = vmatmul.mubr.bf16.gmra.mrb[0].mxu0 %v1717
        %v2647 = vpop.f32.mrb[0].mxu0
        %v2648 = vadd.f32 0.0, %v2647
        %v2649 = vpop.f32.mrb[0].mxu0
        %v2650 = vpop.f32.mrb[0].mxu0
        %v2651 = vadd.f32 0.0, %v2650
        %v2652 = vpop.f32.mrb[0].mxu0
        %2653 = vmatprep.mubr.bf16.mxu0 %v1726
        %2654 = vmatmul.mubr.bf16.gmra.mrb[0].mxu0 %v1725
        %v2655 = vpop.f32.mrb[0].mxu0
        %v2656 = vadd.f32 0.0, %v2655
        %v2657 = vpop.f32.mrb[0].mxu0
        %v2658 = vpop.f32.mrb[0].mxu0
        %v2659 = vadd.f32 0.0, %v2658
        %v2660 = vpop.f32.mrb[0].mxu0
        %2661 = vmatprep.mubr.bf16.mxu0 %v1734
        %2662 = vmatmul.mubr.bf16.gmra.mrb[0].mxu0 %v1733
        %v2663 = vpop.f32.mrb[0].mxu0
        %v2664 = vadd.f32 0.0, %v2663
        %v2665 = vpop.f32.mrb[0].mxu0
        %v2666 = vpop.f32.mrb[0].mxu0
        %v2667 = vadd.f32 0.0, %v2666
        %v2668 = vpop.f32.mrb[0].mxu0
        %2669 = vmatprep.mubr.bf16.mxu0 %v1742
        %2670 = vmatmul.mubr.bf16.gmra.mrb[0].mxu0 %v1741
        %v2671 = vpop.f32.mrb[0].mxu0
        %v2672 = vadd.f32 0.0, %v2671
        %v2673 = vpop.f32.mrb[0].mxu0
        %v2674 = vpop.f32.mrb[0].mxu0
        %v2675 = vadd.f32 0.0, %v2674
        %v2676 = vpop.f32.mrb[0].mxu0
        %2677 = vmatprep.mubr.bf16.mxu0 %v1750
        %2678 = vmatmul.mubr.bf16.gmra.mrb[0].mxu0 %v1749
        %v2679 = vpop.f32.mrb[0].mxu0
        %v2680 = vadd.f32 0.0, %v2679
        %v2681 = vpop.f32.mrb[0].mxu0
        %v2682 = vpop.f32.mrb[0].mxu0
        %v2683 = vadd.f32 0.0, %v2682
        %v2684 = vpop.f32.mrb[0].mxu0
        %2685 = vmatprep.mubr.bf16.mxu0 %v1758
        %2686 = vmatmul.mubr.bf16.gmra.mrb[0].mxu0 %v1757
        %v2687 = vpop.f32.mrb[0].mxu0
        %v2688 = vadd.f32 0.0, %v2687
        %v2689 = vpop.f32.mrb[0].mxu0
        %v2690 = vpop.f32.mrb[0].mxu0
        %v2691 = vadd.f32 0.0, %v2690
        %v2692 = vpop.f32.mrb[0].mxu0
        %2693 = vmatprep.mubr.bf16.mxu0 %v1766
        %2694 = vmatmul.mubr.bf16.gmra.mrb[0].mxu0 %v1765
        %v2695 = vpop.f32.mrb[0].mxu0
        %v2696 = vadd.f32 0.0, %v2695
        %v2697 = vpop.f32.mrb[0].mxu0
        %v2698 = vpop.f32.mrb[0].mxu0
        %v2699 = vadd.f32 0.0, %v2698
        %v2700 = vpop.f32.mrb[0].mxu0
        %2701 = vmatprep.mubr.bf16.mxu0 %v1774
        %2702 = vmatmul.mubr.bf16.gmra.mrb[0].mxu0 %v1773
        %v2703 = vpop.f32.mrb[0].mxu0
        %v2704 = vadd.f32 0.0, %v2703
        %v2705 = vpop.f32.mrb[0].mxu0
        %v2706 = vpop.f32.mrb[0].mxu0
        %v2707 = vadd.f32 0.0, %v2706
        %v2708 = vpop.f32.mrb[0].mxu0
        %2709 = vmatprep.mubr.bf16.mxu0 %v1782
        %2710 = vmatmul.mubr.bf16.gmra.mrb[0].mxu0 %v1781
        %v2711 = vpop.f32.mrb[0].mxu0
        %v2712 = vadd.f32 0.0, %v2711
        %v2713 = vpop.f32.mrb[0].mxu0
        %v2714 = vpop.f32.mrb[0].mxu0
        %v2715 = vadd.f32 0.0, %v2714
        %v2716 = vpop.f32.mrb[0].mxu0
        %2717 = vmatprep.mubr.bf16.mxu0 %v1790
        %2718 = vmatmul.mubr.bf16.gmra.mrb[0].mxu0 %v1789
        %v2719 = vpop.f32.mrb[0].mxu0
        %v2720 = vadd.f32 0.0, %v2719
        %v2721 = vpop.f32.mrb[0].mxu0
        %v2722 = vpop.f32.mrb[0].mxu0
        %v2723 = vadd.f32 0.0, %v2722
        %v2724 = vpop.f32.mrb[0].mxu0
        %2725 = vmatprep.mubr.bf16.mxu0 %v1798
        %2726 = vmatmul.mubr.bf16.gmra.mrb[0].mxu0 %v1797
        %v2727 = vpop.f32.mrb[0].mxu0
        %v2728 = vadd.f32 0.0, %v2727
        %v2729 = vpop.f32.mrb[0].mxu0
        %v2730 = vpop.f32.mrb[0].mxu0
        %v2731 = vadd.f32 0.0, %v2730
        %v2732 = vpop.f32.mrb[0].mxu0
        %2733 = vmatprep.mubr.bf16.mxu0 %v1806
        %2734 = vmatmul.mubr.bf16.gmra.mrb[0].mxu0 %v1805
        %v2735 = vpop.f32.mrb[0].mxu0
        %v2736 = vadd.f32 0.0, %v2735
        %v2737 = vpop.f32.mrb[0].mxu0
        %v2738 = vpop.f32.mrb[0].mxu0
        %v2739 = vadd.f32 0.0, %v2738
        %v2740 = vpop.f32.mrb[0].mxu0
        %2741 = vmatprep.mubr.bf16.mxu0 %v1814
        %2742 = vmatmul.mubr.bf16.gmra.mrb[0].mxu0 %v1813
        %v2743 = vpop.f32.mrb[0].mxu0
        %v2744 = vadd.f32 0.0, %v2743
        %v2745 = vpop.f32.mrb[0].mxu0
        %v2746 = vpop.f32.mrb[0].mxu0
        %v2747 = vadd.f32 0.0, %v2746
        %v2748 = vpop.f32.mrb[0].mxu0
        %2749 = vdwg.mxu0
        %2750 = vmatprep.subr.bf16.mxu0 0
        %2751 = vmatpush1.bf16.msra.mxu0 %v2349
        %2752 = vmatprep.subr.bf16.mxu0 0
        %2753 = vmatpush1.bf16.msra.mxu0 %v2350
        %2754 = vmatprep.subr.bf16.mxu0 0
        %2755 = vmatpush1.bf16.msra.mxu0 %v2351
        %2756 = vmatprep.subr.bf16.mxu0 0
        %2757 = vmatpush1.bf16.msra.mxu0 %v2352
        %2758 = vmatprep.subr.bf16.mxu0 0
        %2759 = vmatpush1.bf16.msra.mxu0 %v2353
        %2760 = vmatprep.subr.bf16.mxu0 0
        %2761 = vmatpush1.bf16.msra.mxu0 %v2354
        %2762 = vmatprep.subr.bf16.mxu0 0
        %2763 = vmatpush1.bf16.msra.mxu0 %v2355
        %2764 = vmatprep.subr.bf16.mxu0 0
        %2765 = vmatpush1.bf16.msra.mxu0 %v2356
        %2766 = vmatprep.subr.bf16.mxu0 0
        %2767 = vmatpush1.bf16.msra.mxu0 %v2357
        %2768 = vmatprep.subr.bf16.mxu0 0
        %2769 = vmatpush1.bf16.msra.mxu0 %v2358
        %2770 = vmatprep.subr.bf16.mxu0 0
        %2771 = vmatpush1.bf16.msra.mxu0 %v2359
        %2772 = vmatprep.subr.bf16.mxu0 0
        %2773 = vmatpush1.bf16.msra.mxu0 %v2360
        %2774 = vmatprep.subr.bf16.mxu0 0
        %2775 = vmatpush1.bf16.msra.mxu0 %v2361
        %2776 = vmatprep.subr.bf16.mxu0 0
        %2777 = vmatpush1.bf16.msra.mxu0 %v2362
        %2778 = vmatprep.subr.bf16.mxu0 0
        %2779 = vmatpush1.bf16.msra.mxu0 %v2363
        %2780 = vmatprep.subr.bf16.mxu0 0
        %2781 = vmatpush1.bf16.msra.mxu0 %v2364
        %2782 = vmatprep.mubr.bf16.mxu0 %v1568
        %2783 = vmatmul.mubr.bf16.gmra.mrb[0].mxu0 %v1567
        %v2784 = vpop.f32.mrb[0].mxu0
        %v2785 = vadd.f32 %v2496, %v2784
        %v2786 = vpop.f32.mrb[0].mxu0
        %v2787 = vpop.f32.mrb[0].mxu0
        %v2788 = vadd.f32 %v2499, %v2787
        %v2789 = vpop.f32.mrb[0].mxu0
        %2790 = vmatprep.mubr.bf16.mxu0 %v1576
        %2791 = vmatmul.mubr.bf16.gmra.mrb[0].mxu0 %v1575
        %v2792 = vpop.f32.mrb[0].mxu0
        %v2793 = vadd.f32 %v2504, %v2792
        %v2794 = vpop.f32.mrb[0].mxu0
        %v2795 = vpop.f32.mrb[0].mxu0
        %v2796 = vadd.f32 %v2507, %v2795
        %v2797 = vpop.f32.mrb[0].mxu0
        %2798 = vmatprep.mubr.bf16.mxu0 %v1584
        %2799 = vmatmul.mubr.bf16.gmra.mrb[0].mxu0 %v1583
        %v2800 = vpop.f32.mrb[0].mxu0
        %v2801 = vadd.f32 %v2512, %v2800
        %v2802 = vpop.f32.mrb[0].mxu0
        %v2803 = vpop.f32.mrb[0].mxu0
        %v2804 = vadd.f32 %v2515, %v2803
        %v2805 = vpop.f32.mrb[0].mxu0
        %2806 = vmatprep.mubr.bf16.mxu0 %v1592
        %2807 = vmatmul.mubr.bf16.gmra.mrb[0].mxu0 %v1591
        %v2808 = vpop.f32.mrb[0].mxu0
        %v2809 = vadd.f32 %v2520, %v2808
        %v2810 = vpop.f32.mrb[0].mxu0
        %v2811 = vpop.f32.mrb[0].mxu0
        %v2812 = vadd.f32 %v2523, %v2811
        %v2813 = vpop.f32.mrb[0].mxu0
        %2814 = vmatprep.mubr.bf16.mxu0 %v1600
        %2815 = vmatmul.mubr.bf16.gmra.mrb[0].mxu0 %v1599
        %v2816 = vpop.f32.mrb[0].mxu0
        %v2817 = vadd.f32 %v2528, %v2816
        %v2818 = vpop.f32.mrb[0].mxu0
        %v2819 = vpop.f32.mrb[0].mxu0
        %v2820 = vadd.f32 %v2531, %v2819
        %v2821 = vpop.f32.mrb[0].mxu0
        %2822 = vmatprep.mubr.bf16.mxu0 %v1608
        %2823 = vmatmul.mubr.bf16.gmra.mrb[0].mxu0 %v1607
        %v2824 = vpop.f32.mrb[0].mxu0
        %v2825 = vadd.f32 %v2536, %v2824
        %v2826 = vpop.f32.mrb[0].mxu0
        %v2827 = vpop.f32.mrb[0].mxu0
        %v2828 = vadd.f32 %v2539, %v2827
        %v2829 = vpop.f32.mrb[0].mxu0
        %2830 = vmatprep.mubr.bf16.mxu0 %v1616
        %2831 = vmatmul.mubr.bf16.gmra.mrb[0].mxu0 %v1615
        %v2832 = vpop.f32.mrb[0].mxu0
        %v2833 = vadd.f32 %v2544, %v2832
        %v2834 = vpop.f32.mrb[0].mxu0
        %v2835 = vpop.f32.mrb[0].mxu0
        %v2836 = vadd.f32 %v2547, %v2835
        %v2837 = vpop.f32.mrb[0].mxu0
        %2838 = vmatprep.mubr.bf16.mxu0 %v1624
        %2839 = vmatmul.mubr.bf16.gmra.mrb[0].mxu0 %v1623
        %v2840 = vpop.f32.mrb[0].mxu0
        %v2841 = vadd.f32 %v2552, %v2840
        %v2842 = vpop.f32.mrb[0].mxu0
        %v2843 = vpop.f32.mrb[0].mxu0
        %v2844 = vadd.f32 %v2555, %v2843
        %v2845 = vpop.f32.mrb[0].mxu0
        %2846 = vmatprep.mubr.bf16.mxu0 %v1632
        %2847 = vmatmul.mubr.bf16.gmra.mrb[0].mxu0 %v1631
        %v2848 = vpop.f32.mrb[0].mxu0
        %v2849 = vadd.f32 %v2560, %v2848
        %v2850 = vpop.f32.mrb[0].mxu0
        %v2851 = vpop.f32.mrb[0].mxu0
        %v2852 = vadd.f32 %v2563, %v2851
        %v2853 = vpop.f32.mrb[0].mxu0
        %2854 = vmatprep.mubr.bf16.mxu0 %v1640
        %2855 = vmatmul.mubr.bf16.gmra.mrb[0].mxu0 %v1639
        %v2856 = vpop.f32.mrb[0].mxu0
        %v2857 = vadd.f32 %v2568, %v2856
        %v2858 = vpop.f32.mrb[0].mxu0
        %v2859 = vpop.f32.mrb[0].mxu0
        %v2860 = vadd.f32 %v2571, %v2859
        %v2861 = vpop.f32.mrb[0].mxu0
        %2862 = vmatprep.mubr.bf16.mxu0 %v1648
        %2863 = vmatmul.mubr.bf16.gmra.mrb[0].mxu0 %v1647
        %v2864 = vpop.f32.mrb[0].mxu0
        %v2865 = vadd.f32 %v2576, %v2864
        %v2866 = vpop.f32.mrb[0].mxu0
        %v2867 = vpop.f32.mrb[0].mxu0
        %v2868 = vadd.f32 %v2579, %v2867
        %v2869 = vpop.f32.mrb[0].mxu0
        %2870 = vmatprep.mubr.bf16.mxu0 %v1656
        %2871 = vmatmul.mubr.bf16.gmra.mrb[0].mxu0 %v1655
        %v2872 = vpop.f32.mrb[0].mxu0
        %v2873 = vadd.f32 %v2584, %v2872
        %v2874 = vpop.f32.mrb[0].mxu0
        %v2875 = vpop.f32.mrb[0].mxu0
        %v2876 = vadd.f32 %v2587, %v2875
        %v2877 = vpop.f32.mrb[0].mxu0
        %2878 = vmatprep.mubr.bf16.mxu0 %v1664
        %2879 = vmatmul.mubr.bf16.gmra.mrb[0].mxu0 %v1663
        %v2880 = vpop.f32.mrb[0].mxu0
        %v2881 = vadd.f32 %v2592, %v2880
        %v2882 = vpop.f32.mrb[0].mxu0
        %v2883 = vpop.f32.mrb[0].mxu0
        %v2884 = vadd.f32 %v2595, %v2883
        %v2885 = vpop.f32.mrb[0].mxu0
        %2886 = vmatprep.mubr.bf16.mxu0 %v1672
        %2887 = vmatmul.mubr.bf16.gmra.mrb[0].mxu0 %v1671
        %v2888 = vpop.f32.mrb[0].mxu0
        %v2889 = vadd.f32 %v2600, %v2888
        %v2890 = vpop.f32.mrb[0].mxu0
        %v2891 = vpop.f32.mrb[0].mxu0
        %v2892 = vadd.f32 %v2603, %v2891
        %v2893 = vpop.f32.mrb[0].mxu0
        %2894 = vmatprep.mubr.bf16.mxu0 %v1680
        %2895 = vmatmul.mubr.bf16.gmra.mrb[0].mxu0 %v1679
        %v2896 = vpop.f32.mrb[0].mxu0
        %v2897 = vadd.f32 %v2608, %v2896
        %v2898 = vpop.f32.mrb[0].mxu0
        %v2899 = vpop.f32.mrb[0].mxu0
        %v2900 = vadd.f32 %v2611, %v2899
        %v2901 = vpop.f32.mrb[0].mxu0
        %2902 = vmatprep.mubr.bf16.mxu0 %v1688
        %2903 = vmatmul.mubr.bf16.gmra.mrb[0].mxu0 %v1687
        %v2904 = vpop.f32.mrb[0].mxu0
        %v2905 = vadd.f32 %v2616, %v2904
        %v2906 = vpop.f32.mrb[0].mxu0
        %v2907 = vpop.f32.mrb[0].mxu0
        %v2908 = vadd.f32 %v2619, %v2907
        %v2909 = vpop.f32.mrb[0].mxu0
        %2910 = vmatprep.mubr.bf16.mxu0 %v1696
        %2911 = vmatmul.mubr.bf16.gmra.mrb[0].mxu0 %v1695
        %v2912 = vpop.f32.mrb[0].mxu0
        %v2913 = vadd.f32 %v2624, %v2912
        %v2914 = vpop.f32.mrb[0].mxu0
        %v2915 = vpop.f32.mrb[0].mxu0
        %v2916 = vadd.f32 %v2627, %v2915
        %v2917 = vpop.f32.mrb[0].mxu0
        %2918 = vmatprep.mubr.bf16.mxu0 %v1704
        %2919 = vmatmul.mubr.bf16.gmra.mrb[0].mxu0 %v1703
        %v2920 = vpop.f32.mrb[0].mxu0
        %v2921 = vadd.f32 %v2632, %v2920
        %v2922 = vpop.f32.mrb[0].mxu0
        %v2923 = vpop.f32.mrb[0].mxu0
        %v2924 = vadd.f32 %v2635, %v2923
        %v2925 = vpop.f32.mrb[0].mxu0
        %2926 = vmatprep.mubr.bf16.mxu0 %v1712
        %2927 = vmatmul.mubr.bf16.gmra.mrb[0].mxu0 %v1711
        %v2928 = vpop.f32.mrb[0].mxu0
        %v2929 = vadd.f32 %v2640, %v2928
        %v2930 = vpop.f32.mrb[0].mxu0
        %v2931 = vpop.f32.mrb[0].mxu0
        %v2932 = vadd.f32 %v2643, %v2931
        %v2933 = vpop.f32.mrb[0].mxu0
        %2934 = vmatprep.mubr.bf16.mxu0 %v1720
        %2935 = vmatmul.mubr.bf16.gmra.mrb[0].mxu0 %v1719
        %v2936 = vpop.f32.mrb[0].mxu0
        %v2937 = vadd.f32 %v2648, %v2936
        %v2938 = vpop.f32.mrb[0].mxu0
        %v2939 = vpop.f32.mrb[0].mxu0
        %v2940 = vadd.f32 %v2651, %v2939
        %v2941 = vpop.f32.mrb[0].mxu0
        %2942 = vmatprep.mubr.bf16.mxu0 %v1728
        %2943 = vmatmul.mubr.bf16.gmra.mrb[0].mxu0 %v1727
        %v2944 = vpop.f32.mrb[0].mxu0
        %v2945 = vadd.f32 %v2656, %v2944
        %v2946 = vpop.f32.mrb[0].mxu0
        %v2947 = vpop.f32.mrb[0].mxu0
        %v2948 = vadd.f32 %v2659, %v2947
        %v2949 = vpop.f32.mrb[0].mxu0
        %2950 = vmatprep.mubr.bf16.mxu0 %v1736
        %2951 = vmatmul.mubr.bf16.gmra.mrb[0].mxu0 %v1735
        %v2952 = vpop.f32.mrb[0].mxu0
        %v2953 = vadd.f32 %v2664, %v2952
        %v2954 = vpop.f32.mrb[0].mxu0
        %v2955 = vpop.f32.mrb[0].mxu0
        %v2956 = vadd.f32 %v2667, %v2955
        %v2957 = vpop.f32.mrb[0].mxu0
        %2958 = vmatprep.mubr.bf16.mxu0 %v1744
        %2959 = vmatmul.mubr.bf16.gmra.mrb[0].mxu0 %v1743
        %v2960 = vpop.f32.mrb[0].mxu0
        %v2961 = vadd.f32 %v2672, %v2960
        %v2962 = vpop.f32.mrb[0].mxu0
        %v2963 = vpop.f32.mrb[0].mxu0
        %v2964 = vadd.f32 %v2675, %v2963
        %v2965 = vpop.f32.mrb[0].mxu0
        %2966 = vmatprep.mubr.bf16.mxu0 %v1752
        %2967 = vmatmul.mubr.bf16.gmra.mrb[0].mxu0 %v1751
        %v2968 = vpop.f32.mrb[0].mxu0
        %v2969 = vadd.f32 %v2680, %v2968
        %v2970 = vpop.f32.mrb[0].mxu0
        %v2971 = vpop.f32.mrb[0].mxu0
        %v2972 = vadd.f32 %v2683, %v2971
        %v2973 = vpop.f32.mrb[0].mxu0
        %2974 = vmatprep.mubr.bf16.mxu0 %v1760
        %2975 = vmatmul.mubr.bf16.gmra.mrb[0].mxu0 %v1759
        %v2976 = vpop.f32.mrb[0].mxu0
        %v2977 = vadd.f32 %v2688, %v2976
        %v2978 = vpop.f32.mrb[0].mxu0
        %v2979 = vpop.f32.mrb[0].mxu0
        %v2980 = vadd.f32 %v2691, %v2979
        %v2981 = vpop.f32.mrb[0].mxu0
        %2982 = vmatprep.mubr.bf16.mxu0 %v1768
        %2983 = vmatmul.mubr.bf16.gmra.mrb[0].mxu0 %v1767
        %v2984 = vpop.f32.mrb[0].mxu0
        %v2985 = vadd.f32 %v2696, %v2984
        %v2986 = vpop.f32.mrb[0].mxu0
        %v2987 = vpop.f32.mrb[0].mxu0
        %v2988 = vadd.f32 %v2699, %v2987
        %v2989 = vpop.f32.mrb[0].mxu0
        %2990 = vmatprep.mubr.bf16.mxu0 %v1776
        %2991 = vmatmul.mubr.bf16.gmra.mrb[0].mxu0 %v1775
        %v2992 = vpop.f32.mrb[0].mxu0
        %v2993 = vadd.f32 %v2704, %v2992
        %v2994 = vpop.f32.mrb[0].mxu0
        %v2995 = vpop.f32.mrb[0].mxu0
        %v2996 = vadd.f32 %v2707, %v2995
        %v2997 = vpop.f32.mrb[0].mxu0
        %2998 = vmatprep.mubr.bf16.mxu0 %v1784
        %2999 = vmatmul.mubr.bf16.gmra.mrb[0].mxu0 %v1783
        %v3000 = vpop.f32.mrb[0].mxu0
        %v3001 = vadd.f32 %v2712, %v3000
        %v3002 = vpop.f32.mrb[0].mxu0
        %v3003 = vpop.f32.mrb[0].mxu0
        %v3004 = vadd.f32 %v2715, %v3003
        %v3005 = vpop.f32.mrb[0].mxu0
        %3006 = vmatprep.mubr.bf16.mxu0 %v1792
        %3007 = vmatmul.mubr.bf16.gmra.mrb[0].mxu0 %v1791
        %v3008 = vpop.f32.mrb[0].mxu0
        %v3009 = vadd.f32 %v2720, %v3008
        %v3010 = vpop.f32.mrb[0].mxu0
        %v3011 = vpop.f32.mrb[0].mxu0
        %v3012 = vadd.f32 %v2723, %v3011
        %v3013 = vpop.f32.mrb[0].mxu0
        %3014 = vmatprep.mubr.bf16.mxu0 %v1800
        %3015 = vmatmul.mubr.bf16.gmra.mrb[0].mxu0 %v1799
        %v3016 = vpop.f32.mrb[0].mxu0
        %v3017 = vadd.f32 %v2728, %v3016
        %v3018 = vpop.f32.mrb[0].mxu0
        %v3019 = vpop.f32.mrb[0].mxu0
        %v3020 = vadd.f32 %v2731, %v3019
        %v3021 = vpop.f32.mrb[0].mxu0
        %3022 = vmatprep.mubr.bf16.mxu0 %v1808
        %3023 = vmatmul.mubr.bf16.gmra.mrb[0].mxu0 %v1807
        %v3024 = vpop.f32.mrb[0].mxu0
        %v3025 = vadd.f32 %v2736, %v3024
        %v3026 = vpop.f32.mrb[0].mxu0
        %v3027 = vpop.f32.mrb[0].mxu0
        %v3028 = vadd.f32 %v2739, %v3027
        %v3029 = vpop.f32.mrb[0].mxu0
        %3030 = vmatprep.mubr.bf16.mxu0 %v1816
        %3031 = vmatmul.mubr.bf16.gmra.mrb[0].mxu0 %v1815
        %v3032 = vpop.f32.mrb[0].mxu0
        %v3033 = vadd.f32 %v2744, %v3032
        %v3034 = vpop.f32.mrb[0].mxu0
        %v3035 = vpop.f32.mrb[0].mxu0
        %v3036 = vadd.f32 %v2747, %v3035
        %v3037 = vpop.f32.mrb[0].mxu0
        %3038 = vdwg.mxu0
        %3039 = vmatprep.subr.bf16.mxu0 0
        %3040 = vmatpush1.bf16.msra.mxu0 %v2365
        %3041 = vmatprep.subr.bf16.mxu0 0
        %3042 = vmatpush1.bf16.msra.mxu0 %v2366
        %3043 = vmatprep.subr.bf16.mxu0 0
        %3044 = vmatpush1.bf16.msra.mxu0 %v2367
        %3045 = vmatprep.subr.bf16.mxu0 0
        %3046 = vmatpush1.bf16.msra.mxu0 %v2368
        %3047 = vmatprep.subr.bf16.mxu0 0
        %3048 = vmatpush1.bf16.msra.mxu0 %v2369
        %3049 = vmatprep.subr.bf16.mxu0 0
        %3050 = vmatpush1.bf16.msra.mxu0 %v2370
        %3051 = vmatprep.subr.bf16.mxu0 0
        %3052 = vmatpush1.bf16.msra.mxu0 %v2371
        %3053 = vmatprep.subr.bf16.mxu0 0
        %3054 = vmatpush1.bf16.msra.mxu0 %v2372
        %3055 = vmatprep.subr.bf16.mxu0 0
        %3056 = vmatpush1.bf16.msra.mxu0 %v2373
        %3057 = vmatprep.subr.bf16.mxu0 0
        %3058 = vmatpush1.bf16.msra.mxu0 %v2374
        %3059 = vmatprep.subr.bf16.mxu0 0
        %3060 = vmatpush1.bf16.msra.mxu0 %v2375
        %3061 = vmatprep.subr.bf16.mxu0 0
        %3062 = vmatpush1.bf16.msra.mxu0 %v2376
        %3063 = vmatprep.subr.bf16.mxu0 0
        %3064 = vmatpush1.bf16.msra.mxu0 %v2377
        %3065 = vmatprep.subr.bf16.mxu0 0
        %3066 = vmatpush1.bf16.msra.mxu0 %v2378
        %3067 = vmatprep.subr.bf16.mxu0 0
        %3068 = vmatpush1.bf16.msra.mxu0 %v2379
        %3069 = vmatprep.subr.bf16.mxu0 0
        %3070 = vmatpush1.bf16.msra.mxu0 %v2380
        %3071 = vmatprep.mubr.bf16.mxu0 %v1570
        %3072 = vmatmul.mubr.bf16.gmra.mrb[0].mxu0 %v1569
        %v3073 = vpop.f32.mrb[0].mxu0
        %v3074 = vadd.f32 %v2785, %v3073
        %v3075 = vpop.f32.mrb[0].mxu0
        %v3076 = vpop.f32.mrb[0].mxu0
        %v3077 = vadd.f32 %v2788, %v3076
        %v3078 = vpop.f32.mrb[0].mxu0
        %3079 = vmatprep.mubr.bf16.mxu0 %v1578
        %3080 = vmatmul.mubr.bf16.gmra.mrb[0].mxu0 %v1577
        %v3081 = vpop.f32.mrb[0].mxu0
        %v3082 = vadd.f32 %v2793, %v3081
        %v3083 = vpop.f32.mrb[0].mxu0
        %v3084 = vpop.f32.mrb[0].mxu0
        %v3085 = vadd.f32 %v2796, %v3084
        %v3086 = vpop.f32.mrb[0].mxu0
        %3087 = vmatprep.mubr.bf16.mxu0 %v1586
        %3088 = vmatmul.mubr.bf16.gmra.mrb[0].mxu0 %v1585
        %v3089 = vpop.f32.mrb[0].mxu0
        %v3090 = vadd.f32 %v2801, %v3089
        %v3091 = vpop.f32.mrb[0].mxu0
        %v3092 = vpop.f32.mrb[0].mxu0
        %v3093 = vadd.f32 %v2804, %v3092
        %v3094 = vpop.f32.mrb[0].mxu0
        %3095 = vmatprep.mubr.bf16.mxu0 %v1594
        %3096 = vmatmul.mubr.bf16.gmra.mrb[0].mxu0 %v1593
        %v3097 = vpop.f32.mrb[0].mxu0
        %v3098 = vadd.f32 %v2809, %v3097
        %v3099 = vpop.f32.mrb[0].mxu0
        %v3100 = vpop.f32.mrb[0].mxu0
        %v3101 = vadd.f32 %v2812, %v3100
        %v3102 = vpop.f32.mrb[0].mxu0
        %3103 = vmatprep.mubr.bf16.mxu0 %v1602
        %3104 = vmatmul.mubr.bf16.gmra.mrb[0].mxu0 %v1601
        %v3105 = vpop.f32.mrb[0].mxu0
        %v3106 = vadd.f32 %v2817, %v3105
        %v3107 = vpop.f32.mrb[0].mxu0
        %v3108 = vpop.f32.mrb[0].mxu0
        %v3109 = vadd.f32 %v2820, %v3108
        %v3110 = vpop.f32.mrb[0].mxu0
        %3111 = vmatprep.mubr.bf16.mxu0 %v1610
        %3112 = vmatmul.mubr.bf16.gmra.mrb[0].mxu0 %v1609
        %v3113 = vpop.f32.mrb[0].mxu0
        %v3114 = vadd.f32 %v2825, %v3113
        %v3115 = vpop.f32.mrb[0].mxu0
        %v3116 = vpop.f32.mrb[0].mxu0
        %v3117 = vadd.f32 %v2828, %v3116
        %v3118 = vpop.f32.mrb[0].mxu0
        %3119 = vmatprep.mubr.bf16.mxu0 %v1618
        %3120 = vmatmul.mubr.bf16.gmra.mrb[0].mxu0 %v1617
        %v3121 = vpop.f32.mrb[0].mxu0
        %v3122 = vadd.f32 %v2833, %v3121
        %v3123 = vpop.f32.mrb[0].mxu0
        %v3124 = vpop.f32.mrb[0].mxu0
        %v3125 = vadd.f32 %v2836, %v3124
        %v3126 = vpop.f32.mrb[0].mxu0
        %3127 = vmatprep.mubr.bf16.mxu0 %v1626
        %3128 = vmatmul.mubr.bf16.gmra.mrb[0].mxu0 %v1625
        %v3129 = vpop.f32.mrb[0].mxu0
        %v3130 = vadd.f32 %v2841, %v3129
        %v3131 = vpop.f32.mrb[0].mxu0
        %v3132 = vpop.f32.mrb[0].mxu0
        %v3133 = vadd.f32 %v2844, %v3132
        %v3134 = vpop.f32.mrb[0].mxu0
        %3135 = vmatprep.mubr.bf16.mxu0 %v1634
        %3136 = vmatmul.mubr.bf16.gmra.mrb[0].mxu0 %v1633
        %v3137 = vpop.f32.mrb[0].mxu0
        %v3138 = vadd.f32 %v2849, %v3137
        %v3139 = vpop.f32.mrb[0].mxu0
        %v3140 = vpop.f32.mrb[0].mxu0
        %v3141 = vadd.f32 %v2852, %v3140
        %v3142 = vpop.f32.mrb[0].mxu0
        %3143 = vmatprep.mubr.bf16.mxu0 %v1642
        %3144 = vmatmul.mubr.bf16.gmra.mrb[0].mxu0 %v1641
        %v3145 = vpop.f32.mrb[0].mxu0
        %v3146 = vadd.f32 %v2857, %v3145
        %v3147 = vpop.f32.mrb[0].mxu0
        %v3148 = vpop.f32.mrb[0].mxu0
        %v3149 = vadd.f32 %v2860, %v3148
        %v3150 = vpop.f32.mrb[0].mxu0
        %3151 = vmatprep.mubr.bf16.mxu0 %v1650
        %3152 = vmatmul.mubr.bf16.gmra.mrb[0].mxu0 %v1649
        %v3153 = vpop.f32.mrb[0].mxu0
        %v3154 = vadd.f32 %v2865, %v3153
        %v3155 = vpop.f32.mrb[0].mxu0
        %v3156 = vpop.f32.mrb[0].mxu0
        %v3157 = vadd.f32 %v2868, %v3156
        %v3158 = vpop.f32.mrb[0].mxu0
        %3159 = vmatprep.mubr.bf16.mxu0 %v1658
        %3160 = vmatmul.mubr.bf16.gmra.mrb[0].mxu0 %v1657
        %v3161 = vpop.f32.mrb[0].mxu0
        %v3162 = vadd.f32 %v2873, %v3161
        %v3163 = vpop.f32.mrb[0].mxu0
        %v3164 = vpop.f32.mrb[0].mxu0
        %v3165 = vadd.f32 %v2876, %v3164
        %v3166 = vpop.f32.mrb[0].mxu0
        %3167 = vmatprep.mubr.bf16.mxu0 %v1666
        %3168 = vmatmul.mubr.bf16.gmra.mrb[0].mxu0 %v1665
        %v3169 = vpop.f32.mrb[0].mxu0
        %v3170 = vadd.f32 %v2881, %v3169
        %v3171 = vpop.f32.mrb[0].mxu0
        %v3172 = vpop.f32.mrb[0].mxu0
        %v3173 = vadd.f32 %v2884, %v3172
        %v3174 = vpop.f32.mrb[0].mxu0
        %3175 = vmatprep.mubr.bf16.mxu0 %v1674
        %3176 = vmatmul.mubr.bf16.gmra.mrb[0].mxu0 %v1673
        %v3177 = vpop.f32.mrb[0].mxu0
        %v3178 = vadd.f32 %v2889, %v3177
        %v3179 = vpop.f32.mrb[0].mxu0
        %v3180 = vpop.f32.mrb[0].mxu0
        %v3181 = vadd.f32 %v2892, %v3180
        %v3182 = vpop.f32.mrb[0].mxu0
        %3183 = vmatprep.mubr.bf16.mxu0 %v1682
        %3184 = vmatmul.mubr.bf16.gmra.mrb[0].mxu0 %v1681
        %v3185 = vpop.f32.mrb[0].mxu0
        %v3186 = vadd.f32 %v2897, %v3185
        %v3187 = vpop.f32.mrb[0].mxu0
        %v3188 = vpop.f32.mrb[0].mxu0
        %v3189 = vadd.f32 %v2900, %v3188
        %v3190 = vpop.f32.mrb[0].mxu0
        %3191 = vmatprep.mubr.bf16.mxu0 %v1690
        %3192 = vmatmul.mubr.bf16.gmra.mrb[0].mxu0 %v1689
        %v3193 = vpop.f32.mrb[0].mxu0
        %v3194 = vadd.f32 %v2905, %v3193
        %v3195 = vpop.f32.mrb[0].mxu0
        %v3196 = vpop.f32.mrb[0].mxu0
        %v3197 = vadd.f32 %v2908, %v3196
        %v3198 = vpop.f32.mrb[0].mxu0
        %3199 = vmatprep.mubr.bf16.mxu0 %v1698
        %3200 = vmatmul.mubr.bf16.gmra.mrb[0].mxu0 %v1697
        %v3201 = vpop.f32.mrb[0].mxu0
        %v3202 = vadd.f32 %v2913, %v3201
        %v3203 = vpop.f32.mrb[0].mxu0
        %v3204 = vpop.f32.mrb[0].mxu0
        %v3205 = vadd.f32 %v2916, %v3204
        %v3206 = vpop.f32.mrb[0].mxu0
        %3207 = vmatprep.mubr.bf16.mxu0 %v1706
        %3208 = vmatmul.mubr.bf16.gmra.mrb[0].mxu0 %v1705
        %v3209 = vpop.f32.mrb[0].mxu0
        %v3210 = vadd.f32 %v2921, %v3209
        %v3211 = vpop.f32.mrb[0].mxu0
        %v3212 = vpop.f32.mrb[0].mxu0
        %v3213 = vadd.f32 %v2924, %v3212
        %v3214 = vpop.f32.mrb[0].mxu0
        %3215 = vmatprep.mubr.bf16.mxu0 %v1714
        %3216 = vmatmul.mubr.bf16.gmra.mrb[0].mxu0 %v1713
        %v3217 = vpop.f32.mrb[0].mxu0
        %v3218 = vadd.f32 %v2929, %v3217
        %v3219 = vpop.f32.mrb[0].mxu0
        %v3220 = vpop.f32.mrb[0].mxu0
        %v3221 = vadd.f32 %v2932, %v3220
        %v3222 = vpop.f32.mrb[0].mxu0
        %3223 = vmatprep.mubr.bf16.mxu0 %v1722
        %3224 = vmatmul.mubr.bf16.gmra.mrb[0].mxu0 %v1721
        %v3225 = vpop.f32.mrb[0].mxu0
        %v3226 = vadd.f32 %v2937, %v3225
        %v3227 = vpop.f32.mrb[0].mxu0
        %v3228 = vpop.f32.mrb[0].mxu0
        %v3229 = vadd.f32 %v2940, %v3228
        %v3230 = vpop.f32.mrb[0].mxu0
        %3231 = vmatprep.mubr.bf16.mxu0 %v1730
        %3232 = vmatmul.mubr.bf16.gmra.mrb[0].mxu0 %v1729
        %v3233 = vpop.f32.mrb[0].mxu0
        %v3234 = vadd.f32 %v2945, %v3233
        %v3235 = vpop.f32.mrb[0].mxu0
        %v3236 = vpop.f32.mrb[0].mxu0
        %v3237 = vadd.f32 %v2948, %v3236
        %v3238 = vpop.f32.mrb[0].mxu0
        %3239 = vmatprep.mubr.bf16.mxu0 %v1738
        %3240 = vmatmul.mubr.bf16.gmra.mrb[0].mxu0 %v1737
        %v3241 = vpop.f32.mrb[0].mxu0
        %v3242 = vadd.f32 %v2953, %v3241
        %v3243 = vpop.f32.mrb[0].mxu0
        %v3244 = vpop.f32.mrb[0].mxu0
        %v3245 = vadd.f32 %v2956, %v3244
        %v3246 = vpop.f32.mrb[0].mxu0
        %3247 = vmatprep.mubr.bf16.mxu0 %v1746
        %3248 = vmatmul.mubr.bf16.gmra.mrb[0].mxu0 %v1745
        %v3249 = vpop.f32.mrb[0].mxu0
        %v3250 = vadd.f32 %v2961, %v3249
        %v3251 = vpop.f32.mrb[0].mxu0
        %v3252 = vpop.f32.mrb[0].mxu0
        %v3253 = vadd.f32 %v2964, %v3252
        %v3254 = vpop.f32.mrb[0].mxu0
        %3255 = vmatprep.mubr.bf16.mxu0 %v1754
        %3256 = vmatmul.mubr.bf16.gmra.mrb[0].mxu0 %v1753
        %v3257 = vpop.f32.mrb[0].mxu0
        %v3258 = vadd.f32 %v2969, %v3257
        %v3259 = vpop.f32.mrb[0].mxu0
        %v3260 = vpop.f32.mrb[0].mxu0
        %v3261 = vadd.f32 %v2972, %v3260
        %v3262 = vpop.f32.mrb[0].mxu0
        %3263 = vmatprep.mubr.bf16.mxu0 %v1762
        %3264 = vmatmul.mubr.bf16.gmra.mrb[0].mxu0 %v1761
        %v3265 = vpop.f32.mrb[0].mxu0
        %v3266 = vadd.f32 %v2977, %v3265
        %v3267 = vpop.f32.mrb[0].mxu0
        %v3268 = vpop.f32.mrb[0].mxu0
        %v3269 = vadd.f32 %v2980, %v3268
        %v3270 = vpop.f32.mrb[0].mxu0
        %3271 = vmatprep.mubr.bf16.mxu0 %v1770
        %3272 = vmatmul.mubr.bf16.gmra.mrb[0].mxu0 %v1769
        %v3273 = vpop.f32.mrb[0].mxu0
        %v3274 = vadd.f32 %v2985, %v3273
        %v3275 = vpop.f32.mrb[0].mxu0
        %v3276 = vpop.f32.mrb[0].mxu0
        %v3277 = vadd.f32 %v2988, %v3276
        %v3278 = vpop.f32.mrb[0].mxu0
        %3279 = vmatprep.mubr.bf16.mxu0 %v1778
        %3280 = vmatmul.mubr.bf16.gmra.mrb[0].mxu0 %v1777
        %v3281 = vpop.f32.mrb[0].mxu0
        %v3282 = vadd.f32 %v2993, %v3281
        %v3283 = vpop.f32.mrb[0].mxu0
        %v3284 = vpop.f32.mrb[0].mxu0
        %v3285 = vadd.f32 %v2996, %v3284
        %v3286 = vpop.f32.mrb[0].mxu0
        %3287 = vmatprep.mubr.bf16.mxu0 %v1786
        %3288 = vmatmul.mubr.bf16.gmra.mrb[0].mxu0 %v1785
        %v3289 = vpop.f32.mrb[0].mxu0
        %v3290 = vadd.f32 %v3001, %v3289
        %v3291 = vpop.f32.mrb[0].mxu0
        %v3292 = vpop.f32.mrb[0].mxu0
        %v3293 = vadd.f32 %v3004, %v3292
        %v3294 = vpop.f32.mrb[0].mxu0
        %3295 = vmatprep.mubr.bf16.mxu0 %v1794
        %3296 = vmatmul.mubr.bf16.gmra.mrb[0].mxu0 %v1793
        %v3297 = vpop.f32.mrb[0].mxu0
        %v3298 = vadd.f32 %v3009, %v3297
        %v3299 = vpop.f32.mrb[0].mxu0
        %v3300 = vpop.f32.mrb[0].mxu0
        %v3301 = vadd.f32 %v3012, %v3300
        %v3302 = vpop.f32.mrb[0].mxu0
        %3303 = vmatprep.mubr.bf16.mxu0 %v1802
        %3304 = vmatmul.mubr.bf16.gmra.mrb[0].mxu0 %v1801
        %v3305 = vpop.f32.mrb[0].mxu0
        %v3306 = vadd.f32 %v3017, %v3305
        %v3307 = vpop.f32.mrb[0].mxu0
        %v3308 = vpop.f32.mrb[0].mxu0
        %v3309 = vadd.f32 %v3020, %v3308
        %v3310 = vpop.f32.mrb[0].mxu0
        %3311 = vmatprep.mubr.bf16.mxu0 %v1810
        %3312 = vmatmul.mubr.bf16.gmra.mrb[0].mxu0 %v1809
        %v3313 = vpop.f32.mrb[0].mxu0
        %v3314 = vadd.f32 %v3025, %v3313
        %v3315 = vpop.f32.mrb[0].mxu0
        %v3316 = vpop.f32.mrb[0].mxu0
        %v3317 = vadd.f32 %v3028, %v3316
        %v3318 = vpop.f32.mrb[0].mxu0
        %3319 = vmatprep.mubr.bf16.mxu0 %v1818
        %3320 = vmatmul.mubr.bf16.gmra.mrb[0].mxu0 %v1817
        %v3321 = vpop.f32.mrb[0].mxu0
        %v3322 = vadd.f32 %v3033, %v3321
        %v3323 = vpop.f32.mrb[0].mxu0
        %v3324 = vpop.f32.mrb[0].mxu0
        %v3325 = vadd.f32 %v3036, %v3324
        %v3326 = vpop.f32.mrb[0].mxu0
        %3327 = vdwg.mxu0
        %3328 = vmatprep.subr.bf16.mxu0 0
        %3329 = vmatpush1.bf16.msra.mxu0 %v2381
        %3330 = vmatprep.subr.bf16.mxu0 0
        %3331 = vmatpush1.bf16.msra.mxu0 %v2382
        %3332 = vmatprep.subr.bf16.mxu0 0
        %3333 = vmatpush1.bf16.msra.mxu0 %v2383
        %3334 = vmatprep.subr.bf16.mxu0 0
        %3335 = vmatpush1.bf16.msra.mxu0 %v2384
        %3336 = vmatprep.subr.bf16.mxu0 0
        %3337 = vmatpush1.bf16.msra.mxu0 %v2385
        %3338 = vmatprep.subr.bf16.mxu0 0
        %3339 = vmatpush1.bf16.msra.mxu0 %v2386
        %3340 = vmatprep.subr.bf16.mxu0 0
        %3341 = vmatpush1.bf16.msra.mxu0 %v2387
        %3342 = vmatprep.subr.bf16.mxu0 0
        %3343 = vmatpush1.bf16.msra.mxu0 %v2388
        %3344 = vmatprep.subr.bf16.mxu0 0
        %3345 = vmatpush1.bf16.msra.mxu0 %v2389
        %3346 = vmatprep.subr.bf16.mxu0 0
        %3347 = vmatpush1.bf16.msra.mxu0 %v2390
        %3348 = vmatprep.subr.bf16.mxu0 0
        %3349 = vmatpush1.bf16.msra.mxu0 %v2391
        %3350 = vmatprep.subr.bf16.mxu0 0
        %3351 = vmatpush1.bf16.msra.mxu0 %v2392
        %3352 = vmatprep.subr.bf16.mxu0 0
        %3353 = vmatpush1.bf16.msra.mxu0 %v2393
        %3354 = vmatprep.subr.bf16.mxu0 0
        %3355 = vmatpush1.bf16.msra.mxu0 %v2394
        %3356 = vmatprep.subr.bf16.mxu0 0
        %3357 = vmatpush1.bf16.msra.mxu0 %v2395
        %3358 = vmatprep.subr.bf16.mxu0 0
        %3359 = vmatpush1.bf16.msra.mxu0 %v2396
        %3360 = vmatprep.mubr.bf16.mxu0 %v1572
        %3361 = vmatmul.mubr.bf16.gmra.mrb[0].mxu0 %v1571
        %v3362 = vpop.f32.mrb[0].mxu0
        %v3363 = vadd.f32 %v3074, %v3362
        %v3364 = vpop.f32.mrb[0].mxu0
        %v3365 = vpop.f32.mrb[0].mxu0
        %v3366 = vadd.f32 %v3077, %v3365
        %v3367 = vpop.f32.mrb[0].mxu0
        %3368 = vmatprep.mubr.bf16.mxu0 %v1580
        %3369 = vmatmul.mubr.bf16.gmra.mrb[0].mxu0 %v1579
        %v3370 = vpop.f32.mrb[0].mxu0
        %v3371 = vadd.f32 %v3082, %v3370
        %v3372 = vpop.f32.mrb[0].mxu0
        %v3373 = vpop.f32.mrb[0].mxu0
        %v3374 = vadd.f32 %v3085, %v3373
        %v3375 = vpop.f32.mrb[0].mxu0
        %3376 = vmatprep.mubr.bf16.mxu0 %v1588
        %3377 = vmatmul.mubr.bf16.gmra.mrb[0].mxu0 %v1587
        %v3378 = vpop.f32.mrb[0].mxu0
        %v3379 = vadd.f32 %v3090, %v3378
        %v3380 = vpop.f32.mrb[0].mxu0
        %v3381 = vpop.f32.mrb[0].mxu0
        %v3382 = vadd.f32 %v3093, %v3381
        %v3383 = vpop.f32.mrb[0].mxu0
        %3384 = vmatprep.mubr.bf16.mxu0 %v1596
        %3385 = vmatmul.mubr.bf16.gmra.mrb[0].mxu0 %v1595
        %v3386 = vpop.f32.mrb[0].mxu0
        %v3387 = vadd.f32 %v3098, %v3386
        %v3388 = vpop.f32.mrb[0].mxu0
        %v3389 = vpop.f32.mrb[0].mxu0
        %v3390 = vadd.f32 %v3101, %v3389
        %v3391 = vpop.f32.mrb[0].mxu0
        %3392 = vmatprep.mubr.bf16.mxu0 %v1604
        %3393 = vmatmul.mubr.bf16.gmra.mrb[0].mxu0 %v1603
        %v3394 = vpop.f32.mrb[0].mxu0
        %v3395 = vadd.f32 %v3106, %v3394
        %v3396 = vpop.f32.mrb[0].mxu0
        %v3397 = vpop.f32.mrb[0].mxu0
        %v3398 = vadd.f32 %v3109, %v3397
        %v3399 = vpop.f32.mrb[0].mxu0
        %3400 = vmatprep.mubr.bf16.mxu0 %v1612
        %3401 = vmatmul.mubr.bf16.gmra.mrb[0].mxu0 %v1611
        %v3402 = vpop.f32.mrb[0].mxu0
        %v3403 = vadd.f32 %v3114, %v3402
        %v3404 = vpop.f32.mrb[0].mxu0
        %v3405 = vpop.f32.mrb[0].mxu0
        %v3406 = vadd.f32 %v3117, %v3405
        %v3407 = vpop.f32.mrb[0].mxu0
        %3408 = vmatprep.mubr.bf16.mxu0 %v1620
        %3409 = vmatmul.mubr.bf16.gmra.mrb[0].mxu0 %v1619
        %v3410 = vpop.f32.mrb[0].mxu0
        %v3411 = vadd.f32 %v3122, %v3410
        %v3412 = vpop.f32.mrb[0].mxu0
        %v3413 = vpop.f32.mrb[0].mxu0
        %v3414 = vadd.f32 %v3125, %v3413
        %v3415 = vpop.f32.mrb[0].mxu0
        %3416 = vmatprep.mubr.bf16.mxu0 %v1628
        %3417 = vmatmul.mubr.bf16.gmra.mrb[0].mxu0 %v1627
        %v3418 = vpop.f32.mrb[0].mxu0
        %v3419 = vadd.f32 %v3130, %v3418
        %v3420 = vpop.f32.mrb[0].mxu0
        %v3421 = vpop.f32.mrb[0].mxu0
        %v3422 = vadd.f32 %v3133, %v3421
        %v3423 = vpop.f32.mrb[0].mxu0
        %3424 = vmatprep.mubr.bf16.mxu0 %v1636
        %3425 = vmatmul.mubr.bf16.gmra.mrb[0].mxu0 %v1635
        %v3426 = vpop.f32.mrb[0].mxu0
        %v3427 = vadd.f32 %v3138, %v3426
        %v3428 = vpop.f32.mrb[0].mxu0
        %v3429 = vpop.f32.mrb[0].mxu0
        %v3430 = vadd.f32 %v3141, %v3429
        %v3431 = vpop.f32.mrb[0].mxu0
        %3432 = vmatprep.mubr.bf16.mxu0 %v1644
        %3433 = vmatmul.mubr.bf16.gmra.mrb[0].mxu0 %v1643
        %v3434 = vpop.f32.mrb[0].mxu0
        %v3435 = vadd.f32 %v3146, %v3434
        %v3436 = vpop.f32.mrb[0].mxu0
        %v3437 = vpop.f32.mrb[0].mxu0
        %v3438 = vadd.f32 %v3149, %v3437
        %v3439 = vpop.f32.mrb[0].mxu0
        %3440 = vmatprep.mubr.bf16.mxu0 %v1652
        %3441 = vmatmul.mubr.bf16.gmra.mrb[0].mxu0 %v1651
        %v3442 = vpop.f32.mrb[0].mxu0
        %v3443 = vadd.f32 %v3154, %v3442
        %v3444 = vpop.f32.mrb[0].mxu0
        %v3445 = vpop.f32.mrb[0].mxu0
        %v3446 = vadd.f32 %v3157, %v3445
        %v3447 = vpop.f32.mrb[0].mxu0
        %3448 = vmatprep.mubr.bf16.mxu0 %v1660
        %3449 = vmatmul.mubr.bf16.gmra.mrb[0].mxu0 %v1659
        %v3450 = vpop.f32.mrb[0].mxu0
        %v3451 = vadd.f32 %v3162, %v3450
        %v3452 = vpop.f32.mrb[0].mxu0
        %v3453 = vpop.f32.mrb[0].mxu0
        %v3454 = vadd.f32 %v3165, %v3453
        %v3455 = vpop.f32.mrb[0].mxu0
        %3456 = vmatprep.mubr.bf16.mxu0 %v1668
        %3457 = vmatmul.mubr.bf16.gmra.mrb[0].mxu0 %v1667
        %v3458 = vpop.f32.mrb[0].mxu0
        %v3459 = vadd.f32 %v3170, %v3458
        %v3460 = vpop.f32.mrb[0].mxu0
        %v3461 = vpop.f32.mrb[0].mxu0
        %v3462 = vadd.f32 %v3173, %v3461
        %v3463 = vpop.f32.mrb[0].mxu0
        %3464 = vmatprep.mubr.bf16.mxu0 %v1676
        %3465 = vmatmul.mubr.bf16.gmra.mrb[0].mxu0 %v1675
        %v3466 = vpop.f32.mrb[0].mxu0
        %v3467 = vadd.f32 %v3178, %v3466
        %v3468 = vpop.f32.mrb[0].mxu0
        %v3469 = vpop.f32.mrb[0].mxu0
        %v3470 = vadd.f32 %v3181, %v3469
        %v3471 = vpop.f32.mrb[0].mxu0
        %3472 = vmatprep.mubr.bf16.mxu0 %v1684
        %3473 = vmatmul.mubr.bf16.gmra.mrb[0].mxu0 %v1683
        %v3474 = vpop.f32.mrb[0].mxu0
        %v3475 = vadd.f32 %v3186, %v3474
        %v3476 = vpop.f32.mrb[0].mxu0
        %v3477 = vpop.f32.mrb[0].mxu0
        %v3478 = vadd.f32 %v3189, %v3477
        %v3479 = vpop.f32.mrb[0].mxu0
        %3480 = vmatprep.mubr.bf16.mxu0 %v1692
        %3481 = vmatmul.mubr.bf16.gmra.mrb[0].mxu0 %v1691
        %v3482 = vpop.f32.mrb[0].mxu0
        %v3483 = vadd.f32 %v3194, %v3482
        %v3484 = vpop.f32.mrb[0].mxu0
        %v3485 = vpop.f32.mrb[0].mxu0
        %v3486 = vadd.f32 %v3197, %v3485
        %v3487 = vpop.f32.mrb[0].mxu0
        %3488 = vmatprep.mubr.bf16.mxu0 %v1700
        %3489 = vmatmul.mubr.bf16.gmra.mrb[0].mxu0 %v1699
        %v3490 = vpop.f32.mrb[0].mxu0
        %v3491 = vadd.f32 %v3202, %v3490
        %v3492 = vpop.f32.mrb[0].mxu0
        %v3493 = vpop.f32.mrb[0].mxu0
        %v3494 = vadd.f32 %v3205, %v3493
        %v3495 = vpop.f32.mrb[0].mxu0
        %3496 = vmatprep.mubr.bf16.mxu0 %v1708
        %3497 = vmatmul.mubr.bf16.gmra.mrb[0].mxu0 %v1707
        %v3498 = vpop.f32.mrb[0].mxu0
        %v3499 = vadd.f32 %v3210, %v3498
        %v3500 = vpop.f32.mrb[0].mxu0
        %v3501 = vpop.f32.mrb[0].mxu0
        %v3502 = vadd.f32 %v3213, %v3501
        %v3503 = vpop.f32.mrb[0].mxu0
        %3504 = vmatprep.mubr.bf16.mxu0 %v1716
        %3505 = vmatmul.mubr.bf16.gmra.mrb[0].mxu0 %v1715
        %v3506 = vpop.f32.mrb[0].mxu0
        %v3507 = vadd.f32 %v3218, %v3506
        %v3508 = vpop.f32.mrb[0].mxu0
        %v3509 = vpop.f32.mrb[0].mxu0
        %v3510 = vadd.f32 %v3221, %v3509
        %v3511 = vpop.f32.mrb[0].mxu0
        %3512 = vmatprep.mubr.bf16.mxu0 %v1724
        %3513 = vmatmul.mubr.bf16.gmra.mrb[0].mxu0 %v1723
        %v3514 = vpop.f32.mrb[0].mxu0
        %v3515 = vadd.f32 %v3226, %v3514
        %v3516 = vpop.f32.mrb[0].mxu0
        %v3517 = vpop.f32.mrb[0].mxu0
        %v3518 = vadd.f32 %v3229, %v3517
        %v3519 = vpop.f32.mrb[0].mxu0
        %3520 = vmatprep.mubr.bf16.mxu0 %v1732
        %3521 = vmatmul.mubr.bf16.gmra.mrb[0].mxu0 %v1731
        %v3522 = vpop.f32.mrb[0].mxu0
        %v3523 = vadd.f32 %v3234, %v3522
        %v3524 = vpop.f32.mrb[0].mxu0
        %v3525 = vpop.f32.mrb[0].mxu0
        %v3526 = vadd.f32 %v3237, %v3525
        %v3527 = vpop.f32.mrb[0].mxu0
        %3528 = vmatprep.mubr.bf16.mxu0 %v1740
        %3529 = vmatmul.mubr.bf16.gmra.mrb[0].mxu0 %v1739
        %v3530 = vpop.f32.mrb[0].mxu0
        %v3531 = vadd.f32 %v3242, %v3530
        %v3532 = vpop.f32.mrb[0].mxu0
        %v3533 = vpop.f32.mrb[0].mxu0
        %v3534 = vadd.f32 %v3245, %v3533
        %v3535 = vpop.f32.mrb[0].mxu0
        %3536 = vmatprep.mubr.bf16.mxu0 %v1748
        %3537 = vmatmul.mubr.bf16.gmra.mrb[0].mxu0 %v1747
        %v3538 = vpop.f32.mrb[0].mxu0
        %v3539 = vadd.f32 %v3250, %v3538
        %v3540 = vpop.f32.mrb[0].mxu0
        %v3541 = vpop.f32.mrb[0].mxu0
        %v3542 = vadd.f32 %v3253, %v3541
        %v3543 = vpop.f32.mrb[0].mxu0
        %3544 = vmatprep.mubr.bf16.mxu0 %v1756
        %3545 = vmatmul.mubr.bf16.gmra.mrb[0].mxu0 %v1755
        %v3546 = vpop.f32.mrb[0].mxu0
        %v3547 = vadd.f32 %v3258, %v3546
        %v3548 = vpop.f32.mrb[0].mxu0
        %v3549 = vpop.f32.mrb[0].mxu0
        %v3550 = vadd.f32 %v3261, %v3549
        %v3551 = vpop.f32.mrb[0].mxu0
        %3552 = vmatprep.mubr.bf16.mxu0 %v1764
        %3553 = vmatmul.mubr.bf16.gmra.mrb[0].mxu0 %v1763
        %v3554 = vpop.f32.mrb[0].mxu0
        %v3555 = vadd.f32 %v3266, %v3554
        %v3556 = vpop.f32.mrb[0].mxu0
        %v3557 = vpop.f32.mrb[0].mxu0
        %v3558 = vadd.f32 %v3269, %v3557
        %v3559 = vpop.f32.mrb[0].mxu0
        %3560 = vmatprep.mubr.bf16.mxu0 %v1772
        %3561 = vmatmul.mubr.bf16.gmra.mrb[0].mxu0 %v1771
        %v3562 = vpop.f32.mrb[0].mxu0
        %v3563 = vadd.f32 %v3274, %v3562
        %v3564 = vpop.f32.mrb[0].mxu0
        %v3565 = vpop.f32.mrb[0].mxu0
        %v3566 = vadd.f32 %v3277, %v3565
        %v3567 = vpop.f32.mrb[0].mxu0
        %3568 = vmatprep.mubr.bf16.mxu0 %v1780
        %3569 = vmatmul.mubr.bf16.gmra.mrb[0].mxu0 %v1779
        %v3570 = vpop.f32.mrb[0].mxu0
        %v3571 = vadd.f32 %v3282, %v3570
        %v3572 = vpop.f32.mrb[0].mxu0
        %v3573 = vpop.f32.mrb[0].mxu0
        %v3574 = vadd.f32 %v3285, %v3573
        %v3575 = vpop.f32.mrb[0].mxu0
        %3576 = vmatprep.mubr.bf16.mxu0 %v1788
        %3577 = vmatmul.mubr.bf16.gmra.mrb[0].mxu0 %v1787
        %v3578 = vpop.f32.mrb[0].mxu0
        %v3579 = vadd.f32 %v3290, %v3578
        %v3580 = vpop.f32.mrb[0].mxu0
        %v3581 = vpop.f32.mrb[0].mxu0
        %v3582 = vadd.f32 %v3293, %v3581
        %v3583 = vpop.f32.mrb[0].mxu0
        %3584 = vmatprep.mubr.bf16.mxu0 %v1796
        %3585 = vmatmul.mubr.bf16.gmra.mrb[0].mxu0 %v1795
        %v3586 = vpop.f32.mrb[0].mxu0
        %v3587 = vadd.f32 %v3298, %v3586
        %v3588 = vpop.f32.mrb[0].mxu0
        %v3589 = vpop.f32.mrb[0].mxu0
        %v3590 = vadd.f32 %v3301, %v3589
        %v3591 = vpop.f32.mrb[0].mxu0
        %3592 = vmatprep.mubr.bf16.mxu0 %v1804
        %3593 = vmatmul.mubr.bf16.gmra.mrb[0].mxu0 %v1803
        %v3594 = vpop.f32.mrb[0].mxu0
        %v3595 = vadd.f32 %v3306, %v3594
        %v3596 = vpop.f32.mrb[0].mxu0
        %v3597 = vpop.f32.mrb[0].mxu0
        %v3598 = vadd.f32 %v3309, %v3597
        %v3599 = vpop.f32.mrb[0].mxu0
        %3600 = vmatprep.mubr.bf16.mxu0 %v1812
        %3601 = vmatmul.mubr.bf16.gmra.mrb[0].mxu0 %v1811
        %v3602 = vpop.f32.mrb[0].mxu0
        %v3603 = vadd.f32 %v3314, %v3602
        %v3604 = vpop.f32.mrb[0].mxu0
        %v3605 = vpop.f32.mrb[0].mxu0
        %v3606 = vadd.f32 %v3317, %v3605
        %v3607 = vpop.f32.mrb[0].mxu0
        %3608 = vmatprep.mubr.bf16.mxu0 %v1820
        %3609 = vmatmul.mubr.bf16.gmra.mrb[0].mxu0 %v1819
        %v3610 = vpop.f32.mrb[0].mxu0
        %v3611 = vadd.f32 %v3322, %v3610
        %v3612 = vpop.f32.mrb[0].mxu0
        %v3613 = vpop.f32.mrb[0].mxu0
        %v3614 = vadd.f32 %v3325, %v3613
        %v3615 = vpop.f32.mrb[0].mxu0
        %3616 = vdwg.mxu0
        %v3617 = vadd.f32 %v477, %v3363
        %v3618 = vadd.f32 %v478, %v3366
        %v3619 = vadd.f32 %v479, %v3371
        %v3620 = vadd.f32 %v480, %v3374
        %v3621 = vadd.f32 %v481, %v3379
        %v3622 = vadd.f32 %v482, %v3382
        %v3623 = vadd.f32 %v483, %v3387
        %v3624 = vadd.f32 %v484, %v3390
        %v3625 = vadd.f32 %v485, %v3395
        %v3626 = vadd.f32 %v486, %v3398
        %v3627 = vadd.f32 %v487, %v3403
        %v3628 = vadd.f32 %v488, %v3406
        %v3629 = vadd.f32 %v489, %v3411
        %v3630 = vadd.f32 %v490, %v3414
        %v3631 = vadd.f32 %v491, %v3419
        %v3632 = vadd.f32 %v492, %v3422
        %v3633 = vadd.f32 %v493, %v3427
        %v3634 = vadd.f32 %v494, %v3430
        %v3635 = vadd.f32 %v495, %v3435
        %v3636 = vadd.f32 %v496, %v3438
        %v3637 = vadd.f32 %v497, %v3443
        %v3638 = vadd.f32 %v498, %v3446
        %v3639 = vadd.f32 %v499, %v3451
        %v3640 = vadd.f32 %v500, %v3454
        %v3641 = vadd.f32 %v501, %v3459
        %v3642 = vadd.f32 %v502, %v3462
        %v3643 = vadd.f32 %v503, %v3467
        %v3644 = vadd.f32 %v504, %v3470
        %v3645 = vadd.f32 %v505, %v3475
        %v3646 = vadd.f32 %v506, %v3478
        %v3647 = vadd.f32 %v507, %v3483
        %v3648 = vadd.f32 %v508, %v3486
        %v3649 = vadd.f32 %v509, %v3491
        %v3650 = vadd.f32 %v510, %v3494
        %v3651 = vadd.f32 %v511, %v3499
        %v3652 = vadd.f32 %v512, %v3502
        %v3653 = vadd.f32 %v513, %v3507
        %v3654 = vadd.f32 %v514, %v3510
        %v3655 = vadd.f32 %v515, %v3515
        %v3656 = vadd.f32 %v516, %v3518
        %v3657 = vadd.f32 %v517, %v3523
        %v3658 = vadd.f32 %v518, %v3526
        %v3659 = vadd.f32 %v519, %v3531
        %v3660 = vadd.f32 %v520, %v3534
        %v3661 = vadd.f32 %v521, %v3539
        %v3662 = vadd.f32 %v522, %v3542
        %v3663 = vadd.f32 %v523, %v3547
        %v3664 = vadd.f32 %v524, %v3550
        %v3665 = vadd.f32 %v525, %v3555
        %v3666 = vadd.f32 %v526, %v3558
        %v3667 = vadd.f32 %v527, %v3563
        %v3668 = vadd.f32 %v528, %v3566
        %v3669 = vadd.f32 %v529, %v3571
        %v3670 = vadd.f32 %v530, %v3574
        %v3671 = vadd.f32 %v531, %v3579
        %v3672 = vadd.f32 %v532, %v3582
        %v3673 = vadd.f32 %v533, %v3587
        %v3674 = vadd.f32 %v534, %v3590
        %v3675 = vadd.f32 %v535, %v3595
        %v3676 = vadd.f32 %v536, %v3598
        %v3677 = vadd.f32 %v537, %v3603
        %v3678 = vadd.f32 %v538, %v3606
        %v3679 = vadd.f32 %v539, %v3611
        %v3680 = vadd.f32 %v540, %v3614
        %vm3681 = vcmask 523264
        %3682 = vst.msk [vmem:[#allocation2] sm:$0xff] %vm3681, %v3617
        %3683 = vst.msk [vmem:[#allocation2 + $0x8] sm:$0xff] %vm3681, %v3618
        %3684 = vst.msk [vmem:[#allocation2 + $0x10] sm:$0xff] %vm3681, %v3619
        %3685 = vst.msk [vmem:[#allocation2 + $0x18] sm:$0xff] %vm3681, %v3620
        %3686 = vst.msk [vmem:[#allocation2 + $0x20] sm:$0xff] %vm3681, %v3621
        %3687 = vst.msk [vmem:[#allocation2 + $0x28] sm:$0xff] %vm3681, %v3622
        %3688 = vst.msk [vmem:[#allocation2 + $0x30] sm:$0xff] %vm3681, %v3623
        %3689 = vst.msk [vmem:[#allocation2 + $0x38] sm:$0xff] %vm3681, %v3624
        %3690 = vst.msk [vmem:[#allocation2 + $0x40] sm:$0xff] %vm3681, %v3625
        %3691 = vst.msk [vmem:[#allocation2 + $0x48] sm:$0xff] %vm3681, %v3626
        %3692 = vst.msk [vmem:[#allocation2 + $0x50] sm:$0xff] %vm3681, %v3627
        %3693 = vst.msk [vmem:[#allocation2 + $0x58] sm:$0xff] %vm3681, %v3628
        %3694 = vst.msk [vmem:[#allocation2 + $0x60] sm:$0xff] %vm3681, %v3629
        %3695 = vst.msk [vmem:[#allocation2 + $0x68] sm:$0xff] %vm3681, %v3630
        %3696 = vst.msk [vmem:[#allocation2 + $0x70] sm:$0xff] %vm3681, %v3631
        %3697 = vst.msk [vmem:[#allocation2 + $0x78] sm:$0xff] %vm3681, %v3632
        %3698 = vst.msk [vmem:[#allocation2 + $0x80] sm:$0xff] %vm3681, %v3633
        %3699 = vst.msk [vmem:[#allocation2 + $0x88] sm:$0xff] %vm3681, %v3634
        %3700 = vst.msk [vmem:[#allocation2 + $0x90] sm:$0xff] %vm3681, %v3635
        %3701 = vst.msk [vmem:[#allocation2 + $0x98] sm:$0xff] %vm3681, %v3636
        %3702 = vst.msk [vmem:[#allocation2 + $0xa0] sm:$0xff] %vm3681, %v3637
        %3703 = vst.msk [vmem:[#allocation2 + $0xa8] sm:$0xff] %vm3681, %v3638
        %3704 = vst.msk [vmem:[#allocation2 + $0xb0] sm:$0xff] %vm3681, %v3639
        %3705 = vst.msk [vmem:[#allocation2 + $0xb8] sm:$0xff] %vm3681, %v3640
        %3706 = vst.msk [vmem:[#allocation2 + $0xc0] sm:$0xff] %vm3681, %v3641
        %3707 = vst.msk [vmem:[#allocation2 + $0xc8] sm:$0xff] %vm3681, %v3642
        %3708 = vst.msk [vmem:[#allocation2 + $0xd0] sm:$0xff] %vm3681, %v3643
        %3709 = vst.msk [vmem:[#allocation2 + $0xd8] sm:$0xff] %vm3681, %v3644
        %3710 = vst.msk [vmem:[#allocation2 + $0xe0] sm:$0xff] %vm3681, %v3645
        %3711 = vst.msk [vmem:[#allocation2 + $0xe8] sm:$0xff] %vm3681, %v3646
        %3712 = vst.msk [vmem:[#allocation2 + $0xf0] sm:$0xff] %vm3681, %v3647
        %3713 = vst.msk [vmem:[#allocation2 + $0xf8] sm:$0xff] %vm3681, %v3648
        %3714 = vst.msk [vmem:[#allocation2 + $0x100] sm:$0xff] %vm3681, %v3649
        %3715 = vst.msk [vmem:[#allocation2 + $0x108] sm:$0xff] %vm3681, %v3650
        %3716 = vst.msk [vmem:[#allocation2 + $0x110] sm:$0xff] %vm3681, %v3651
        %3717 = vst.msk [vmem:[#allocation2 + $0x118] sm:$0xff] %vm3681, %v3652
        %3718 = vst.msk [vmem:[#allocation2 + $0x120] sm:$0xff] %vm3681, %v3653
        %3719 = vst.msk [vmem:[#allocation2 + $0x128] sm:$0xff] %vm3681, %v3654
        %3720 = vst.msk [vmem:[#allocation2 + $0x130] sm:$0xff] %vm3681, %v3655
        %3721 = vst.msk [vmem:[#allocation2 + $0x138] sm:$0xff] %vm3681, %v3656
        %3722 = vst.msk [vmem:[#allocation2 + $0x140] sm:$0xff] %vm3681, %v3657
        %3723 = vst.msk [vmem:[#allocation2 + $0x148] sm:$0xff] %vm3681, %v3658
        %3724 = vst.msk [vmem:[#allocation2 + $0x150] sm:$0xff] %vm3681, %v3659
        %3725 = vst.msk [vmem:[#allocation2 + $0x158] sm:$0xff] %vm3681, %v3660
        %3726 = vst.msk [vmem:[#allocation2 + $0x160] sm:$0xff] %vm3681, %v3661
        %3727 = vst.msk [vmem:[#allocation2 + $0x168] sm:$0xff] %vm3681, %v3662
        %3728 = vst.msk [vmem:[#allocation2 + $0x170] sm:$0xff] %vm3681, %v3663
        %3729 = vst.msk [vmem:[#allocation2 + $0x178] sm:$0xff] %vm3681, %v3664
        %3730 = vst.msk [vmem:[#allocation2 + $0x180] sm:$0xff] %vm3681, %v3665
        %3731 = vst.msk [vmem:[#allocation2 + $0x188] sm:$0xff] %vm3681, %v3666
        %3732 = vst.msk [vmem:[#allocation2 + $0x190] sm:$0xff] %vm3681, %v3667
        %3733 = vst.msk [vmem:[#allocation2 + $0x198] sm:$0xff] %vm3681, %v3668
        %3734 = vst.msk [vmem:[#allocation2 + $0x1a0] sm:$0xff] %vm3681, %v3669
        %3735 = vst.msk [vmem:[#allocation2 + $0x1a8] sm:$0xff] %vm3681, %v3670
        %3736 = vst.msk [vmem:[#allocation2 + $0x1b0] sm:$0xff] %vm3681, %v3671
        %3737 = vst.msk [vmem:[#allocation2 + $0x1b8] sm:$0xff] %vm3681, %v3672
        %3738 = vst.msk [vmem:[#allocation2 + $0x1c0] sm:$0xff] %vm3681, %v3673
        %3739 = vst.msk [vmem:[#allocation2 + $0x1c8] sm:$0xff] %vm3681, %v3674
        %3740 = vst.msk [vmem:[#allocation2 + $0x1d0] sm:$0xff] %vm3681, %v3675
        %3741 = vst.msk [vmem:[#allocation2 + $0x1d8] sm:$0xff] %vm3681, %v3676
        %3742 = vst.msk [vmem:[#allocation2 + $0x1e0] sm:$0xff] %vm3681, %v3677
        %3743 = vst.msk [vmem:[#allocation2 + $0x1e8] sm:$0xff] %vm3681, %v3678
        %3744 = vst.msk [vmem:[#allocation2 + $0x1f0] sm:$0xff] %vm3681, %v3679
        %3745 = vst.msk [vmem:[#allocation2 + $0x1f8] sm:$0xff] %vm3681, %v3680
        %p3746 = scmp.eq.s32.totalorder %s24, 1
        // Predicated region
        $region41: #{lightgcn_propagate_layer.1} parent=31 // pred_check
          %p3747 = pneg %p3746
        $region42: #{lightgcn_propagate_layer.1} parent=31 // pred_check_branch
          %3749 = sbr.rel (%p3747) target = $region44
        $region43: #{lightgcn_propagate_layer.1} parent=31 // pred_region
          %v3750 = vld [vmem:[#allocation2] sm:$0xff]
          %v3751 = vld [vmem:[#allocation2 + $0x8] sm:$0xff]
          %v3752 = vld [vmem:[#allocation2 + $0x10] sm:$0xff]
          %v3753 = vld [vmem:[#allocation2 + $0x18] sm:$0xff]
          %v3754 = vld [vmem:[#allocation2 + $0x20] sm:$0xff]
          %v3755 = vld [vmem:[#allocation2 + $0x28] sm:$0xff]
          %v3756 = vld [vmem:[#allocation2 + $0x30] sm:$0xff]
          %v3757 = vld [vmem:[#allocation2 + $0x38] sm:$0xff]
          %v3758 = vld [vmem:[#allocation2 + $0x40] sm:$0xff]
          %v3759 = vld [vmem:[#allocation2 + $0x48] sm:$0xff]
          %v3760 = vld [vmem:[#allocation2 + $0x50] sm:$0xff]
          %v3761 = vld [vmem:[#allocation2 + $0x58] sm:$0xff]
          %v3762 = vld [vmem:[#allocation2 + $0x60] sm:$0xff]
          %v3763 = vld [vmem:[#allocation2 + $0x68] sm:$0xff]
          %v3764 = vld [vmem:[#allocation2 + $0x70] sm:$0xff]
          %v3765 = vld [vmem:[#allocation2 + $0x78] sm:$0xff]
          %v3766 = vld [vmem:[#allocation2 + $0x80] sm:$0xff]
          %v3767 = vld [vmem:[#allocation2 + $0x88] sm:$0xff]
          %v3768 = vld [vmem:[#allocation2 + $0x90] sm:$0xff]
          %v3769 = vld [vmem:[#allocation2 + $0x98] sm:$0xff]
          %v3770 = vld [vmem:[#allocation2 + $0xa0] sm:$0xff]
          %v3771 = vld [vmem:[#allocation2 + $0xa8] sm:$0xff]
          %v3772 = vld [vmem:[#allocation2 + $0xb0] sm:$0xff]
          %v3773 = vld [vmem:[#allocation2 + $0xb8] sm:$0xff]
          %v3774 = vld [vmem:[#allocation2 + $0xc0] sm:$0xff]
          %v3775 = vld [vmem:[#allocation2 + $0xc8] sm:$0xff]
          %v3776 = vld [vmem:[#allocation2 + $0xd0] sm:$0xff]
          %v3777 = vld [vmem:[#allocation2 + $0xd8] sm:$0xff]
          %v3778 = vld [vmem:[#allocation2 + $0xe0] sm:$0xff]
          %v3779 = vld [vmem:[#allocation2 + $0xe8] sm:$0xff]
          %v3780 = vld [vmem:[#allocation2 + $0xf0] sm:$0xff]
          %v3781 = vld [vmem:[#allocation2 + $0xf8] sm:$0xff]
          %v3782 = vld [vmem:[#allocation2 + $0x100] sm:$0xff]
          %v3783 = vld [vmem:[#allocation2 + $0x108] sm:$0xff]
          %v3784 = vld [vmem:[#allocation2 + $0x110] sm:$0xff]
          %v3785 = vld [vmem:[#allocation2 + $0x118] sm:$0xff]
          %v3786 = vld [vmem:[#allocation2 + $0x120] sm:$0xff]
          %v3787 = vld [vmem:[#allocation2 + $0x128] sm:$0xff]
          %v3788 = vld [vmem:[#allocation2 + $0x130] sm:$0xff]
          %v3789 = vld [vmem:[#allocation2 + $0x138] sm:$0xff]
          %v3790 = vld [vmem:[#allocation2 + $0x140] sm:$0xff]
          %v3791 = vld [vmem:[#allocation2 + $0x148] sm:$0xff]
          %v3792 = vld [vmem:[#allocation2 + $0x150] sm:$0xff]
          %v3793 = vld [vmem:[#allocation2 + $0x158] sm:$0xff]
          %v3794 = vld [vmem:[#allocation2 + $0x160] sm:$0xff]
          %v3795 = vld [vmem:[#allocation2 + $0x168] sm:$0xff]
          %v3796 = vld [vmem:[#allocation2 + $0x170] sm:$0xff]
          %v3797 = vld [vmem:[#allocation2 + $0x178] sm:$0xff]
          %v3798 = vld [vmem:[#allocation2 + $0x180] sm:$0xff]
          %v3799 = vld [vmem:[#allocation2 + $0x188] sm:$0xff]
          %v3800 = vld [vmem:[#allocation2 + $0x190] sm:$0xff]
          %v3801 = vld [vmem:[#allocation2 + $0x198] sm:$0xff]
          %v3802 = vld [vmem:[#allocation2 + $0x1a0] sm:$0xff]
          %v3803 = vld [vmem:[#allocation2 + $0x1a8] sm:$0xff]
          %v3804 = vld [vmem:[#allocation2 + $0x1b0] sm:$0xff]
          %v3805 = vld [vmem:[#allocation2 + $0x1b8] sm:$0xff]
          %v3806 = vld [vmem:[#allocation2 + $0x1c0] sm:$0xff]
          %v3807 = vld [vmem:[#allocation2 + $0x1c8] sm:$0xff]
          %v3808 = vld [vmem:[#allocation2 + $0x1d0] sm:$0xff]
          %v3809 = vld [vmem:[#allocation2 + $0x1d8] sm:$0xff]
          %v3810 = vld [vmem:[#allocation2 + $0x1e0] sm:$0xff]
          %v3811 = vld [vmem:[#allocation2 + $0x1e8] sm:$0xff]
          %v3812 = vld [vmem:[#allocation2 + $0x1f0] sm:$0xff]
          %v3813 = vld [vmem:[#allocation2 + $0x1f8] sm:$0xff]
          %v3814 = vpack.c.bf16 %v3751, %v3750
          %v3815 = vpack.c.bf16 %v3753, %v3752
          %v3816 = vpack.c.bf16 %v3755, %v3754
          %v3817 = vpack.c.bf16 %v3757, %v3756
          %v3818 = vpack.c.bf16 %v3759, %v3758
          %v3819 = vpack.c.bf16 %v3761, %v3760
          %v3820 = vpack.c.bf16 %v3763, %v3762
          %v3821 = vpack.c.bf16 %v3765, %v3764
          %v3822 = vpack.c.bf16 %v3767, %v3766
          %v3823 = vpack.c.bf16 %v3769, %v3768
          %v3824 = vpack.c.bf16 %v3771, %v3770
          %v3825 = vpack.c.bf16 %v3773, %v3772
          %v3826 = vpack.c.bf16 %v3775, %v3774
          %v3827 = vpack.c.bf16 %v3777, %v3776
          %v3828 = vpack.c.bf16 %v3779, %v3778
          %v3829 = vpack.c.bf16 %v3781, %v3780
          %v3830 = vpack.c.bf16 %v3783, %v3782
          %v3831 = vpack.c.bf16 %v3785, %v3784
          %v3832 = vpack.c.bf16 %v3787, %v3786
          %v3833 = vpack.c.bf16 %v3789, %v3788
          %v3834 = vpack.c.bf16 %v3791, %v3790
          %v3835 = vpack.c.bf16 %v3793, %v3792
          %v3836 = vpack.c.bf16 %v3795, %v3794
          %v3837 = vpack.c.bf16 %v3797, %v3796
          %v3838 = vpack.c.bf16 %v3799, %v3798
          %v3839 = vpack.c.bf16 %v3801, %v3800
          %v3840 = vpack.c.bf16 %v3803, %v3802
          %v3841 = vpack.c.bf16 %v3805, %v3804
          %v3842 = vpack.c.bf16 %v3807, %v3806
          %v3843 = vpack.c.bf16 %v3809, %v3808
          %v3844 = vpack.c.bf16 %v3811, %v3810
          %v3845 = vpack.c.bf16 %v3813, %v3812
          %v3878 = vunpack.c.l.b16 %v3814
          %v3879 = vunpack.c.h.b16 %v3814
          %v3880 = vunpack.c.l.b16 %v3815
          %v3881 = vunpack.c.h.b16 %v3815
          %v3882 = vunpack.c.l.b16 %v3816
          %v3883 = vunpack.c.h.b16 %v3816
          %v3884 = vunpack.c.l.b16 %v3817
          %v3885 = vunpack.c.h.b16 %v3817
          %v3886 = vunpack.c.l.b16 %v3818
          %v3887 = vunpack.c.h.b16 %v3818
          %v3888 = vunpack.c.l.b16 %v3819
          %v3889 = vunpack.c.h.b16 %v3819
          %v3890 = vunpack.c.l.b16 %v3820
          %v3891 = vunpack.c.h.b16 %v3820
          %v3892 = vunpack.c.l.b16 %v3821
          %v3893 = vunpack.c.h.b16 %v3821
          %v3894 = vunpack.c.l.b16 %v3822
          %v3895 = vunpack.c.h.b16 %v3822
          %v3896 = vunpack.c.l.b16 %v3823
          %v3897 = vunpack.c.h.b16 %v3823
          %v3898 = vunpack.c.l.b16 %v3824
          %v3899 = vunpack.c.h.b16 %v3824
          %v3900 = vunpack.c.l.b16 %v3825
          %v3901 = vunpack.c.h.b16 %v3825
          %v3902 = vunpack.c.l.b16 %v3826
          %v3903 = vunpack.c.h.b16 %v3826
          %v3904 = vunpack.c.l.b16 %v3827
          %v3905 = vunpack.c.h.b16 %v3827
          %v3906 = vunpack.c.l.b16 %v3828
          %v3907 = vunpack.c.h.b16 %v3828
          %v3908 = vunpack.c.l.b16 %v3829
          %v3909 = vunpack.c.h.b16 %v3829
          %v3910 = vunpack.c.l.b16 %v3830
          %v3911 = vunpack.c.h.b16 %v3830
          %v3912 = vunpack.c.l.b16 %v3831
          %v3913 = vunpack.c.h.b16 %v3831
          %v3914 = vunpack.c.l.b16 %v3832
          %v3915 = vunpack.c.h.b16 %v3832
          %v3916 = vunpack.c.l.b16 %v3833
          %v3917 = vunpack.c.h.b16 %v3833
          %v3918 = vunpack.c.l.b16 %v3834
          %v3919 = vunpack.c.h.b16 %v3834
          %v3920 = vunpack.c.l.b16 %v3835
          %v3921 = vunpack.c.h.b16 %v3835
          %v3922 = vunpack.c.l.b16 %v3836
          %v3923 = vunpack.c.h.b16 %v3836
          %v3924 = vunpack.c.l.b16 %v3837
          %v3925 = vunpack.c.h.b16 %v3837
          %v3926 = vunpack.c.l.b16 %v3838
          %v3927 = vunpack.c.h.b16 %v3838
          %v3928 = vunpack.c.l.b16 %v3839
          %v3929 = vunpack.c.h.b16 %v3839
          %v3930 = vunpack.c.l.b16 %v3840
          %v3931 = vunpack.c.h.b16 %v3840
          %v3932 = vunpack.c.l.b16 %v3841
          %v3933 = vunpack.c.h.b16 %v3841
          %v3934 = vunpack.c.l.b16 %v3842
          %v3935 = vunpack.c.h.b16 %v3842
          %v3936 = vunpack.c.l.b16 %v3843
          %v3937 = vunpack.c.h.b16 %v3843
          %v3938 = vunpack.c.l.b16 %v3844
          %v3939 = vunpack.c.h.b16 %v3844
          %v3940 = vunpack.c.l.b16 %v3845
          %v3941 = vunpack.c.h.b16 %v3845
          %v3942 = vpack.c.b16 %v3878, %v3878
          %v3943 = vpack.c.b16 %v3879, %v3879
          %v3944 = vpack.c.b16 %v3880, %v3880
          %v3945 = vpack.c.b16 %v3881, %v3881
          %v3946 = vpack.c.b16 %v3882, %v3882
          %v3947 = vpack.c.b16 %v3883, %v3883
          %v3948 = vpack.c.b16 %v3884, %v3884
          %v3949 = vpack.c.b16 %v3885, %v3885
          %v3950 = vpack.c.b16 %v3886, %v3886
          %v3951 = vpack.c.b16 %v3887, %v3887
          %v3952 = vpack.c.b16 %v3888, %v3888
          %v3953 = vpack.c.b16 %v3889, %v3889
          %v3954 = vpack.c.b16 %v3890, %v3890
          %v3955 = vpack.c.b16 %v3891, %v3891
          %v3956 = vpack.c.b16 %v3892, %v3892
          %v3957 = vpack.c.b16 %v3893, %v3893
          %v3958 = vpack.c.b16 %v3894, %v3894
          %v3959 = vpack.c.b16 %v3895, %v3895
          %v3960 = vpack.c.b16 %v3896, %v3896
          %v3961 = vpack.c.b16 %v3897, %v3897
          %v3962 = vpack.c.b16 %v3898, %v3898
          %v3963 = vpack.c.b16 %v3899, %v3899
          %v3964 = vpack.c.b16 %v3900, %v3900
          %v3965 = vpack.c.b16 %v3901, %v3901
          %v3966 = vpack.c.b16 %v3902, %v3902
          %v3967 = vpack.c.b16 %v3903, %v3903
          %v3968 = vpack.c.b16 %v3904, %v3904
          %v3969 = vpack.c.b16 %v3905, %v3905
          %v3970 = vpack.c.b16 %v3906, %v3906
          %v3971 = vpack.c.b16 %v3907, %v3907
          %v3972 = vpack.c.b16 %v3908, %v3908
          %v3973 = vpack.c.b16 %v3909, %v3909
          %v3974 = vpack.c.b16 %v3910, %v3910
          %v3975 = vpack.c.b16 %v3911, %v3911
          %v3976 = vpack.c.b16 %v3912, %v3912
          %v3977 = vpack.c.b16 %v3913, %v3913
          %v3978 = vpack.c.b16 %v3914, %v3914
          %v3979 = vpack.c.b16 %v3915, %v3915
          %v3980 = vpack.c.b16 %v3916, %v3916
          %v3981 = vpack.c.b16 %v3917, %v3917
          %v3982 = vpack.c.b16 %v3918, %v3918
          %v3983 = vpack.c.b16 %v3919, %v3919
          %v3984 = vpack.c.b16 %v3920, %v3920
          %v3985 = vpack.c.b16 %v3921, %v3921
          %v3986 = vpack.c.b16 %v3922, %v3922
          %v3987 = vpack.c.b16 %v3923, %v3923
          %v3988 = vpack.c.b16 %v3924, %v3924
          %v3989 = vpack.c.b16 %v3925, %v3925
          %v3990 = vpack.c.b16 %v3926, %v3926
          %v3991 = vpack.c.b16 %v3927, %v3927
          %v3992 = vpack.c.b16 %v3928, %v3928
          %v3993 = vpack.c.b16 %v3929, %v3929
          %v3994 = vpack.c.b16 %v3930, %v3930
          %v3995 = vpack.c.b16 %v3931, %v3931
          %v3996 = vpack.c.b16 %v3932, %v3932
          %v3997 = vpack.c.b16 %v3933, %v3933
          %v3998 = vpack.c.b16 %v3934, %v3934
          %v3999 = vpack.c.b16 %v3935, %v3935
          %v4000 = vpack.c.b16 %v3936, %v3936
          %v4001 = vpack.c.b16 %v3937, %v3937
          %v4002 = vpack.c.b16 %v3938, %v3938
          %v4003 = vpack.c.b16 %v3939, %v3939
          %v4004 = vpack.c.b16 %v3940, %v3940
          %v4005 = vpack.c.b16 %v3941, %v3941
          %vm4070 = vcmask 519168
          %4071 = vst.msk [vmem:[%s266] sm:$0xf] %vm4070, %v3942
          %4072 = vst.msk [vmem:[%s266 + $0x4] sm:$0xf] %vm4070, %v3943
          %4073 = vst.msk [vmem:[%s266 + $0x8] sm:$0xf] %vm4070, %v3944
          %4074 = vst.msk [vmem:[%s266 + $0xc] sm:$0xf] %vm4070, %v3945
          %4075 = vst.msk [vmem:[%s266 + $0x10] sm:$0xf] %vm4070, %v3946
          %4076 = vst.msk [vmem:[%s266 + $0x14] sm:$0xf] %vm4070, %v3947
          %4077 = vst.msk [vmem:[%s266 + $0x18] sm:$0xf] %vm4070, %v3948
          %4078 = vst.msk [vmem:[%s266 + $0x1c] sm:$0xf] %vm4070, %v3949
          %4079 = vst.msk [vmem:[%s266 + $0x20] sm:$0xf] %vm4070, %v3950
          %4080 = vst.msk [vmem:[%s266 + $0x24] sm:$0xf] %vm4070, %v3951
          %4081 = vst.msk [vmem:[%s266 + $0x28] sm:$0xf] %vm4070, %v3952
          %4082 = vst.msk [vmem:[%s266 + $0x2c] sm:$0xf] %vm4070, %v3953
          %4083 = vst.msk [vmem:[%s266 + $0x30] sm:$0xf] %vm4070, %v3954
          %4084 = vst.msk [vmem:[%s266 + $0x34] sm:$0xf] %vm4070, %v3955
          %4085 = vst.msk [vmem:[%s266 + $0x38] sm:$0xf] %vm4070, %v3956
          %4086 = vst.msk [vmem:[%s266 + $0x3c] sm:$0xf] %vm4070, %v3957
          %4087 = vst.msk [vmem:[%s266 + $0x40] sm:$0xf] %vm4070, %v3958
          %4088 = vst.msk [vmem:[%s266 + $0x44] sm:$0xf] %vm4070, %v3959
          %4089 = vst.msk [vmem:[%s266 + $0x48] sm:$0xf] %vm4070, %v3960
          %4090 = vst.msk [vmem:[%s266 + $0x4c] sm:$0xf] %vm4070, %v3961
          %4091 = vst.msk [vmem:[%s266 + $0x50] sm:$0xf] %vm4070, %v3962
          %4092 = vst.msk [vmem:[%s266 + $0x54] sm:$0xf] %vm4070, %v3963
          %4093 = vst.msk [vmem:[%s266 + $0x58] sm:$0xf] %vm4070, %v3964
          %4094 = vst.msk [vmem:[%s266 + $0x5c] sm:$0xf] %vm4070, %v3965
          %4095 = vst.msk [vmem:[%s266 + $0x60] sm:$0xf] %vm4070, %v3966
          %4096 = vst.msk [vmem:[%s266 + $0x64] sm:$0xf] %vm4070, %v3967
          %4097 = vst.msk [vmem:[%s266 + $0x68] sm:$0xf] %vm4070, %v3968
          %4098 = vst.msk [vmem:[%s266 + $0x6c] sm:$0xf] %vm4070, %v3969
          %4099 = vst.msk [vmem:[%s266 + $0x70] sm:$0xf] %vm4070, %v3970
          %4100 = vst.msk [vmem:[%s266 + $0x74] sm:$0xf] %vm4070, %v3971
          %4101 = vst.msk [vmem:[%s266 + $0x78] sm:$0xf] %vm4070, %v3972
          %4102 = vst.msk [vmem:[%s266 + $0x7c] sm:$0xf] %vm4070, %v3973
          %4103 = vst.msk [vmem:[%s266 + $0x80] sm:$0xf] %vm4070, %v3974
          %4104 = vst.msk [vmem:[%s266 + $0x84] sm:$0xf] %vm4070, %v3975
          %4105 = vst.msk [vmem:[%s266 + $0x88] sm:$0xf] %vm4070, %v3976
          %4106 = vst.msk [vmem:[%s266 + $0x8c] sm:$0xf] %vm4070, %v3977
          %4107 = vst.msk [vmem:[%s266 + $0x90] sm:$0xf] %vm4070, %v3978
          %4108 = vst.msk [vmem:[%s266 + $0x94] sm:$0xf] %vm4070, %v3979
          %4109 = vst.msk [vmem:[%s266 + $0x98] sm:$0xf] %vm4070, %v3980
          %4110 = vst.msk [vmem:[%s266 + $0x9c] sm:$0xf] %vm4070, %v3981
          %4111 = vst.msk [vmem:[%s266 + $0xa0] sm:$0xf] %vm4070, %v3982
          %4112 = vst.msk [vmem:[%s266 + $0xa4] sm:$0xf] %vm4070, %v3983
          %4113 = vst.msk [vmem:[%s266 + $0xa8] sm:$0xf] %vm4070, %v3984
          %4114 = vst.msk [vmem:[%s266 + $0xac] sm:$0xf] %vm4070, %v3985
          %4115 = vst.msk [vmem:[%s266 + $0xb0] sm:$0xf] %vm4070, %v3986
          %4116 = vst.msk [vmem:[%s266 + $0xb4] sm:$0xf] %vm4070, %v3987
          %4117 = vst.msk [vmem:[%s266 + $0xb8] sm:$0xf] %vm4070, %v3988
          %4118 = vst.msk [vmem:[%s266 + $0xbc] sm:$0xf] %vm4070, %v3989
          %4119 = vst.msk [vmem:[%s266 + $0xc0] sm:$0xf] %vm4070, %v3990
          %4120 = vst.msk [vmem:[%s266 + $0xc4] sm:$0xf] %vm4070, %v3991
          %4121 = vst.msk [vmem:[%s266 + $0xc8] sm:$0xf] %vm4070, %v3992
          %4122 = vst.msk [vmem:[%s266 + $0xcc] sm:$0xf] %vm4070, %v3993
          %4123 = vst.msk [vmem:[%s266 + $0xd0] sm:$0xf] %vm4070, %v3994
          %4124 = vst.msk [vmem:[%s266 + $0xd4] sm:$0xf] %vm4070, %v3995
          %4125 = vst.msk [vmem:[%s266 + $0xd8] sm:$0xf] %vm4070, %v3996
          %4126 = vst.msk [vmem:[%s266 + $0xdc] sm:$0xf] %vm4070, %v3997
          %4127 = vst.msk [vmem:[%s266 + $0xe0] sm:$0xf] %vm4070, %v3998
          %4128 = vst.msk [vmem:[%s266 + $0xe4] sm:$0xf] %vm4070, %v3999
          %4129 = vst.msk [vmem:[%s266 + $0xe8] sm:$0xf] %vm4070, %v4000
          %4130 = vst.msk [vmem:[%s266 + $0xec] sm:$0xf] %vm4070, %v4001
          %4131 = vst.msk [vmem:[%s266 + $0xf0] sm:$0xf] %vm4070, %v4002
          %4132 = vst.msk [vmem:[%s266 + $0xf4] sm:$0xf] %vm4070, %v4003
          %4133 = vst.msk [vmem:[%s266 + $0xf8] sm:$0xf] %vm4070, %v4004
          %4134 = vst.msk [vmem:[%s266 + $0xfc] sm:$0xf] %vm4070, %v4005
          %v4135 = vld [vmem:[%s260] sm:$0xff]
          %v4136 = vld [vmem:[%s260 + $0x8] sm:$0xff]
          %v4137 = vld [vmem:[%s260 + $0x10] sm:$0xff]
          %v4138 = vld [vmem:[%s260 + $0x18] sm:$0xff]
          %v4139 = vld [vmem:[%s260 + $0x20] sm:$0xff]
          %v4140 = vld [vmem:[%s260 + $0x28] sm:$0xff]
          %v4141 = vld [vmem:[%s260 + $0x30] sm:$0xff]
          %v4142 = vld [vmem:[%s260 + $0x38] sm:$0xff]
          %v4143 = vld [vmem:[%s260 + $0x40] sm:$0xff]
          %v4144 = vld [vmem:[%s260 + $0x48] sm:$0xff]
          %v4145 = vld [vmem:[%s260 + $0x50] sm:$0xff]
          %v4146 = vld [vmem:[%s260 + $0x58] sm:$0xff]
          %v4147 = vld [vmem:[%s260 + $0x60] sm:$0xff]
          %v4148 = vld [vmem:[%s260 + $0x68] sm:$0xff]
          %v4149 = vld [vmem:[%s260 + $0x70] sm:$0xff]
          %v4150 = vld [vmem:[%s260 + $0x78] sm:$0xff]
          %v4151 = vld [vmem:[%s260 + $0x80] sm:$0xff]
          %v4152 = vld [vmem:[%s260 + $0x88] sm:$0xff]
          %v4153 = vld [vmem:[%s260 + $0x90] sm:$0xff]
          %v4154 = vld [vmem:[%s260 + $0x98] sm:$0xff]
          %v4155 = vld [vmem:[%s260 + $0xa0] sm:$0xff]
          %v4156 = vld [vmem:[%s260 + $0xa8] sm:$0xff]
          %v4157 = vld [vmem:[%s260 + $0xb0] sm:$0xff]
          %v4158 = vld [vmem:[%s260 + $0xb8] sm:$0xff]
          %v4159 = vld [vmem:[%s260 + $0xc0] sm:$0xff]
          %v4160 = vld [vmem:[%s260 + $0xc8] sm:$0xff]
          %v4161 = vld [vmem:[%s260 + $0xd0] sm:$0xff]
          %v4162 = vld [vmem:[%s260 + $0xd8] sm:$0xff]
          %v4163 = vld [vmem:[%s260 + $0xe0] sm:$0xff]
          %v4164 = vld [vmem:[%s260 + $0xe8] sm:$0xff]
          %v4165 = vld [vmem:[%s260 + $0xf0] sm:$0xff]
          %v4166 = vld [vmem:[%s260 + $0xf8] sm:$0xff]
          %v4167 = vld [vmem:[%s260 + $0x100] sm:$0xff]
          %v4168 = vld [vmem:[%s260 + $0x108] sm:$0xff]
          %v4169 = vld [vmem:[%s260 + $0x110] sm:$0xff]
          %v4170 = vld [vmem:[%s260 + $0x118] sm:$0xff]
          %v4171 = vld [vmem:[%s260 + $0x120] sm:$0xff]
          %v4172 = vld [vmem:[%s260 + $0x128] sm:$0xff]
          %v4173 = vld [vmem:[%s260 + $0x130] sm:$0xff]
          %v4174 = vld [vmem:[%s260 + $0x138] sm:$0xff]
          %v4175 = vld [vmem:[%s260 + $0x140] sm:$0xff]
          %v4176 = vld [vmem:[%s260 + $0x148] sm:$0xff]
          %v4177 = vld [vmem:[%s260 + $0x150] sm:$0xff]
          %v4178 = vld [vmem:[%s260 + $0x158] sm:$0xff]
          %v4179 = vld [vmem:[%s260 + $0x160] sm:$0xff]
          %v4180 = vld [vmem:[%s260 + $0x168] sm:$0xff]
          %v4181 = vld [vmem:[%s260 + $0x170] sm:$0xff]
          %v4182 = vld [vmem:[%s260 + $0x178] sm:$0xff]
          %v4183 = vld [vmem:[%s260 + $0x180] sm:$0xff]
          %v4184 = vld [vmem:[%s260 + $0x188] sm:$0xff]
          %v4185 = vld [vmem:[%s260 + $0x190] sm:$0xff]
          %v4186 = vld [vmem:[%s260 + $0x198] sm:$0xff]
          %v4187 = vld [vmem:[%s260 + $0x1a0] sm:$0xff]
          %v4188 = vld [vmem:[%s260 + $0x1a8] sm:$0xff]
          %v4189 = vld [vmem:[%s260 + $0x1b0] sm:$0xff]
          %v4190 = vld [vmem:[%s260 + $0x1b8] sm:$0xff]
          %v4191 = vld [vmem:[%s260 + $0x1c0] sm:$0xff]
          %v4192 = vld [vmem:[%s260 + $0x1c8] sm:$0xff]
          %v4193 = vld [vmem:[%s260 + $0x1d0] sm:$0xff]
          %v4194 = vld [vmem:[%s260 + $0x1d8] sm:$0xff]
          %v4195 = vld [vmem:[%s260 + $0x1e0] sm:$0xff]
          %v4196 = vld [vmem:[%s260 + $0x1e8] sm:$0xff]
          %v4197 = vld [vmem:[%s260 + $0x1f0] sm:$0xff]
          %v4198 = vld [vmem:[%s260 + $0x1f8] sm:$0xff]
          %v4199 = vld [vmem:[#allocation2] sm:$0xff]
          %v4200 = vld [vmem:[#allocation2 + $0x8] sm:$0xff]
          %v4201 = vld [vmem:[#allocation2 + $0x10] sm:$0xff]
          %v4202 = vld [vmem:[#allocation2 + $0x18] sm:$0xff]
          %v4203 = vld [vmem:[#allocation2 + $0x20] sm:$0xff]
          %v4204 = vld [vmem:[#allocation2 + $0x28] sm:$0xff]
          %v4205 = vld [vmem:[#allocation2 + $0x30] sm:$0xff]
          %v4206 = vld [vmem:[#allocation2 + $0x38] sm:$0xff]
          %v4207 = vld [vmem:[#allocation2 + $0x40] sm:$0xff]
          %v4208 = vld [vmem:[#allocation2 + $0x48] sm:$0xff]
          %v4209 = vld [vmem:[#allocation2 + $0x50] sm:$0xff]
          %v4210 = vld [vmem:[#allocation2 + $0x58] sm:$0xff]
          %v4211 = vld [vmem:[#allocation2 + $0x60] sm:$0xff]
          %v4212 = vld [vmem:[#allocation2 + $0x68] sm:$0xff]
          %v4213 = vld [vmem:[#allocation2 + $0x70] sm:$0xff]
          %v4214 = vld [vmem:[#allocation2 + $0x78] sm:$0xff]
          %v4215 = vld [vmem:[#allocation2 + $0x80] sm:$0xff]
          %v4216 = vld [vmem:[#allocation2 + $0x88] sm:$0xff]
          %v4217 = vld [vmem:[#allocation2 + $0x90] sm:$0xff]
          %v4218 = vld [vmem:[#allocation2 + $0x98] sm:$0xff]
          %v4219 = vld [vmem:[#allocation2 + $0xa0] sm:$0xff]
          %v4220 = vld [vmem:[#allocation2 + $0xa8] sm:$0xff]
          %v4221 = vld [vmem:[#allocation2 + $0xb0] sm:$0xff]
          %v4222 = vld [vmem:[#allocation2 + $0xb8] sm:$0xff]
          %v4223 = vld [vmem:[#allocation2 + $0xc0] sm:$0xff]
          %v4224 = vld [vmem:[#allocation2 + $0xc8] sm:$0xff]
          %v4225 = vld [vmem:[#allocation2 + $0xd0] sm:$0xff]
          %v4226 = vld [vmem:[#allocation2 + $0xd8] sm:$0xff]
          %v4227 = vld [vmem:[#allocation2 + $0xe0] sm:$0xff]
          %v4228 = vld [vmem:[#allocation2 + $0xe8] sm:$0xff]
          %v4229 = vld [vmem:[#allocation2 + $0xf0] sm:$0xff]
          %v4230 = vld [vmem:[#allocation2 + $0xf8] sm:$0xff]
          %v4231 = vld [vmem:[#allocation2 + $0x100] sm:$0xff]
          %v4232 = vld [vmem:[#allocation2 + $0x108] sm:$0xff]
          %v4233 = vld [vmem:[#allocation2 + $0x110] sm:$0xff]
          %v4234 = vld [vmem:[#allocation2 + $0x118] sm:$0xff]
          %v4235 = vld [vmem:[#allocation2 + $0x120] sm:$0xff]
          %v4236 = vld [vmem:[#allocation2 + $0x128] sm:$0xff]
          %v4237 = vld [vmem:[#allocation2 + $0x130] sm:$0xff]
          %v4238 = vld [vmem:[#allocation2 + $0x138] sm:$0xff]
          %v4239 = vld [vmem:[#allocation2 + $0x140] sm:$0xff]
          %v4240 = vld [vmem:[#allocation2 + $0x148] sm:$0xff]
          %v4241 = vld [vmem:[#allocation2 + $0x150] sm:$0xff]
          %v4242 = vld [vmem:[#allocation2 + $0x158] sm:$0xff]
          %v4243 = vld [vmem:[#allocation2 + $0x160] sm:$0xff]
          %v4244 = vld [vmem:[#allocation2 + $0x168] sm:$0xff]
          %v4245 = vld [vmem:[#allocation2 + $0x170] sm:$0xff]
          %v4246 = vld [vmem:[#allocation2 + $0x178] sm:$0xff]
          %v4247 = vld [vmem:[#allocation2 + $0x180] sm:$0xff]
          %v4248 = vld [vmem:[#allocation2 + $0x188] sm:$0xff]
          %v4249 = vld [vmem:[#allocation2 + $0x190] sm:$0xff]
          %v4250 = vld [vmem:[#allocation2 + $0x198] sm:$0xff]
          %v4251 = vld [vmem:[#allocation2 + $0x1a0] sm:$0xff]
          %v4252 = vld [vmem:[#allocation2 + $0x1a8] sm:$0xff]
          %v4253 = vld [vmem:[#allocation2 + $0x1b0] sm:$0xff]
          %v4254 = vld [vmem:[#allocation2 + $0x1b8] sm:$0xff]
          %v4255 = vld [vmem:[#allocation2 + $0x1c0] sm:$0xff]
          %v4256 = vld [vmem:[#allocation2 + $0x1c8] sm:$0xff]
          %v4257 = vld [vmem:[#allocation2 + $0x1d0] sm:$0xff]
          %v4258 = vld [vmem:[#allocation2 + $0x1d8] sm:$0xff]
          %v4259 = vld [vmem:[#allocation2 + $0x1e0] sm:$0xff]
          %v4260 = vld [vmem:[#allocation2 + $0x1e8] sm:$0xff]
          %v4261 = vld [vmem:[#allocation2 + $0x1f0] sm:$0xff]
          %v4262 = vld [vmem:[#allocation2 + $0x1f8] sm:$0xff]
          %v4263 = vadd.f32 %v4135, %v4199
          %v4264 = vadd.f32 %v4136, %v4200
          %v4265 = vadd.f32 %v4137, %v4201
          %v4266 = vadd.f32 %v4138, %v4202
          %v4267 = vadd.f32 %v4139, %v4203
          %v4268 = vadd.f32 %v4140, %v4204
          %v4269 = vadd.f32 %v4141, %v4205
          %v4270 = vadd.f32 %v4142, %v4206
          %v4271 = vadd.f32 %v4143, %v4207
          %v4272 = vadd.f32 %v4144, %v4208
          %v4273 = vadd.f32 %v4145, %v4209
          %v4274 = vadd.f32 %v4146, %v4210
          %v4275 = vadd.f32 %v4147, %v4211
          %v4276 = vadd.f32 %v4148, %v4212
          %v4277 = vadd.f32 %v4149, %v4213
          %v4278 = vadd.f32 %v4150, %v4214
          %v4279 = vadd.f32 %v4151, %v4215
          %v4280 = vadd.f32 %v4152, %v4216
          %v4281 = vadd.f32 %v4153, %v4217
          %v4282 = vadd.f32 %v4154, %v4218
          %v4283 = vadd.f32 %v4155, %v4219
          %v4284 = vadd.f32 %v4156, %v4220
          %v4285 = vadd.f32 %v4157, %v4221
          %v4286 = vadd.f32 %v4158, %v4222
          %v4287 = vadd.f32 %v4159, %v4223
          %v4288 = vadd.f32 %v4160, %v4224
          %v4289 = vadd.f32 %v4161, %v4225
          %v4290 = vadd.f32 %v4162, %v4226
          %v4291 = vadd.f32 %v4163, %v4227
          %v4292 = vadd.f32 %v4164, %v4228
          %v4293 = vadd.f32 %v4165, %v4229
          %v4294 = vadd.f32 %v4166, %v4230
          %v4295 = vadd.f32 %v4167, %v4231
          %v4296 = vadd.f32 %v4168, %v4232
          %v4297 = vadd.f32 %v4169, %v4233
          %v4298 = vadd.f32 %v4170, %v4234
          %v4299 = vadd.f32 %v4171, %v4235
          %v4300 = vadd.f32 %v4172, %v4236
          %v4301 = vadd.f32 %v4173, %v4237
          %v4302 = vadd.f32 %v4174, %v4238
          %v4303 = vadd.f32 %v4175, %v4239
          %v4304 = vadd.f32 %v4176, %v4240
          %v4305 = vadd.f32 %v4177, %v4241
          %v4306 = vadd.f32 %v4178, %v4242
          %v4307 = vadd.f32 %v4179, %v4243
          %v4308 = vadd.f32 %v4180, %v4244
          %v4309 = vadd.f32 %v4181, %v4245
          %v4310 = vadd.f32 %v4182, %v4246
          %v4311 = vadd.f32 %v4183, %v4247
          %v4312 = vadd.f32 %v4184, %v4248
          %v4313 = vadd.f32 %v4185, %v4249
          %v4314 = vadd.f32 %v4186, %v4250
          %v4315 = vadd.f32 %v4187, %v4251
          %v4316 = vadd.f32 %v4188, %v4252
          %v4317 = vadd.f32 %v4189, %v4253
          %v4318 = vadd.f32 %v4190, %v4254
          %v4319 = vadd.f32 %v4191, %v4255
          %v4320 = vadd.f32 %v4192, %v4256
          %v4321 = vadd.f32 %v4193, %v4257
          %v4322 = vadd.f32 %v4194, %v4258
          %v4323 = vadd.f32 %v4195, %v4259
          %v4324 = vadd.f32 %v4196, %v4260
          %v4325 = vadd.f32 %v4197, %v4261
          %v4326 = vadd.f32 %v4198, %v4262
          %4327 = vst.msk [vmem:[%s272] sm:$0xff] %vm3681, %v4263
          %4328 = vst.msk [vmem:[%s272 + $0x8] sm:$0xff] %vm3681, %v4264
          %4329 = vst.msk [vmem:[%s272 + $0x10] sm:$0xff] %vm3681, %v4265
          %4330 = vst.msk [vmem:[%s272 + $0x18] sm:$0xff] %vm3681, %v4266
          %4331 = vst.msk [vmem:[%s272 + $0x20] sm:$0xff] %vm3681, %v4267
          %4332 = vst.msk [vmem:[%s272 + $0x28] sm:$0xff] %vm3681, %v4268
          %4333 = vst.msk [vmem:[%s272 + $0x30] sm:$0xff] %vm3681, %v4269
          %4334 = vst.msk [vmem:[%s272 + $0x38] sm:$0xff] %vm3681, %v4270
          %4335 = vst.msk [vmem:[%s272 + $0x40] sm:$0xff] %vm3681, %v4271
          %4336 = vst.msk [vmem:[%s272 + $0x48] sm:$0xff] %vm3681, %v4272
          %4337 = vst.msk [vmem:[%s272 + $0x50] sm:$0xff] %vm3681, %v4273
          %4338 = vst.msk [vmem:[%s272 + $0x58] sm:$0xff] %vm3681, %v4274
          %4339 = vst.msk [vmem:[%s272 + $0x60] sm:$0xff] %vm3681, %v4275
          %4340 = vst.msk [vmem:[%s272 + $0x68] sm:$0xff] %vm3681, %v4276
          %4341 = vst.msk [vmem:[%s272 + $0x70] sm:$0xff] %vm3681, %v4277
          %4342 = vst.msk [vmem:[%s272 + $0x78] sm:$0xff] %vm3681, %v4278
          %4343 = vst.msk [vmem:[%s272 + $0x80] sm:$0xff] %vm3681, %v4279
          %4344 = vst.msk [vmem:[%s272 + $0x88] sm:$0xff] %vm3681, %v4280
          %4345 = vst.msk [vmem:[%s272 + $0x90] sm:$0xff] %vm3681, %v4281
          %4346 = vst.msk [vmem:[%s272 + $0x98] sm:$0xff] %vm3681, %v4282
          %4347 = vst.msk [vmem:[%s272 + $0xa0] sm:$0xff] %vm3681, %v4283
          %4348 = vst.msk [vmem:[%s272 + $0xa8] sm:$0xff] %vm3681, %v4284
          %4349 = vst.msk [vmem:[%s272 + $0xb0] sm:$0xff] %vm3681, %v4285
          %4350 = vst.msk [vmem:[%s272 + $0xb8] sm:$0xff] %vm3681, %v4286
          %4351 = vst.msk [vmem:[%s272 + $0xc0] sm:$0xff] %vm3681, %v4287
          %4352 = vst.msk [vmem:[%s272 + $0xc8] sm:$0xff] %vm3681, %v4288
          %4353 = vst.msk [vmem:[%s272 + $0xd0] sm:$0xff] %vm3681, %v4289
          %4354 = vst.msk [vmem:[%s272 + $0xd8] sm:$0xff] %vm3681, %v4290
          %4355 = vst.msk [vmem:[%s272 + $0xe0] sm:$0xff] %vm3681, %v4291
          %4356 = vst.msk [vmem:[%s272 + $0xe8] sm:$0xff] %vm3681, %v4292
          %4357 = vst.msk [vmem:[%s272 + $0xf0] sm:$0xff] %vm3681, %v4293
          %4358 = vst.msk [vmem:[%s272 + $0xf8] sm:$0xff] %vm3681, %v4294
          %4359 = vst.msk [vmem:[%s272 + $0x100] sm:$0xff] %vm3681, %v4295
          %4360 = vst.msk [vmem:[%s272 + $0x108] sm:$0xff] %vm3681, %v4296
          %4361 = vst.msk [vmem:[%s272 + $0x110] sm:$0xff] %vm3681, %v4297
          %4362 = vst.msk [vmem:[%s272 + $0x118] sm:$0xff] %vm3681, %v4298
          %4363 = vst.msk [vmem:[%s272 + $0x120] sm:$0xff] %vm3681, %v4299
          %4364 = vst.msk [vmem:[%s272 + $0x128] sm:$0xff] %vm3681, %v4300
          %4365 = vst.msk [vmem:[%s272 + $0x130] sm:$0xff] %vm3681, %v4301
          %4366 = vst.msk [vmem:[%s272 + $0x138] sm:$0xff] %vm3681, %v4302
          %4367 = vst.msk [vmem:[%s272 + $0x140] sm:$0xff] %vm3681, %v4303
          %4368 = vst.msk [vmem:[%s272 + $0x148] sm:$0xff] %vm3681, %v4304
          %4369 = vst.msk [vmem:[%s272 + $0x150] sm:$0xff] %vm3681, %v4305
          %4370 = vst.msk [vmem:[%s272 + $0x158] sm:$0xff] %vm3681, %v4306
          %4371 = vst.msk [vmem:[%s272 + $0x160] sm:$0xff] %vm3681, %v4307
          %4372 = vst.msk [vmem:[%s272 + $0x168] sm:$0xff] %vm3681, %v4308
          %4373 = vst.msk [vmem:[%s272 + $0x170] sm:$0xff] %vm3681, %v4309
          %4374 = vst.msk [vmem:[%s272 + $0x178] sm:$0xff] %vm3681, %v4310
          %4375 = vst.msk [vmem:[%s272 + $0x180] sm:$0xff] %vm3681, %v4311
          %4376 = vst.msk [vmem:[%s272 + $0x188] sm:$0xff] %vm3681, %v4312
          %4377 = vst.msk [vmem:[%s272 + $0x190] sm:$0xff] %vm3681, %v4313
          %4378 = vst.msk [vmem:[%s272 + $0x198] sm:$0xff] %vm3681, %v4314
          %4379 = vst.msk [vmem:[%s272 + $0x1a0] sm:$0xff] %vm3681, %v4315
          %4380 = vst.msk [vmem:[%s272 + $0x1a8] sm:$0xff] %vm3681, %v4316
          %4381 = vst.msk [vmem:[%s272 + $0x1b0] sm:$0xff] %vm3681, %v4317
          %4382 = vst.msk [vmem:[%s272 + $0x1b8] sm:$0xff] %vm3681, %v4318
          %4383 = vst.msk [vmem:[%s272 + $0x1c0] sm:$0xff] %vm3681, %v4319
          %4384 = vst.msk [vmem:[%s272 + $0x1c8] sm:$0xff] %vm3681, %v4320
          %4385 = vst.msk [vmem:[%s272 + $0x1d0] sm:$0xff] %vm3681, %v4321
          %4386 = vst.msk [vmem:[%s272 + $0x1d8] sm:$0xff] %vm3681, %v4322
          %4387 = vst.msk [vmem:[%s272 + $0x1e0] sm:$0xff] %vm3681, %v4323
          %4388 = vst.msk [vmem:[%s272 + $0x1e8] sm:$0xff] %vm3681, %v4324
          %4389 = vst.msk [vmem:[%s272 + $0x1f0] sm:$0xff] %vm3681, %v4325
          %4390 = vst.msk [vmem:[%s272 + $0x1f8] sm:$0xff] %vm3681, %v4326
        $region44: #{lightgcn_propagate_layer.1} parent=31 // pred_fallthru
          _
        %s4391 = smul.u32 64, %s23
        %p4392 = scmp.lt.s32.totalorder %s4391, 255
        %s4393 = scalar_select %p4392, %s4391, 255
        %s4394 = smul.addr %s4393, 4
        %s4395 = scalar_lea.vmem %s3, %s4394
        %s4396 = smul.u32 64, %s23
        %p4397 = scmp.lt.s32.totalorder %s4396, 255
        %s4398 = scalar_select %p4397, %s4396, 255
        %s4399 = smul.addr %s4398, 8
        %s4400 = scalar_lea.vmem %s4, %s4399
        // Predicated region
        $region45: #{lightgcn_propagate_layer.1} parent=31 // pred_check
          %p4401 = pneg %p124
        $region46: #{lightgcn_propagate_layer.1} parent=31 // pred_check_branch
          %4403 = sbr.rel (%p4401) target = $region48
        $region47: #{lightgcn_propagate_layer.1} parent=31 // pred_region
          %s4404 = smul.u32 64, %s23
        $region48: #{lightgcn_propagate_layer.1} parent=31 // pred_fallthru
          _
        // Predicated region
        $region49: #{lightgcn_propagate_layer.1} parent=31 // pred_check
          %p4405 = pneg %p150
        $region50: #{lightgcn_propagate_layer.1} parent=31 // pred_check_branch
          %4407 = sbr.rel (%p4405) target = $region52
        $region51: #{lightgcn_propagate_layer.1} parent=31 // pred_region
          %s4408 = smul.u32 64, %s23
        $region52: #{lightgcn_propagate_layer.1} parent=31 // pred_fallthru
          _
      $region32: #{lightgcn_propagate_layer.1} parent=5 // pred_fallthru
        _
      %p4409 = scmp.le.s32.totalorder 2, %s14
      // Predicated region
      $region53: #{lightgcn_propagate_layer.1} parent=5 // pred_check
        %p4410 = pneg %p4409
      $region54: #{lightgcn_propagate_layer.1} parent=5 // pred_check_branch
        %4412 = sbr.rel (%p4410) target = $region56
      $region55: #{lightgcn_propagate_layer.1} parent=5 // pred_region
        %s4413 = ssub.s32 %s14, 2
        // Predicated region
        $region57: #{lightgcn_propagate_layer.1} parent=55 // pred_check
          %p4414 = pneg %p130
        $region58: #{lightgcn_propagate_layer.1} parent=55 // pred_check_branch
          %4416 = sbr.rel (%p4414) target = $region60
        $region59: #{lightgcn_propagate_layer.1} parent=55 // pred_region
          %s4417 = smul.u32 64, %s25
          %p4418 = scmp.lt.s32.totalorder %s4417, 255
          %s4419 = scalar_select %p4418, %s4417, 255
          %s4420 = smul.addr %s4419, 4
          %s4421 = scalar_lea.vmem %s3, %s4420
        $region60: #{lightgcn_propagate_layer.1} parent=55 // pred_fallthru
          _
        // Predicated region
        $region61: #{lightgcn_propagate_layer.1} parent=55 // pred_check
          %p4422 = pneg %p156
        $region62: #{lightgcn_propagate_layer.1} parent=55 // pred_check_branch
          %4424 = sbr.rel (%p4422) target = $region64
        $region63: #{lightgcn_propagate_layer.1} parent=55 // pred_region
          %s4425 = smul.u32 64, %s25
          %p4426 = scmp.lt.s32.totalorder %s4425, 255
          %s4427 = scalar_select %p4426, %s4425, 255
          %s4428 = smul.addr %s4427, 8
          %s4429 = scalar_lea.vmem %s4, %s4428
        $region64: #{lightgcn_propagate_layer.1} parent=55 // pred_fallthru
          _
      $region56: #{lightgcn_propagate_layer.1} parent=5 // pred_fallthru
        _
    $region6: #{lightgcn_propagate_layer.1} parent=1 // loop_footer
      %s18 = sadd.s32 1, %s14
    $region7: #{lightgcn_propagate_layer.1} parent=1 // loop_footer_branch
      %13 = sbr.rel target = $region3
    $region8: #{lightgcn_propagate_layer.1} parent=1 // loop_exit
      _
    %4430 = vsyncpa [#allocation4], 1
    %s4431 = scalar_lea.sflag [#allocation4], 1
    %4432 = vsyncpa %s4431, 1

</llo_original>
